<compile_context>
chip_gen: v7x
topology: tpu7x:2x2x1
jax: 0.10.0
libtpu: 0.0.40
codegen_flags: <defaults>
</compile_context>

<pallas_src>
import functools

import jax
import jax.numpy as jnp
from jax import lax
from jax.experimental import pallas as pl
from jax.experimental.pallas import tpu as pltpu


def _largest_aligned_divisor(n, cap, align):
    """Largest divisor of n that is a multiple of `align` and <= cap; else n."""
    best = None
    d = align
    top = min(cap, n)
    while d <= top:
        if n % d == 0:
            best = d
        d += align
    return best if best is not None else n


# ----------------------------------------------------------------------------
# Conv1d(k=3, pad=1, stride in {1,2}) + ReLU (+ optional AvgPool1d(2)) kernel
# ----------------------------------------------------------------------------
def _conv_k3_kernel(x_ref, w_ref, b_ref, o_ref, *, tile_out, stride, pool, n_tiles):
    # x_ref: (L_in + 2, C_in)  -- full zero-padded input, resident across L tiles
    # w_ref: (3, C_in, C_out)
    # b_ref: (1, C_out)
    # o_ref: (tile_out, C_out) -- tile of the (pooled) output rows
    c_out = w_ref.shape[2]

    if n_tiles == 1:
        row0 = 0
    else:
        step = stride * tile_out * (2 if pool else 1)
        row0 = pl.multiple_of(pl.program_id(1) * step, step)

    def conv_rows(start, load_stride):
        # Computes ReLU(conv + bias) for `tile_out` output rows whose first
        # input row is `start`, with input rows `load_stride` apart.
        acc = jnp.zeros((tile_out, c_out), jnp.float32)
        for k in range(3):
            if load_stride == 1:
                xk = x_ref[pl.ds(start + k, tile_out), :]
            else:
                xk = x_ref[pl.ds(start + k, tile_out, stride=load_stride), :]
            acc = acc + jnp.dot(xk, w_ref[k], preferred_element_type=jnp.float32)
        return jnp.maximum(acc + b_ref[...], 0.0)

    if pool:
        # AvgPool1d(2): pooled row p = mean(conv row 2p, conv row 2p+1).
        # Even / odd conv rows are accumulated separately (load stride 2*stride)
        # and averaged in registers -- no scratch round-trip, and odd trailing
        # conv rows are naturally dropped (PyTorch floor behavior).
        even = conv_rows(row0, 2 * stride)
        odd = conv_rows(row0 + stride, 2 * stride)
        o_ref[...] = 0.5 * (even + odd)
    else:
        o_ref[...] = conv_rows(row0, stride)


def conv1d_k3(x, w_pt, b, *, stride, pool, l_tile_cap=1024):
    """x: (B, L_in, C_in) channels-last; w_pt: (C_out, C_in, 3) PyTorch layout; b: (C_out,)."""
    B, L_in, C_in = x.shape
    C_out = w_pt.shape[0]
    L_pad = L_in + 2
    l_out = (L_in + 2 - 3) // stride + 1
    l_final = (l_out // 2) if pool else l_out

    x_pad = jnp.pad(x.astype(jnp.float32), ((0, 0), (1, 1), (0, 0)))  # padding=1 (zeros)
    w = jnp.transpose(w_pt, (2, 1, 0)).astype(jnp.float32)            # (3, C_in, C_out), tiny
    b2 = b.reshape(1, C_out).astype(jnp.float32)

    # Output L-tile: multiple of 8 sublanes dividing l_final, else one full tile.
    tile_out = _largest_aligned_divisor(l_final, l_tile_cap, align=8)
    n_tiles = l_final // tile_out

    kernel = functools.partial(
        _conv_k3_kernel, tile_out=tile_out, stride=stride, pool=pool, n_tiles=n_tiles)
    return pl.pallas_call(
        kernel,
        out_shape=jax.ShapeDtypeStruct((B, l_final, C_out), jnp.float32),
        grid=(B, n_tiles),
        in_specs=[
            pl.BlockSpec((None, L_pad, C_in), lambda bi, li: (bi, 0, 0)),  # resident across li
            pl.BlockSpec((3, C_in, C_out), lambda bi, li: (0, 0, 0)),
            pl.BlockSpec((1, C_out), lambda bi, li: (0, 0)),
        ],
        out_specs=pl.BlockSpec((None, tile_out, C_out), lambda bi, li: (bi, li, 0)),
        compiler_params=pltpu.CompilerParams(
            dimension_semantics=("parallel", "parallel")),
    )(x_pad, w, b2)


# ----------------------------------------------------------------------------
# Linear kernel: y = x @ W.T + b, tiled over N and K, accumulating over K
# ----------------------------------------------------------------------------
def _linear_kernel(x_ref, w_ref, b_ref, o_ref):
    # x_ref: (B, tk); w_ref: (tn, tk) (PyTorch (N, K) layout); b_ref: (1, tn)
    # o_ref: (B, tn) -- revisited across the K axis, used as f32 accumulator.
    ki = pl.program_id(1)

    @pl.when(ki == 0)
    def _init():
        o_ref[...] = jnp.zeros_like(o_ref)

    o_ref[...] += lax.dot_general(
        x_ref[...], w_ref[...],
        dimension_numbers=(((1,), (1,)), ((), ())),
        preferred_element_type=jnp.float32)

    @pl.when(ki == pl.num_programs(1) - 1)
    def _finalize():
        o_ref[...] += b_ref[...]


def linear(x, w_pt, b, *, tn_target=512, tk_target=4096):
    """x: (B, K); w_pt: (N, K) PyTorch layout (NOT transposed); b: (N,)."""
    B, K = x.shape
    N = w_pt.shape[0]
    tn = _largest_aligned_divisor(N, tn_target, align=128)
    tk = _largest_aligned_divisor(K, tk_target, align=128)

    x = x.astype(jnp.float32)
    w = w_pt.astype(jnp.float32)
    b2 = b.reshape(1, N).astype(jnp.float32)

    return pl.pallas_call(
        _linear_kernel,
        out_shape=jax.ShapeDtypeStruct((B, N), jnp.float32),
        grid=(N // tn, K // tk),          # weight streamed exactly once (no batch axis)
        in_specs=[
            pl.BlockSpec((B, tk), lambda ni, ki: (0, ki)),
            pl.BlockSpec((tn, tk), lambda ni, ki: (ni, ki)),
            pl.BlockSpec((1, tn), lambda ni, ki: (0, ni)),
        ],
        out_specs=pl.BlockSpec((B, tn), lambda ni, ki: (0, ni)),
        compiler_params=pltpu.CompilerParams(
            dimension_semantics=("parallel", "arbitrary"),
            vmem_limit_bytes=32 << 20,    # ~2x(tk*tn*4B) weight buffers + small x/out
        ),
    )(x, w, b2)


# ----------------------------------------------------------------------------
# Full forward pass (glue in plain JAX: transposes / padding / flatten)
# ----------------------------------------------------------------------------
def cnn_laser_forward(x, params):
    """x: (B, 6, L) in PyTorch NCL layout. Returns (B, 2048)."""
    h = jnp.transpose(x, (0, 2, 1))  # -> (B, L, C) channels-last for the conv kernels
    h = conv1d_k3(h, params["w1"], params["b1"], stride=1, pool=False)
    h = conv1d_k3(h, params["w2"], params["b2"], stride=2, pool=True)
    h = conv1d_k3(h, params["w3"], params["b3"], stride=1, pool=False)
    h = conv1d_k3(h, params["w4"], params["b4"], stride=2, pool=True)
    h = conv1d_k3(h, params["w5"], params["b5"], stride=1, pool=False)
    h = conv1d_k3(h, params["w6"], params["b6"], stride=2, pool=True)
    # PyTorch: x.view(B, -1) on an NCL tensor -> channel-major flatten (tiny transpose).
    feat = jnp.transpose(h, (0, 2, 1)).reshape(h.shape[0], -1)
    return linear(feat, params["wl"], params["bl"])


# ----------------------------------------------------------------------------
# Deterministic synthetic parameter init (shapes from CNNLaser.__init__)
# ----------------------------------------------------------------------------
def _out_len(l, stride):
    return (l + 2 - 3) // stride + 1


def _feature_len(seq_len):
    l = seq_len
    for _ in range(3):
        l = _out_len(l, 1)          # conv stride 1
        l = _out_len(l, 2) // 2     # conv stride 2 + AvgPool1d(2)
    return l


def init_params(key, seq_len):
    conv_specs = [
        ("w1", "b1", 32, 6), ("w2", "b2", 32, 32),
        ("w3", "b3", 64, 32), ("w4", "b4", 64, 64),
        ("w5", "b5", 128, 64), ("w6", "b6", 128, 128),
    ]
    params = {}
    keys = jax.random.split(key, len(conv_specs) + 1)
    for (wn, bn, co, ci), k in zip(conv_specs, keys[:-1]):
        kw, kb = jax.random.split(k)
        bound = 1.0 / (ci * 3) ** 0.5
        params[wn] = jax.random.uniform(kw, (co, ci, 3), jnp.float32, -bound, bound)
        params[bn] = jax.random.uniform(kb, (co,), jnp.float32, -bound, bound)
    # Linear(128 * L_final, 2048)   (= Linear(128*203, 2048) when seq_len == 13000)
    k_in = 128 * _feature_len(seq_len)
    kw, kb = jax.random.split(keys[-1])
    bound = 1.0 / k_in ** 0.5
    params["wl"] = jax.random.uniform(kw, (2048, k_in), jnp.float32, -bound, bound)
    params["bl"] = jax.random.uniform(kb, (2048,), jnp.float32, -bound, bound)
    return params


# ----------------------------------------------------------------------------
# Pure-JAX references (mirror the PyTorch forward) for verification
# ----------------------------------------------------------------------------
def _ref_conv_ncl(h, w, b, stride, pool):
    y = lax.conv_general_dilated(
        h, w, window_strides=(stride,), padding=[(1, 1)],
        dimension_numbers=("NCH", "OIH", "NCH"), precision="highest")
    y = jax.nn.relu(y + b[None, :, None])
    if pool:
        B, C, L = y.shape
        y = y[:, :, : (L // 2) * 2].reshape(B, C, L // 2, 2).mean(-1)
    return y


def _ref_forward(x, params):
    h = _ref_conv_ncl(x, params["w1"], params["b1"], 1, False)
    h = _ref_conv_ncl(h, params["w2"], params["b2"], 2, True)
    h = _ref_conv_ncl(h, params["w3"], params["b3"], 1, False)
    h = _ref_conv_ncl(h, params["w4"], params["b4"], 2, True)
    h = _ref_conv_ncl(h, params["w5"], params["b5"], 1, False)
    h = _ref_conv_ncl(h, params["w6"], params["b6"], 2, True)
    flat = h.reshape(h.shape[0], -1)
    return jnp.dot(flat, params["wl"].T, precision="highest") + params["bl"][None, :]


if __name__ == "__main__":
    B, C_IN, L = 2, 6, 1024  # small stand-in for (1, 6, 13000); same architecture
    key = jax.random.PRNGKey(0)
    kx, kp, kc, kl = jax.random.split(key, 4)
    x = jax.random.normal(kx, (B, C_IN, L), jnp.float32)
    params = init_params(kp, seq_len=L)

    # Full forward pass vs. pure-JAX reference.
    out = jax.block_until_ready(cnn_laser_forward(x, params))
    assert out.shape == (B, 2048), out.shape
    ref = _ref_forward(x, params)
    max_err = float(jnp.max(jnp.abs(out - ref)))
    if max_err > 1e-3:
        raise AssertionError(f"forward mismatch vs reference: max abs err {max_err}")

    # Standalone conv check exercising multiple L tiles (stride-1 and stride-2+pool).
    kc1, kc2, kc3 = jax.random.split(kc, 3)
    xc = jax.random.normal(kc1, (2, 96, 16), jnp.float32)             # (B, L, C_in)
    wc = jax.random.normal(kc2, (32, 16, 3), jnp.float32) * 0.1
    bc = jax.random.normal(kc3, (32,), jnp.float32) * 0.1
    for stride, pool, cap in ((1, False, 16), (2, True, 8)):
        yk = jax.block_until_ready(
            conv1d_k3(xc, wc, bc, stride=stride, pool=pool, l_tile_cap=cap))
        yr = _ref_conv_ncl(jnp.transpose(xc, (0, 2, 1)), wc, bc, stride, pool)
        yr = jnp.transpose(yr, (0, 2, 1))
        err = float(jnp.max(jnp.abs(yk - yr)))
        if err > 1e-3:
            raise AssertionError(
                f"conv mismatch (stride={stride}, pool={pool}): max abs err {err}")

    # Standalone linear check exercising multi-step K accumulation + N tiling.
    kl1, kl2, kl3 = jax.random.split(kl, 3)
    xl = jax.random.normal(kl1, (2, 1024), jnp.float32)
    wl = jax.random.normal(kl2, (1024, 1024), jnp.float32) * 0.03
    bl = jax.random.normal(kl3, (1024,), jnp.float32)
    yl = jax.block_until_ready(linear(xl, wl, bl, tn_target=256, tk_target=256))
    ylr = jnp.dot(xl, wl.T, precision="highest") + bl[None, :]
    err = float(jnp.max(jnp.abs(yl - ylr)))
    if err > 1e-3:
        raise AssertionError(f"linear mismatch: max abs err {err}")

    print("KERNEL_OK")
</pallas_src>

<mosaic_0001>
module attributes {stable_mosaic.version = 11 : i64} {
  func.func @_conv_k3_kernel(%arg0: i32, %arg1: i32, %arg2: memref<1x1026x6xf32, #tpu.memory_space<vmem>>, %arg3: memref<3x6x32xf32, #tpu.memory_space<vmem>>, %arg4: memref<1x32xf32, #tpu.memory_space<vmem>>, %arg5: memref<1x1024x32xf32, #tpu.memory_space<vmem>>) attributes {dimension_semantics = [#tpu.dimension_semantics<parallel>, #tpu.dimension_semantics<parallel>], iteration_bounds = array<i64: 2, 1>, scalar_prefetch = 0 : i64, scratch_operands = 0 : i64, tpu.core_type = #tpu.core_type<tc>, window_params = [{transform_indices = @transform_0, window_bounds = array<i64: 1, 1026, 6>}, {pipeline_mode = #tpu.pipeline_mode<synchronous>, transform_indices = @transform_1, window_bounds = array<i64: 3, 6, 32>}, {pipeline_mode = #tpu.pipeline_mode<synchronous>, transform_indices = @transform_2, window_bounds = array<i64: 1, 32>}, {transform_indices = @transform_3, window_bounds = array<i64: 1, 1024, 32>}]} {
    %cst = arith.constant 0.000000e+00 : f32
    %0 = vector.broadcast %cst : f32 to vector<1024x32xf32>
    %c0 = arith.constant 0 : index
    %c0_0 = arith.constant 0 : index
    %c0_1 = arith.constant 0 : index
    %1 = vector.load %arg2[%c0, %c0_0, %c0_1] : memref<1x1026x6xf32, #tpu.memory_space<vmem>>, vector<1x1024x6xf32>
    %2 = vector.shape_cast %1 : vector<1x1024x6xf32> to vector<1024x6xf32>
    %c0_2 = arith.constant 0 : index
    %c0_3 = arith.constant 0 : index
    %c0_4 = arith.constant 0 : index
    %3 = vector.load %arg3[%c0_2, %c0_3, %c0_4] : memref<3x6x32xf32, #tpu.memory_space<vmem>>, vector<1x6x32xf32>
    %4 = vector.shape_cast %3 : vector<1x6x32xf32> to vector<6x32xf32>
    %cst_5 = arith.constant dense<0.000000e+00> : vector<1024x32xf32>
    %5 = tpu.matmul %2, %4, %cst_5 {dimension_numbers = #tpu.dot_dimension_numbers<[1], [0], [0], [1], [0, 0, 1, 1], [], []>} : vector<1024x6xf32>, vector<6x32xf32>, vector<1024x32xf32> -> vector<1024x32xf32>
    %6 = arith.addf %0, %5 : vector<1024x32xf32>
    %c0_6 = arith.constant 0 : index
    %c1 = arith.constant 1 : index
    %c0_7 = arith.constant 0 : index
    %7 = vector.load %arg2[%c0_6, %c1, %c0_7] : memref<1x1026x6xf32, #tpu.memory_space<vmem>>, vector<1x1024x6xf32>
    %8 = vector.shape_cast %7 : vector<1x1024x6xf32> to vector<1024x6xf32>
    %c1_8 = arith.constant 1 : index
    %c0_9 = arith.constant 0 : index
    %c0_10 = arith.constant 0 : index
    %9 = vector.load %arg3[%c1_8, %c0_9, %c0_10] : memref<3x6x32xf32, #tpu.memory_space<vmem>>, vector<1x6x32xf32>
    %10 = vector.shape_cast %9 : vector<1x6x32xf32> to vector<6x32xf32>
    %cst_11 = arith.constant dense<0.000000e+00> : vector<1024x32xf32>
    %11 = tpu.matmul %8, %10, %cst_11 {dimension_numbers = #tpu.dot_dimension_numbers<[1], [0], [0], [1], [0, 0, 1, 1], [], []>} : vector<1024x6xf32>, vector<6x32xf32>, vector<1024x32xf32> -> vector<1024x32xf32>
    %12 = arith.addf %6, %11 : vector<1024x32xf32>
    %c0_12 = arith.constant 0 : index
    %c2 = arith.constant 2 : index
    %c0_13 = arith.constant 0 : index
    %13 = vector.load %arg2[%c0_12, %c2, %c0_13] : memref<1x1026x6xf32, #tpu.memory_space<vmem>>, vector<1x1024x6xf32>
    %14 = vector.shape_cast %13 : vector<1x1024x6xf32> to vector<1024x6xf32>
    %c2_14 = arith.constant 2 : index
    %c0_15 = arith.constant 0 : index
    %c0_16 = arith.constant 0 : index
    %15 = vector.load %arg3[%c2_14, %c0_15, %c0_16] : memref<3x6x32xf32, #tpu.memory_space<vmem>>, vector<1x6x32xf32>
    %16 = vector.shape_cast %15 : vector<1x6x32xf32> to vector<6x32xf32>
    %cst_17 = arith.constant dense<0.000000e+00> : vector<1024x32xf32>
    %17 = tpu.matmul %14, %16, %cst_17 {dimension_numbers = #tpu.dot_dimension_numbers<[1], [0], [0], [1], [0, 0, 1, 1], [], []>} : vector<1024x6xf32>, vector<6x32xf32>, vector<1024x32xf32> -> vector<1024x32xf32>
    %18 = arith.addf %12, %17 : vector<1024x32xf32>
    %c0_18 = arith.constant 0 : index
    %c0_19 = arith.constant 0 : index
    %19 = vector.load %arg4[%c0_18, %c0_19] : memref<1x32xf32, #tpu.memory_space<vmem>>, vector<1x32xf32>
    %20 = vector.broadcast %19 : vector<1x32xf32> to vector<1024x32xf32>
    %21 = arith.addf %18, %20 : vector<1024x32xf32>
    %cst_20 = arith.constant 0.000000e+00 : f32
    %22 = vector.broadcast %cst_20 : f32 to vector<1024x32xf32>
    %23 = arith.maximumf %21, %22 : vector<1024x32xf32>
    %c0_21 = arith.constant 0 : index
    %c0_22 = arith.constant 0 : index
    %c0_23 = arith.constant 0 : index
    %24 = vector.load %arg5[%c0_21, %c0_22, %c0_23] : memref<1x1024x32xf32, #tpu.memory_space<vmem>>, vector<1x1024x32xf32>
    %25 = vector.shape_cast %24 : vector<1x1024x32xf32> to vector<1024x32xf32>
    %26 = vector.shape_cast %23 : vector<1024x32xf32> to vector<1x1024x32xf32>
    tpu.vector_store %arg5[%c0_21, %c0_22, %c0_23], %26 {strides = array<i32>} : memref<1x1024x32xf32, #tpu.memory_space<vmem>>, vector<1x1024x32xf32>,
    return
  }
  func.func @transform_0(%arg0: i32, %arg1: i32) -> (i32, i32, i32) {
    %c0_i32 = arith.constant 0 : i32
    %c0_i32_0 = arith.constant 0 : i32
    %c0_i32_1 = arith.constant 0 : i32
    return %arg0, %c0_i32, %c0_i32_0 : i32, i32, i32
  }
  func.func @transform_1(%arg0: i32, %arg1: i32) -> (i32, i32, i32) {
    %c0_i32 = arith.constant 0 : i32
    %c0_i32_0 = arith.constant 0 : i32
    %c0_i32_1 = arith.constant 0 : i32
    %c0_i32_2 = arith.constant 0 : i32
    return %c0_i32, %c0_i32_0, %c0_i32_1 : i32, i32, i32
  }
  func.func @transform_2(%arg0: i32, %arg1: i32) -> (i32, i32) {
    %c0_i32 = arith.constant 0 : i32
    %c0_i32_0 = arith.constant 0 : i32
    %c0_i32_1 = arith.constant 0 : i32
    return %c0_i32, %c0_i32_0 : i32, i32
  }
  func.func @transform_3(%arg0: i32, %arg1: i32) -> (i32, i32, i32) {
    %c0_i32 = arith.constant 0 : i32
    %c0_i32_0 = arith.constant 0 : i32
    return %arg0, %arg1, %c0_i32 : i32, i32, i32
  }
}

</mosaic_0001>

<llo_original>
// kernel: tpu_custom_call.1
$region0: #{tpu_custom_call.1}
  #allocation0 [shape = 'u32[]', space=smem, size = 0x4, offset = 0x4, fixed_abs, tag = 'smem constant byte address 0x4 - core index']
  #allocation1 [shape = 'u32[144,128]{1,0:T(1,128)}', space=vmem, size = 0x12000, scoped, tag = 'internal scratch']
  %s0 = inlined_call_operand.vmem [shape: f32[2,1026,6], index: 0, kind: input, shape index: {}]
  %s1 = inlined_call_operand.vmem [shape: f32[3,6,32], index: 1, kind: input, shape index: {}]
  %s2 = inlined_call_operand.vmem [shape: f32[1,32], index: 2, kind: input, shape index: {}]
  %s3 = inlined_call_operand.vmem [shape: f32[2,1024,32], index: 3, kind: output, shape index: {}]
  %s4 = sld [smem:[#allocation0]]
  $region45: #{tpu_custom_call.1} parent=0
    _
  %s6 = ssub.s32 1, %s4
  %s7 = scalar_select 0, %s6, %s4
  loop: start=0, step=1, limit=4
  $region2: #{tpu_custom_call.1} parent=0 // loop_pre_header
    _
  $region3: #{tpu_custom_call.1} parent=0 // loop_header
    %s9 = sphi 0, %s13
    %p10 = scmp.ge.s32.totalorder %s9, 4
    %s16 = sphi 0, %s28
    %s17 = sphi 0, %s24
    %s18 = sphi 0, %s16
    %s19 = sphi 0, %s17
    %s20 = sphi 0, %s18
    %s21 = sphi 0, %s19
    %s31 = sphi 0, %s33
    %s34 = sphi 0, %s31
    %s35 = sphi 0, %s34
    %s51 = sphi 0, %s35
    %s55 = sphi 0, %s55
    %s57 = sphi 0, %s55
    %s58 = sphi 0, %s57
    %s72 = sphi 0, %s58
    %s76 = sphi 0, %s76
    %s78 = sphi 0, %s76
    %s79 = sphi 0, %s78
    %s93 = sphi 0, %s79
    %s101 = sphi 0, %s103
    %s104 = sphi 0, %s101
    %s105 = sphi 0, %s104
    %s121 = sphi 0, %s105
  $region4: #{tpu_custom_call.1} parent=0 // loop_header_branch
    %12 = sbr.rel (%p10) target = $region8
  $region5: #{tpu_custom_call.1} parent=0 // loop_body
    %s14 = ssub.s32 %s9, 1
    %s15 = ssub.s32 %s9, 2
    %s22 = sadd.s32 1, %s17
    %p23 = scmp.ge.s32.totalorder %s22, 1
    %s24 = scalar_select %p23, 0, %s22
    %s25 = sadd.s32 1, %s16
    %s26 = scalar_select %p23, %s25, %s16
    %p27 = scmp.ge.s32.totalorder %s26, 2
    %s28 = scalar_select %p27, 0, %s26
    %s29 = ssub.s32 %s16, %s28
    %p30 = scmp.eq.s32.totalorder %s29, 0
    %s32 = sadd.s32 %s31, 1
    %s33 = scalar_select %p30, %s31, %s32
    %p36 = pneg %p30
    %p37 = scmp.eq.s32.totalorder %s9, 1
    %p38 = por %p36, %p37
    %p39 = scmp.ne.s32.totalorder %s31, %s34
    %p40 = scmp.eq.s32.totalorder %s9, 0
    %p41 = por %p39, %p40
    %p42 = scmp.ne.s32.totalorder %s31, %s34
    %p43 = scmp.eq.s32.totalorder %s14, 1
    %p44 = por %p42, %p43
    %p45 = scmp.ne.s32.totalorder %s34, %s35
    %p46 = scmp.eq.s32.totalorder %s14, 0
    %p47 = por %p45, %p46
    %p48 = scmp.ne.s32.totalorder %s34, %s35
    %p49 = scmp.eq.s32.totalorder %s15, 1
    %p50 = por %p48, %p49
    %p52 = scmp.ne.s32.totalorder %s35, %s51
    %p53 = scmp.eq.s32.totalorder %s15, 0
    %p54 = por %p52, %p53
    %s56 = sadd.s32 %s55, 1
    %p59 = scmp.eq.s32.totalorder %s9, 1
    %p60 = scmp.ne.s32.totalorder %s55, %s57
    %p61 = scmp.eq.s32.totalorder %s9, 0
    %p62 = por %p60, %p61
    %p63 = scmp.ne.s32.totalorder %s55, %s57
    %p64 = scmp.eq.s32.totalorder %s14, 1
    %p65 = por %p63, %p64
    %p66 = scmp.ne.s32.totalorder %s57, %s58
    %p67 = scmp.eq.s32.totalorder %s14, 0
    %p68 = por %p66, %p67
    %p69 = scmp.ne.s32.totalorder %s57, %s58
    %p70 = scmp.eq.s32.totalorder %s15, 1
    %p71 = por %p69, %p70
    %p73 = scmp.ne.s32.totalorder %s58, %s72
    %p74 = scmp.eq.s32.totalorder %s15, 0
    %p75 = por %p73, %p74
    %s77 = sadd.s32 %s76, 1
    %p80 = scmp.eq.s32.totalorder %s9, 1
    %p81 = scmp.ne.s32.totalorder %s76, %s78
    %p82 = scmp.eq.s32.totalorder %s9, 0
    %p83 = por %p81, %p82
    %p84 = scmp.ne.s32.totalorder %s76, %s78
    %p85 = scmp.eq.s32.totalorder %s14, 1
    %p86 = por %p84, %p85
    %p87 = scmp.ne.s32.totalorder %s78, %s79
    %p88 = scmp.eq.s32.totalorder %s14, 0
    %p89 = por %p87, %p88
    %p90 = scmp.ne.s32.totalorder %s78, %s79
    %p91 = scmp.eq.s32.totalorder %s15, 1
    %p92 = por %p90, %p91
    %p94 = scmp.ne.s32.totalorder %s79, %s93
    %p95 = scmp.eq.s32.totalorder %s15, 0
    %p96 = por %p94, %p95
    %s97 = ssub.s32 %s16, %s28
    %s98 = ssub.s32 %s17, %s24
    %s99 = sor.u32 %s97, %s98
    %p100 = scmp.eq.s32.totalorder %s99, 0
    %s102 = sadd.s32 %s101, 1
    %s103 = scalar_select %p100, %s101, %s102
    %p106 = pneg %p100
    %p107 = scmp.eq.s32.totalorder %s9, 1
    %p108 = por %p106, %p107
    %p109 = scmp.ne.s32.totalorder %s101, %s104
    %p110 = scmp.eq.s32.totalorder %s9, 0
    %p111 = por %p109, %p110
    %p112 = scmp.ne.s32.totalorder %s101, %s104
    %p113 = scmp.eq.s32.totalorder %s14, 1
    %p114 = por %p112, %p113
    %p115 = scmp.ne.s32.totalorder %s104, %s105
    %p116 = scmp.eq.s32.totalorder %s14, 0
    %p117 = por %p115, %p116
    %p118 = scmp.ne.s32.totalorder %s104, %s105
    %p119 = scmp.eq.s32.totalorder %s15, 1
    %p120 = por %p118, %p119
    %p122 = scmp.ne.s32.totalorder %s105, %s121
    %p123 = scmp.eq.s32.totalorder %s15, 0
    %p124 = por %p122, %p123
    %p125 = scmp.le.s32.totalorder 1, %s9
    %p126 = scmp.lt.s32.totalorder %s9, 3
    %p127 = pnand %p125, %p126
    %p128 = pneg %p127
    // Predicated region
    $region9: #{tpu_custom_call.1} parent=5 // pred_check
      _
    $region10: #{tpu_custom_call.1} parent=5 // pred_check_branch
      %130 = sbr.rel (%p127) target = $region12
    $region11: #{tpu_custom_call.1} parent=5 // pred_region
      %s131 = ssub.s32 %s9, 1
      // Predicated region
      $region13: #{tpu_custom_call.1} parent=11 // pred_check
        %p132 = pneg %p68
      $region14: #{tpu_custom_call.1} parent=11 // pred_check_branch
        %134 = sbr.rel (%p132) target = $region16
      $region15: #{tpu_custom_call.1} parent=11 // pred_region
        _
      $region16: #{tpu_custom_call.1} parent=11 // pred_fallthru
        _
      // Predicated region
      $region17: #{tpu_custom_call.1} parent=11 // pred_check
        %p135 = pneg %p89
      $region18: #{tpu_custom_call.1} parent=11 // pred_check_branch
        %137 = sbr.rel (%p135) target = $region20
      $region19: #{tpu_custom_call.1} parent=11 // pred_region
        _
      $region20: #{tpu_custom_call.1} parent=11 // pred_fallthru
        _
    $region12: #{tpu_custom_call.1} parent=5 // pred_fallthru
      _
    %p138 = scmp.lt.s32.totalorder %s9, 2
    // Predicated region
    $region21: #{tpu_custom_call.1} parent=5 // pred_check
      %p139 = pneg %p138
    $region22: #{tpu_custom_call.1} parent=5 // pred_check_branch
      %141 = sbr.rel (%p139) target = $region24
    $region23: #{tpu_custom_call.1} parent=5 // pred_region
      // Predicated region
      $region25: #{tpu_custom_call.1} parent=23 // pred_check
        %p142 = pneg %p41
      $region26: #{tpu_custom_call.1} parent=23 // pred_check_branch
        %144 = sbr.rel (%p142) target = $region28
      $region27: #{tpu_custom_call.1} parent=23 // pred_region
        %p145 = scmp.lt.s32.totalorder %s16, 1
        %s146 = scalar_select %p145, %s16, 1
        %s147 = smul.addr %s146, 129
        %s148 = smul.addr %s147, 8
        %s149 = scalar_lea.vmem %s0, %s148
      $region28: #{tpu_custom_call.1} parent=23 // pred_fallthru
        _
    $region24: #{tpu_custom_call.1} parent=5 // pred_fallthru
      _
    %p150 = scmp.le.s32.totalorder 1, %s9
    %p151 = scmp.lt.s32.totalorder %s9, 3
    %p152 = pnand %p150, %p151
    %p153 = pneg %p152
    // Predicated region
    $region29: #{tpu_custom_call.1} parent=5 // pred_check
      _
    $region30: #{tpu_custom_call.1} parent=5 // pred_check_branch
      %155 = sbr.rel (%p152) target = $region32
    $region31: #{tpu_custom_call.1} parent=5 // pred_region
      %s156 = ssub.s32 %s9, 1
      %p157 = scmp.lt.s32.totalorder %s18, 1
      %s158 = scalar_select %p157, %s18, 1
      %s159 = smul.addr %s158, 129
      %s160 = smul.addr %s159, 8
      %s161 = scalar_lea.vmem %s0, %s160
      %p162 = pneg %p47
      %p163 = pneg %p44
      %p164 = pneg %p68
      %p165 = pneg %p65
      %p166 = pneg %p89
      %p167 = pneg %p86
      %p168 = pneg %p117
      %p169 = pneg %p114
      %s170 = smul.u32 128, %s19
      %p171 = scmp.lt.s32.totalorder %s18, 1
      %s172 = scalar_select %p171, %s18, 1
      %p173 = scmp.lt.s32.totalorder %s170, 127
      %s174 = scalar_select %p173, %s170, 127
      %s175 = smul.addr %s172, 128
      %s176 = sadd.s32 %s174, %s175
      %s177 = smul.addr %s176, 8
      %s178 = scalar_lea.vmem %s3, %s177
      %p179 = scmp.lt.s32.totalorder %s18, 1
      %s180 = scalar_select %p179, %s18, 1
      %s181 = smul.addr %s180, 129
      %s182 = smul.addr %s181, 8
      %s183 = scalar_lea.vmem %s0, %s182
      %s184 = smul.u32 128, %s19
      %p185 = scmp.lt.s32.totalorder %s18, 1
      %s186 = scalar_select %p185, %s18, 1
      %p187 = scmp.lt.s32.totalorder %s184, 127
      %s188 = scalar_select %p187, %s184, 127
      %s189 = smul.addr %s186, 128
      %s190 = sadd.s32 %s188, %s189
      %s191 = smul.addr %s190, 8
      %s192 = scalar_lea.vmem %s3, %s191
      %s193 = smul.u32 128, %s19
      %v194 = vld [vmem:[%s183] sm:$0xff]
      %v195 = vld [vmem:[%s183 + $0x8] sm:$0xff]
      %v196 = vld [vmem:[%s183 + $0x10] sm:$0xff]
      %v197 = vld [vmem:[%s183 + $0x18] sm:$0xff]
      %v198 = vld [vmem:[%s183 + $0x20] sm:$0xff]
      %v199 = vld [vmem:[%s183 + $0x28] sm:$0xff]
      %v200 = vld [vmem:[%s183 + $0x30] sm:$0xff]
      %v201 = vld [vmem:[%s183 + $0x38] sm:$0xff]
      %v202 = vld [vmem:[%s183 + $0x40] sm:$0xff]
      %v203 = vld [vmem:[%s183 + $0x48] sm:$0xff]
      %v204 = vld [vmem:[%s183 + $0x50] sm:$0xff]
      %v205 = vld [vmem:[%s183 + $0x58] sm:$0xff]
      %v206 = vld [vmem:[%s183 + $0x60] sm:$0xff]
      %v207 = vld [vmem:[%s183 + $0x68] sm:$0xff]
      %v208 = vld [vmem:[%s183 + $0x70] sm:$0xff]
      %v209 = vld [vmem:[%s183 + $0x78] sm:$0xff]
      %v210 = vld [vmem:[%s183 + $0x80] sm:$0xff]
      %v211 = vld [vmem:[%s183 + $0x88] sm:$0xff]
      %v212 = vld [vmem:[%s183 + $0x90] sm:$0xff]
      %v213 = vld [vmem:[%s183 + $0x98] sm:$0xff]
      %v214 = vld [vmem:[%s183 + $0xa0] sm:$0xff]
      %v215 = vld [vmem:[%s183 + $0xa8] sm:$0xff]
      %v216 = vld [vmem:[%s183 + $0xb0] sm:$0xff]
      %v217 = vld [vmem:[%s183 + $0xb8] sm:$0xff]
      %v218 = vld [vmem:[%s183 + $0xc0] sm:$0xff]
      %v219 = vld [vmem:[%s183 + $0xc8] sm:$0xff]
      %v220 = vld [vmem:[%s183 + $0xd0] sm:$0xff]
      %v221 = vld [vmem:[%s183 + $0xd8] sm:$0xff]
      %v222 = vld [vmem:[%s183 + $0xe0] sm:$0xff]
      %v223 = vld [vmem:[%s183 + $0xe8] sm:$0xff]
      %v224 = vld [vmem:[%s183 + $0xf0] sm:$0xff]
      %v225 = vld [vmem:[%s183 + $0xf8] sm:$0xff]
      %v226 = vld [vmem:[%s183 + $0x100] sm:$0xff]
      %v227 = vld [vmem:[%s183 + $0x108] sm:$0xff]
      %v228 = vld [vmem:[%s183 + $0x110] sm:$0xff]
      %v229 = vld [vmem:[%s183 + $0x118] sm:$0xff]
      %v230 = vld [vmem:[%s183 + $0x120] sm:$0xff]
      %v231 = vld [vmem:[%s183 + $0x128] sm:$0xff]
      %v232 = vld [vmem:[%s183 + $0x130] sm:$0xff]
      %v233 = vld [vmem:[%s183 + $0x138] sm:$0xff]
      %v234 = vld [vmem:[%s183 + $0x140] sm:$0xff]
      %v235 = vld [vmem:[%s183 + $0x148] sm:$0xff]
      %v236 = vld [vmem:[%s183 + $0x150] sm:$0xff]
      %v237 = vld [vmem:[%s183 + $0x158] sm:$0xff]
      %v238 = vld [vmem:[%s183 + $0x160] sm:$0xff]
      %v239 = vld [vmem:[%s183 + $0x168] sm:$0xff]
      %v240 = vld [vmem:[%s183 + $0x170] sm:$0xff]
      %v241 = vld [vmem:[%s183 + $0x178] sm:$0xff]
      %v242 = vld [vmem:[%s183 + $0x180] sm:$0xff]
      %v243 = vld [vmem:[%s183 + $0x188] sm:$0xff]
      %v244 = vld [vmem:[%s183 + $0x190] sm:$0xff]
      %v245 = vld [vmem:[%s183 + $0x198] sm:$0xff]
      %v246 = vld [vmem:[%s183 + $0x1a0] sm:$0xff]
      %v247 = vld [vmem:[%s183 + $0x1a8] sm:$0xff]
      %v248 = vld [vmem:[%s183 + $0x1b0] sm:$0xff]
      %v249 = vld [vmem:[%s183 + $0x1b8] sm:$0xff]
      %v250 = vld [vmem:[%s183 + $0x1c0] sm:$0xff]
      %v251 = vld [vmem:[%s183 + $0x1c8] sm:$0xff]
      %v252 = vld [vmem:[%s183 + $0x1d0] sm:$0xff]
      %v253 = vld [vmem:[%s183 + $0x1d8] sm:$0xff]
      %v254 = vld [vmem:[%s183 + $0x1e0] sm:$0xff]
      %v255 = vld [vmem:[%s183 + $0x1e8] sm:$0xff]
      %v256 = vld [vmem:[%s183 + $0x1f0] sm:$0xff]
      %v257 = vld [vmem:[%s183 + $0x1f8] sm:$0xff]
      %v258 = vld [vmem:[%s183 + $0x200] sm:$0xff]
      %v259 = vld [vmem:[%s183 + $0x208] sm:$0xff]
      %v260 = vld [vmem:[%s183 + $0x210] sm:$0xff]
      %v261 = vld [vmem:[%s183 + $0x218] sm:$0xff]
      %v262 = vld [vmem:[%s183 + $0x220] sm:$0xff]
      %v263 = vld [vmem:[%s183 + $0x228] sm:$0xff]
      %v264 = vld [vmem:[%s183 + $0x230] sm:$0xff]
      %v265 = vld [vmem:[%s183 + $0x238] sm:$0xff]
      %v266 = vld [vmem:[%s183 + $0x240] sm:$0xff]
      %v267 = vld [vmem:[%s183 + $0x248] sm:$0xff]
      %v268 = vld [vmem:[%s183 + $0x250] sm:$0xff]
      %v269 = vld [vmem:[%s183 + $0x258] sm:$0xff]
      %v270 = vld [vmem:[%s183 + $0x260] sm:$0xff]
      %v271 = vld [vmem:[%s183 + $0x268] sm:$0xff]
      %v272 = vld [vmem:[%s183 + $0x270] sm:$0xff]
      %v273 = vld [vmem:[%s183 + $0x278] sm:$0xff]
      %v274 = vld [vmem:[%s183 + $0x280] sm:$0xff]
      %v275 = vld [vmem:[%s183 + $0x288] sm:$0xff]
      %v276 = vld [vmem:[%s183 + $0x290] sm:$0xff]
      %v277 = vld [vmem:[%s183 + $0x298] sm:$0xff]
      %v278 = vld [vmem:[%s183 + $0x2a0] sm:$0xff]
      %v279 = vld [vmem:[%s183 + $0x2a8] sm:$0xff]
      %v280 = vld [vmem:[%s183 + $0x2b0] sm:$0xff]
      %v281 = vld [vmem:[%s183 + $0x2b8] sm:$0xff]
      %v282 = vld [vmem:[%s183 + $0x2c0] sm:$0xff]
      %v283 = vld [vmem:[%s183 + $0x2c8] sm:$0xff]
      %v284 = vld [vmem:[%s183 + $0x2d0] sm:$0xff]
      %v285 = vld [vmem:[%s183 + $0x2d8] sm:$0xff]
      %v286 = vld [vmem:[%s183 + $0x2e0] sm:$0xff]
      %v287 = vld [vmem:[%s183 + $0x2e8] sm:$0xff]
      %v288 = vld [vmem:[%s183 + $0x2f0] sm:$0xff]
      %v289 = vld [vmem:[%s183 + $0x2f8] sm:$0xff]
      %v290 = vld [vmem:[%s183 + $0x300] sm:$0xff]
      %v291 = vld [vmem:[%s183 + $0x308] sm:$0xff]
      %v292 = vld [vmem:[%s183 + $0x310] sm:$0xff]
      %v293 = vld [vmem:[%s183 + $0x318] sm:$0xff]
      %v294 = vld [vmem:[%s183 + $0x320] sm:$0xff]
      %v295 = vld [vmem:[%s183 + $0x328] sm:$0xff]
      %v296 = vld [vmem:[%s183 + $0x330] sm:$0xff]
      %v297 = vld [vmem:[%s183 + $0x338] sm:$0xff]
      %v298 = vld [vmem:[%s183 + $0x340] sm:$0xff]
      %v299 = vld [vmem:[%s183 + $0x348] sm:$0xff]
      %v300 = vld [vmem:[%s183 + $0x350] sm:$0xff]
      %v301 = vld [vmem:[%s183 + $0x358] sm:$0xff]
      %v302 = vld [vmem:[%s183 + $0x360] sm:$0xff]
      %v303 = vld [vmem:[%s183 + $0x368] sm:$0xff]
      %v304 = vld [vmem:[%s183 + $0x370] sm:$0xff]
      %v305 = vld [vmem:[%s183 + $0x378] sm:$0xff]
      %v306 = vld [vmem:[%s183 + $0x380] sm:$0xff]
      %v307 = vld [vmem:[%s183 + $0x388] sm:$0xff]
      %v308 = vld [vmem:[%s183 + $0x390] sm:$0xff]
      %v309 = vld [vmem:[%s183 + $0x398] sm:$0xff]
      %v310 = vld [vmem:[%s183 + $0x3a0] sm:$0xff]
      %v311 = vld [vmem:[%s183 + $0x3a8] sm:$0xff]
      %v312 = vld [vmem:[%s183 + $0x3b0] sm:$0xff]
      %v313 = vld [vmem:[%s183 + $0x3b8] sm:$0xff]
      %v314 = vld [vmem:[%s183 + $0x3c0] sm:$0xff]
      %v315 = vld [vmem:[%s183 + $0x3c8] sm:$0xff]
      %v316 = vld [vmem:[%s183 + $0x3d0] sm:$0xff]
      %v317 = vld [vmem:[%s183 + $0x3d8] sm:$0xff]
      %v318 = vld [vmem:[%s183 + $0x3e0] sm:$0xff]
      %v319 = vld [vmem:[%s183 + $0x3e8] sm:$0xff]
      %v320 = vld [vmem:[%s183 + $0x3f0] sm:$0xff]
      %v321 = vld [vmem:[%s183 + $0x3f8] sm:$0xff]
      %v322 = vld [vmem:[%s1] sm:$0x3f]
      %v323 = vld [vmem:[%s183 + $0x1] sm:$0xff]
      %v324 = vld [vmem:[%s183 + $0x9] sm:$0xff]
      %v325 = vld [vmem:[%s183 + $0x11] sm:$0xff]
      %v326 = vld [vmem:[%s183 + $0x19] sm:$0xff]
      %v327 = vld [vmem:[%s183 + $0x21] sm:$0xff]
      %v328 = vld [vmem:[%s183 + $0x29] sm:$0xff]
      %v329 = vld [vmem:[%s183 + $0x31] sm:$0xff]
      %v330 = vld [vmem:[%s183 + $0x39] sm:$0xff]
      %v331 = vld [vmem:[%s183 + $0x41] sm:$0xff]
      %v332 = vld [vmem:[%s183 + $0x49] sm:$0xff]
      %v333 = vld [vmem:[%s183 + $0x51] sm:$0xff]
      %v334 = vld [vmem:[%s183 + $0x59] sm:$0xff]
      %v335 = vld [vmem:[%s183 + $0x61] sm:$0xff]
      %v336 = vld [vmem:[%s183 + $0x69] sm:$0xff]
      %v337 = vld [vmem:[%s183 + $0x71] sm:$0xff]
      %v338 = vld [vmem:[%s183 + $0x79] sm:$0xff]
      %v339 = vld [vmem:[%s183 + $0x81] sm:$0xff]
      %v340 = vld [vmem:[%s183 + $0x89] sm:$0xff]
      %v341 = vld [vmem:[%s183 + $0x91] sm:$0xff]
      %v342 = vld [vmem:[%s183 + $0x99] sm:$0xff]
      %v343 = vld [vmem:[%s183 + $0xa1] sm:$0xff]
      %v344 = vld [vmem:[%s183 + $0xa9] sm:$0xff]
      %v345 = vld [vmem:[%s183 + $0xb1] sm:$0xff]
      %v346 = vld [vmem:[%s183 + $0xb9] sm:$0xff]
      %v347 = vld [vmem:[%s183 + $0xc1] sm:$0xff]
      %v348 = vld [vmem:[%s183 + $0xc9] sm:$0xff]
      %v349 = vld [vmem:[%s183 + $0xd1] sm:$0xff]
      %v350 = vld [vmem:[%s183 + $0xd9] sm:$0xff]
      %v351 = vld [vmem:[%s183 + $0xe1] sm:$0xff]
      %v352 = vld [vmem:[%s183 + $0xe9] sm:$0xff]
      %v353 = vld [vmem:[%s183 + $0xf1] sm:$0xff]
      %v354 = vld [vmem:[%s183 + $0xf9] sm:$0xff]
      %v355 = vld [vmem:[%s183 + $0x101] sm:$0xff]
      %v356 = vld [vmem:[%s183 + $0x109] sm:$0xff]
      %v357 = vld [vmem:[%s183 + $0x111] sm:$0xff]
      %v358 = vld [vmem:[%s183 + $0x119] sm:$0xff]
      %v359 = vld [vmem:[%s183 + $0x121] sm:$0xff]
      %v360 = vld [vmem:[%s183 + $0x129] sm:$0xff]
      %v361 = vld [vmem:[%s183 + $0x131] sm:$0xff]
      %v362 = vld [vmem:[%s183 + $0x139] sm:$0xff]
      %v363 = vld [vmem:[%s183 + $0x141] sm:$0xff]
      %v364 = vld [vmem:[%s183 + $0x149] sm:$0xff]
      %v365 = vld [vmem:[%s183 + $0x151] sm:$0xff]
      %v366 = vld [vmem:[%s183 + $0x159] sm:$0xff]
      %v367 = vld [vmem:[%s183 + $0x161] sm:$0xff]
      %v368 = vld [vmem:[%s183 + $0x169] sm:$0xff]
      %v369 = vld [vmem:[%s183 + $0x171] sm:$0xff]
      %v370 = vld [vmem:[%s183 + $0x179] sm:$0xff]
      %v371 = vld [vmem:[%s183 + $0x181] sm:$0xff]
      %v372 = vld [vmem:[%s183 + $0x189] sm:$0xff]
      %v373 = vld [vmem:[%s183 + $0x191] sm:$0xff]
      %v374 = vld [vmem:[%s183 + $0x199] sm:$0xff]
      %v375 = vld [vmem:[%s183 + $0x1a1] sm:$0xff]
      %v376 = vld [vmem:[%s183 + $0x1a9] sm:$0xff]
      %v377 = vld [vmem:[%s183 + $0x1b1] sm:$0xff]
      %v378 = vld [vmem:[%s183 + $0x1b9] sm:$0xff]
      %v379 = vld [vmem:[%s183 + $0x1c1] sm:$0xff]
      %v380 = vld [vmem:[%s183 + $0x1c9] sm:$0xff]
      %v381 = vld [vmem:[%s183 + $0x1d1] sm:$0xff]
      %v382 = vld [vmem:[%s183 + $0x1d9] sm:$0xff]
      %v383 = vld [vmem:[%s183 + $0x1e1] sm:$0xff]
      %v384 = vld [vmem:[%s183 + $0x1e9] sm:$0xff]
      %v385 = vld [vmem:[%s183 + $0x1f1] sm:$0xff]
      %v386 = vld [vmem:[%s183 + $0x1f9] sm:$0xff]
      %v387 = vld [vmem:[%s183 + $0x201] sm:$0xff]
      %v388 = vld [vmem:[%s183 + $0x209] sm:$0xff]
      %v389 = vld [vmem:[%s183 + $0x211] sm:$0xff]
      %v390 = vld [vmem:[%s183 + $0x219] sm:$0xff]
      %v391 = vld [vmem:[%s183 + $0x221] sm:$0xff]
      %v392 = vld [vmem:[%s183 + $0x229] sm:$0xff]
      %v393 = vld [vmem:[%s183 + $0x231] sm:$0xff]
      %v394 = vld [vmem:[%s183 + $0x239] sm:$0xff]
      %v395 = vld [vmem:[%s183 + $0x241] sm:$0xff]
      %v396 = vld [vmem:[%s183 + $0x249] sm:$0xff]
      %v397 = vld [vmem:[%s183 + $0x251] sm:$0xff]
      %v398 = vld [vmem:[%s183 + $0x259] sm:$0xff]
      %v399 = vld [vmem:[%s183 + $0x261] sm:$0xff]
      %v400 = vld [vmem:[%s183 + $0x269] sm:$0xff]
      %v401 = vld [vmem:[%s183 + $0x271] sm:$0xff]
      %v402 = vld [vmem:[%s183 + $0x279] sm:$0xff]
      %v403 = vld [vmem:[%s183 + $0x281] sm:$0xff]
      %v404 = vld [vmem:[%s183 + $0x289] sm:$0xff]
      %v405 = vld [vmem:[%s183 + $0x291] sm:$0xff]
      %v406 = vld [vmem:[%s183 + $0x299] sm:$0xff]
      %v407 = vld [vmem:[%s183 + $0x2a1] sm:$0xff]
      %v408 = vld [vmem:[%s183 + $0x2a9] sm:$0xff]
      %v409 = vld [vmem:[%s183 + $0x2b1] sm:$0xff]
      %v410 = vld [vmem:[%s183 + $0x2b9] sm:$0xff]
      %v411 = vld [vmem:[%s183 + $0x2c1] sm:$0xff]
      %v412 = vld [vmem:[%s183 + $0x2c9] sm:$0xff]
      %v413 = vld [vmem:[%s183 + $0x2d1] sm:$0xff]
      %v414 = vld [vmem:[%s183 + $0x2d9] sm:$0xff]
      %v415 = vld [vmem:[%s183 + $0x2e1] sm:$0xff]
      %v416 = vld [vmem:[%s183 + $0x2e9] sm:$0xff]
      %v417 = vld [vmem:[%s183 + $0x2f1] sm:$0xff]
      %v418 = vld [vmem:[%s183 + $0x2f9] sm:$0xff]
      %v419 = vld [vmem:[%s183 + $0x301] sm:$0xff]
      %v420 = vld [vmem:[%s183 + $0x309] sm:$0xff]
      %v421 = vld [vmem:[%s183 + $0x311] sm:$0xff]
      %v422 = vld [vmem:[%s183 + $0x319] sm:$0xff]
      %v423 = vld [vmem:[%s183 + $0x321] sm:$0xff]
      %v424 = vld [vmem:[%s183 + $0x329] sm:$0xff]
      %v425 = vld [vmem:[%s183 + $0x331] sm:$0xff]
      %v426 = vld [vmem:[%s183 + $0x339] sm:$0xff]
      %v427 = vld [vmem:[%s183 + $0x341] sm:$0xff]
      %v428 = vld [vmem:[%s183 + $0x349] sm:$0xff]
      %v429 = vld [vmem:[%s183 + $0x351] sm:$0xff]
      %v430 = vld [vmem:[%s183 + $0x359] sm:$0xff]
      %v431 = vld [vmem:[%s183 + $0x361] sm:$0xff]
      %v432 = vld [vmem:[%s183 + $0x369] sm:$0xff]
      %v433 = vld [vmem:[%s183 + $0x371] sm:$0xff]
      %v434 = vld [vmem:[%s183 + $0x379] sm:$0xff]
      %v435 = vld [vmem:[%s183 + $0x381] sm:$0xff]
      %v436 = vld [vmem:[%s183 + $0x389] sm:$0xff]
      %v437 = vld [vmem:[%s183 + $0x391] sm:$0xff]
      %v438 = vld [vmem:[%s183 + $0x399] sm:$0xff]
      %v439 = vld [vmem:[%s183 + $0x3a1] sm:$0xff]
      %v440 = vld [vmem:[%s183 + $0x3a9] sm:$0xff]
      %v441 = vld [vmem:[%s183 + $0x3b1] sm:$0xff]
      %v442 = vld [vmem:[%s183 + $0x3b9] sm:$0xff]
      %v443 = vld [vmem:[%s183 + $0x3c1] sm:$0xff]
      %v444 = vld [vmem:[%s183 + $0x3c9] sm:$0xff]
      %v445 = vld [vmem:[%s183 + $0x3d1] sm:$0xff]
      %v446 = vld [vmem:[%s183 + $0x3d9] sm:$0xff]
      %v447 = vld [vmem:[%s183 + $0x3e1] sm:$0xff]
      %v448 = vld [vmem:[%s183 + $0x3e9] sm:$0xff]
      %v449 = vld [vmem:[%s183 + $0x3f1] sm:$0xff]
      %v450 = vld [vmem:[%s183 + $0x3f9] sm:$0xff]
      %s451 = scalar_lea.vmem %s1, 8
      %v452 = vld [vmem:[%s451] sm:$0x3f]
      %vm453 = vcmask 48128
      %v455 = vsel %vm453, %v323, 0
      %v458 = vsel %vm453, %v324, 0
      %v461 = vsel %vm453, %v325, 0
      %v464 = vsel %vm453, %v326, 0
      %v467 = vsel %vm453, %v327, 0
      %v470 = vsel %vm453, %v328, 0
      %v473 = vsel %vm453, %v329, 0
      %v476 = vsel %vm453, %v330, 0
      %v479 = vsel %vm453, %v331, 0
      %v482 = vsel %vm453, %v332, 0
      %v485 = vsel %vm453, %v333, 0
      %v488 = vsel %vm453, %v334, 0
      %v491 = vsel %vm453, %v335, 0
      %v494 = vsel %vm453, %v336, 0
      %v497 = vsel %vm453, %v337, 0
      %v500 = vsel %vm453, %v338, 0
      %v503 = vsel %vm453, %v339, 0
      %v506 = vsel %vm453, %v340, 0
      %v509 = vsel %vm453, %v341, 0
      %v512 = vsel %vm453, %v342, 0
      %v515 = vsel %vm453, %v343, 0
      %v518 = vsel %vm453, %v344, 0
      %v521 = vsel %vm453, %v345, 0
      %v524 = vsel %vm453, %v346, 0
      %v527 = vsel %vm453, %v347, 0
      %v530 = vsel %vm453, %v348, 0
      %v533 = vsel %vm453, %v349, 0
      %v536 = vsel %vm453, %v350, 0
      %v539 = vsel %vm453, %v351, 0
      %v542 = vsel %vm453, %v352, 0
      %v545 = vsel %vm453, %v353, 0
      %v548 = vsel %vm453, %v354, 0
      %v551 = vsel %vm453, %v355, 0
      %v554 = vsel %vm453, %v356, 0
      %v557 = vsel %vm453, %v357, 0
      %v560 = vsel %vm453, %v358, 0
      %v563 = vsel %vm453, %v359, 0
      %v566 = vsel %vm453, %v360, 0
      %v569 = vsel %vm453, %v361, 0
      %v572 = vsel %vm453, %v362, 0
      %v575 = vsel %vm453, %v363, 0
      %v578 = vsel %vm453, %v364, 0
      %v581 = vsel %vm453, %v365, 0
      %v584 = vsel %vm453, %v366, 0
      %v587 = vsel %vm453, %v367, 0
      %v590 = vsel %vm453, %v368, 0
      %v593 = vsel %vm453, %v369, 0
      %v596 = vsel %vm453, %v370, 0
      %v599 = vsel %vm453, %v371, 0
      %v602 = vsel %vm453, %v372, 0
      %v605 = vsel %vm453, %v373, 0
      %v608 = vsel %vm453, %v374, 0
      %v611 = vsel %vm453, %v375, 0
      %v614 = vsel %vm453, %v376, 0
      %v617 = vsel %vm453, %v377, 0
      %v620 = vsel %vm453, %v378, 0
      %v623 = vsel %vm453, %v379, 0
      %v626 = vsel %vm453, %v380, 0
      %v629 = vsel %vm453, %v381, 0
      %v632 = vsel %vm453, %v382, 0
      %v635 = vsel %vm453, %v383, 0
      %v638 = vsel %vm453, %v384, 0
      %v641 = vsel %vm453, %v385, 0
      %v644 = vsel %vm453, %v386, 0
      %v647 = vsel %vm453, %v387, 0
      %v650 = vsel %vm453, %v388, 0
      %v653 = vsel %vm453, %v389, 0
      %v656 = vsel %vm453, %v390, 0
      %v659 = vsel %vm453, %v391, 0
      %v662 = vsel %vm453, %v392, 0
      %v665 = vsel %vm453, %v393, 0
      %v668 = vsel %vm453, %v394, 0
      %v671 = vsel %vm453, %v395, 0
      %v674 = vsel %vm453, %v396, 0
      %v677 = vsel %vm453, %v397, 0
      %v680 = vsel %vm453, %v398, 0
      %v683 = vsel %vm453, %v399, 0
      %v686 = vsel %vm453, %v400, 0
      %v689 = vsel %vm453, %v401, 0
      %v692 = vsel %vm453, %v402, 0
      %v695 = vsel %vm453, %v403, 0
      %v698 = vsel %vm453, %v404, 0
      %v701 = vsel %vm453, %v405, 0
      %v704 = vsel %vm453, %v406, 0
      %v707 = vsel %vm453, %v407, 0
      %v710 = vsel %vm453, %v408, 0
      %v713 = vsel %vm453, %v409, 0
      %v716 = vsel %vm453, %v410, 0
      %v719 = vsel %vm453, %v411, 0
      %v722 = vsel %vm453, %v412, 0
      %v725 = vsel %vm453, %v413, 0
      %v728 = vsel %vm453, %v414, 0
      %v731 = vsel %vm453, %v415, 0
      %v734 = vsel %vm453, %v416, 0
      %v737 = vsel %vm453, %v417, 0
      %v740 = vsel %vm453, %v418, 0
      %v743 = vsel %vm453, %v419, 0
      %v746 = vsel %vm453, %v420, 0
      %v749 = vsel %vm453, %v421, 0
      %v752 = vsel %vm453, %v422, 0
      %v755 = vsel %vm453, %v423, 0
      %v758 = vsel %vm453, %v424, 0
      %v761 = vsel %vm453, %v425, 0
      %v764 = vsel %vm453, %v426, 0
      %v767 = vsel %vm453, %v427, 0
      %v770 = vsel %vm453, %v428, 0
      %v773 = vsel %vm453, %v429, 0
      %v776 = vsel %vm453, %v430, 0
      %v779 = vsel %vm453, %v431, 0
      %v782 = vsel %vm453, %v432, 0
      %v785 = vsel %vm453, %v433, 0
      %v788 = vsel %vm453, %v434, 0
      %v791 = vsel %vm453, %v435, 0
      %v794 = vsel %vm453, %v436, 0
      %v797 = vsel %vm453, %v437, 0
      %v800 = vsel %vm453, %v438, 0
      %v803 = vsel %vm453, %v439, 0
      %v806 = vsel %vm453, %v440, 0
      %v809 = vsel %vm453, %v441, 0
      %v812 = vsel %vm453, %v442, 0
      %v815 = vsel %vm453, %v443, 0
      %v818 = vsel %vm453, %v444, 0
      %v821 = vsel %vm453, %v445, 0
      %v824 = vsel %vm453, %v446, 0
      %v827 = vsel %vm453, %v447, 0
      %v830 = vsel %vm453, %v448, 0
      %v833 = vsel %vm453, %v449, 0
      %v836 = vsel %vm453, %v450, 0
      %vm838 = vcmask 1045504
      %v840 = vsel %vm838, %v452, 0
      %842 = vmatprep.subr.mxu0 0.0
      %843 = vmatpush1.msra.mxu0 %v840
      %844 = vmatprep.subr.mxu0 0.0
      %845 = vmatpush1.msra.mxu0 0.0
      %846 = vmatprep.subr.mxu0 0.0
      %847 = vmatpush1.msra.mxu0 0.0
      %848 = vmatprep.subr.mxu0 0.0
      %849 = vmatpush1.msra.mxu0 0.0
      %850 = vmatprep.subr.mxu0 0.0
      %851 = vmatpush1.msra.mxu0 0.0
      %852 = vmatprep.subr.mxu0 0.0
      %853 = vmatpush1.msra.mxu0 0.0
      %854 = vmatprep.subr.mxu0 0.0
      %855 = vmatpush1.msra.mxu0 0.0
      %856 = vmatprep.subr.mxu0 0.0
      %857 = vmatpush1.msra.mxu0 0.0
      %858 = vmatprep.subr.mxu0 0.0
      %859 = vmatpush1.msra.mxu0 0.0
      %860 = vmatprep.subr.mxu0 0.0
      %861 = vmatpush1.msra.mxu0 0.0
      %862 = vmatprep.subr.mxu0 0.0
      %863 = vmatpush1.msra.mxu0 0.0
      %864 = vmatprep.subr.mxu0 0.0
      %865 = vmatpush1.msra.mxu0 0.0
      %866 = vmatprep.subr.mxu0 0.0
      %867 = vmatpush1.msra.mxu0 0.0
      %868 = vmatprep.subr.mxu0 0.0
      %869 = vmatpush1.msra.mxu0 0.0
      %870 = vmatprep.subr.mxu0 0.0
      %871 = vmatpush1.msra.mxu0 0.0
      %872 = vmatprep.subr.mxu0 0.0
      %873 = vmatpush1.msra.mxu0 0.0
      %874 = vmatprep.subr.mxu0 0.0
      %875 = vmatpush1.msra.mxu0 0.0
      %876 = vmatprep.subr.mxu0 0.0
      %877 = vmatpush1.msra.mxu0 0.0
      %878 = vmatprep.subr.mxu0 0.0
      %879 = vmatpush1.msra.mxu0 0.0
      %880 = vmatprep.subr.mxu0 0.0
      %881 = vmatpush1.msra.mxu0 0.0
      %882 = vmatprep.subr.mxu0 0.0
      %883 = vmatpush1.msra.mxu0 0.0
      %884 = vmatprep.subr.mxu0 0.0
      %885 = vmatpush1.msra.mxu0 0.0
      %886 = vmatprep.subr.mxu0 0.0
      %887 = vmatpush1.msra.mxu0 0.0
      %888 = vmatprep.subr.mxu0 0.0
      %889 = vmatpush1.msra.mxu0 0.0
      %890 = vmatprep.subr.mxu0 0.0
      %891 = vmatpush1.msra.mxu0 0.0
      %892 = vmatprep.subr.mxu0 0.0
      %893 = vmatpush1.msra.mxu0 0.0
      %894 = vmatprep.subr.mxu0 0.0
      %895 = vmatpush1.msra.mxu0 0.0
      %896 = vmatprep.subr.mxu0 0.0
      %897 = vmatpush1.msra.mxu0 0.0
      %898 = vmatprep.subr.mxu0 0.0
      %899 = vmatpush1.msra.mxu0 0.0
      %900 = vmatprep.subr.mxu0 0.0
      %901 = vmatpush1.msra.mxu0 0.0
      %902 = vmatprep.subr.mxu0 0.0
      %903 = vmatpush1.msra.mxu0 0.0
      %904 = vmatprep.subr.mxu0 0.0
      %905 = vmatpush1.msra.mxu0 0.0
      %906 = vmatprep.mubr.f32.mxu0 0.0
      %907 = vmatmul.mubr.f32.gmra.mrb[0].mxu0 %v455
      %v908 = vpop.f32.mrb[0].mxu0
      %v909 = vadd.f32 0.0, %v908
      %v910 = vpop.f32.mrb[0].mxu0
      %911 = vmatprep.mubr.f32.mxu0 0.0
      %912 = vmatmul.mubr.f32.gmra.mrb[0].mxu0 %v458
      %v913 = vpop.f32.mrb[0].mxu0
      %v914 = vadd.f32 0.0, %v913
      %v915 = vpop.f32.mrb[0].mxu0
      %916 = vmatprep.mubr.f32.mxu0 0.0
      %917 = vmatmul.mubr.f32.gmra.mrb[0].mxu0 %v461
      %v918 = vpop.f32.mrb[0].mxu0
      %v919 = vadd.f32 0.0, %v918
      %v920 = vpop.f32.mrb[0].mxu0
      %921 = vmatprep.mubr.f32.mxu0 0.0
      %922 = vmatmul.mubr.f32.gmra.mrb[0].mxu0 %v464
      %v923 = vpop.f32.mrb[0].mxu0
      %v924 = vadd.f32 0.0, %v923
      %v925 = vpop.f32.mrb[0].mxu0
      %926 = vmatprep.mubr.f32.mxu0 0.0
      %927 = vmatmul.mubr.f32.gmra.mrb[0].mxu0 %v467
      %v928 = vpop.f32.mrb[0].mxu0
      %v929 = vadd.f32 0.0, %v928
      %v930 = vpop.f32.mrb[0].mxu0
      %931 = vmatprep.mubr.f32.mxu0 0.0
      %932 = vmatmul.mubr.f32.gmra.mrb[0].mxu0 %v470
      %v933 = vpop.f32.mrb[0].mxu0
      %v934 = vadd.f32 0.0, %v933
      %v935 = vpop.f32.mrb[0].mxu0
      %936 = vmatprep.mubr.f32.mxu0 0.0
      %937 = vmatmul.mubr.f32.gmra.mrb[0].mxu0 %v473
      %v938 = vpop.f32.mrb[0].mxu0
      %v939 = vadd.f32 0.0, %v938
      %v940 = vpop.f32.mrb[0].mxu0
      %941 = vmatprep.mubr.f32.mxu0 0.0
      %942 = vmatmul.mubr.f32.gmra.mrb[0].mxu0 %v476
      %v943 = vpop.f32.mrb[0].mxu0
      %v944 = vadd.f32 0.0, %v943
      %v945 = vpop.f32.mrb[0].mxu0
      %946 = vmatprep.mubr.f32.mxu0 0.0
      %947 = vmatmul.mubr.f32.gmra.mrb[0].mxu0 %v479
      %v948 = vpop.f32.mrb[0].mxu0
      %v949 = vadd.f32 0.0, %v948
      %v950 = vpop.f32.mrb[0].mxu0
      %951 = vmatprep.mubr.f32.mxu0 0.0
      %952 = vmatmul.mubr.f32.gmra.mrb[0].mxu0 %v482
      %v953 = vpop.f32.mrb[0].mxu0
      %v954 = vadd.f32 0.0, %v953
      %v955 = vpop.f32.mrb[0].mxu0
      %956 = vmatprep.mubr.f32.mxu0 0.0
      %957 = vmatmul.mubr.f32.gmra.mrb[0].mxu0 %v485
      %v958 = vpop.f32.mrb[0].mxu0
      %v959 = vadd.f32 0.0, %v958
      %v960 = vpop.f32.mrb[0].mxu0
      %961 = vmatprep.mubr.f32.mxu0 0.0
      %962 = vmatmul.mubr.f32.gmra.mrb[0].mxu0 %v488
      %v963 = vpop.f32.mrb[0].mxu0
      %v964 = vadd.f32 0.0, %v963
      %v965 = vpop.f32.mrb[0].mxu0
      %966 = vmatprep.mubr.f32.mxu0 0.0
      %967 = vmatmul.mubr.f32.gmra.mrb[0].mxu0 %v491
      %v968 = vpop.f32.mrb[0].mxu0
      %v969 = vadd.f32 0.0, %v968
      %v970 = vpop.f32.mrb[0].mxu0
      %971 = vmatprep.mubr.f32.mxu0 0.0
      %972 = vmatmul.mubr.f32.gmra.mrb[0].mxu0 %v494
      %v973 = vpop.f32.mrb[0].mxu0
      %v974 = vadd.f32 0.0, %v973
      %v975 = vpop.f32.mrb[0].mxu0
      %976 = vmatprep.mubr.f32.mxu0 0.0
      %977 = vmatmul.mubr.f32.gmra.mrb[0].mxu0 %v497
      %v978 = vpop.f32.mrb[0].mxu0
      %v979 = vadd.f32 0.0, %v978
      %v980 = vpop.f32.mrb[0].mxu0
      %981 = vmatprep.mubr.f32.mxu0 0.0
      %982 = vmatmul.mubr.f32.gmra.mrb[0].mxu0 %v500
      %v983 = vpop.f32.mrb[0].mxu0
      %v984 = vadd.f32 0.0, %v983
      %v985 = vpop.f32.mrb[0].mxu0
      %986 = vmatprep.mubr.f32.mxu0 0.0
      %987 = vmatmul.mubr.f32.gmra.mrb[0].mxu0 %v503
      %v988 = vpop.f32.mrb[0].mxu0
      %v989 = vadd.f32 0.0, %v988
      %v990 = vpop.f32.mrb[0].mxu0
      %991 = vmatprep.mubr.f32.mxu0 0.0
      %992 = vmatmul.mubr.f32.gmra.mrb[0].mxu0 %v506
      %v993 = vpop.f32.mrb[0].mxu0
      %v994 = vadd.f32 0.0, %v993
      %v995 = vpop.f32.mrb[0].mxu0
      %996 = vmatprep.mubr.f32.mxu0 0.0
      %997 = vmatmul.mubr.f32.gmra.mrb[0].mxu0 %v509
      %v998 = vpop.f32.mrb[0].mxu0
      %v999 = vadd.f32 0.0, %v998
      %v1000 = vpop.f32.mrb[0].mxu0
      %1001 = vmatprep.mubr.f32.mxu0 0.0
      %1002 = vmatmul.mubr.f32.gmra.mrb[0].mxu0 %v512
      %v1003 = vpop.f32.mrb[0].mxu0
      %v1004 = vadd.f32 0.0, %v1003
      %v1005 = vpop.f32.mrb[0].mxu0
      %1006 = vmatprep.mubr.f32.mxu0 0.0
      %1007 = vmatmul.mubr.f32.gmra.mrb[0].mxu0 %v515
      %v1008 = vpop.f32.mrb[0].mxu0
      %v1009 = vadd.f32 0.0, %v1008
      %v1010 = vpop.f32.mrb[0].mxu0
      %1011 = vmatprep.mubr.f32.mxu0 0.0
      %1012 = vmatmul.mubr.f32.gmra.mrb[0].mxu0 %v518
      %v1013 = vpop.f32.mrb[0].mxu0
      %v1014 = vadd.f32 0.0, %v1013
      %v1015 = vpop.f32.mrb[0].mxu0
      %1016 = vmatprep.mubr.f32.mxu0 0.0
      %1017 = vmatmul.mubr.f32.gmra.mrb[0].mxu0 %v521
      %v1018 = vpop.f32.mrb[0].mxu0
      %v1019 = vadd.f32 0.0, %v1018
      %v1020 = vpop.f32.mrb[0].mxu0
      %1021 = vmatprep.mubr.f32.mxu0 0.0
      %1022 = vmatmul.mubr.f32.gmra.mrb[0].mxu0 %v524
      %v1023 = vpop.f32.mrb[0].mxu0
      %v1024 = vadd.f32 0.0, %v1023
      %v1025 = vpop.f32.mrb[0].mxu0
      %1026 = vmatprep.mubr.f32.mxu0 0.0
      %1027 = vmatmul.mubr.f32.gmra.mrb[0].mxu0 %v527
      %v1028 = vpop.f32.mrb[0].mxu0
      %v1029 = vadd.f32 0.0, %v1028
      %v1030 = vpop.f32.mrb[0].mxu0
      %1031 = vmatprep.mubr.f32.mxu0 0.0
      %1032 = vmatmul.mubr.f32.gmra.mrb[0].mxu0 %v530
      %v1033 = vpop.f32.mrb[0].mxu0
      %v1034 = vadd.f32 0.0, %v1033
      %v1035 = vpop.f32.mrb[0].mxu0
      %1036 = vmatprep.mubr.f32.mxu0 0.0
      %1037 = vmatmul.mubr.f32.gmra.mrb[0].mxu0 %v533
      %v1038 = vpop.f32.mrb[0].mxu0
      %v1039 = vadd.f32 0.0, %v1038
      %v1040 = vpop.f32.mrb[0].mxu0
      %1041 = vmatprep.mubr.f32.mxu0 0.0
      %1042 = vmatmul.mubr.f32.gmra.mrb[0].mxu0 %v536
      %v1043 = vpop.f32.mrb[0].mxu0
      %v1044 = vadd.f32 0.0, %v1043
      %v1045 = vpop.f32.mrb[0].mxu0
      %1046 = vmatprep.mubr.f32.mxu0 0.0
      %1047 = vmatmul.mubr.f32.gmra.mrb[0].mxu0 %v539
      %v1048 = vpop.f32.mrb[0].mxu0
      %v1049 = vadd.f32 0.0, %v1048
      %v1050 = vpop.f32.mrb[0].mxu0
      %1051 = vmatprep.mubr.f32.mxu0 0.0
      %1052 = vmatmul.mubr.f32.gmra.mrb[0].mxu0 %v542
      %v1053 = vpop.f32.mrb[0].mxu0
      %v1054 = vadd.f32 0.0, %v1053
      %v1055 = vpop.f32.mrb[0].mxu0
      %1056 = vmatprep.mubr.f32.mxu0 0.0
      %1057 = vmatmul.mubr.f32.gmra.mrb[0].mxu0 %v545
      %v1058 = vpop.f32.mrb[0].mxu0
      %v1059 = vadd.f32 0.0, %v1058
      %v1060 = vpop.f32.mrb[0].mxu0
      %1061 = vmatprep.mubr.f32.mxu0 0.0
      %1062 = vmatmul.mubr.f32.gmra.mrb[0].mxu0 %v548
      %v1063 = vpop.f32.mrb[0].mxu0
      %v1064 = vadd.f32 0.0, %v1063
      %v1065 = vpop.f32.mrb[0].mxu0
      %1066 = vmatprep.mubr.f32.mxu0 0.0
      %1067 = vmatmul.mubr.f32.gmra.mrb[0].mxu0 %v551
      %v1068 = vpop.f32.mrb[0].mxu0
      %v1069 = vadd.f32 0.0, %v1068
      %v1070 = vpop.f32.mrb[0].mxu0
      %1071 = vmatprep.mubr.f32.mxu0 0.0
      %1072 = vmatmul.mubr.f32.gmra.mrb[0].mxu0 %v554
      %v1073 = vpop.f32.mrb[0].mxu0
      %v1074 = vadd.f32 0.0, %v1073
      %v1075 = vpop.f32.mrb[0].mxu0
      %1076 = vmatprep.mubr.f32.mxu0 0.0
      %1077 = vmatmul.mubr.f32.gmra.mrb[0].mxu0 %v557
      %v1078 = vpop.f32.mrb[0].mxu0
      %v1079 = vadd.f32 0.0, %v1078
      %v1080 = vpop.f32.mrb[0].mxu0
      %1081 = vmatprep.mubr.f32.mxu0 0.0
      %1082 = vmatmul.mubr.f32.gmra.mrb[0].mxu0 %v560
      %v1083 = vpop.f32.mrb[0].mxu0
      %v1084 = vadd.f32 0.0, %v1083
      %v1085 = vpop.f32.mrb[0].mxu0
      %1086 = vmatprep.mubr.f32.mxu0 0.0
      %1087 = vmatmul.mubr.f32.gmra.mrb[0].mxu0 %v563
      %v1088 = vpop.f32.mrb[0].mxu0
      %v1089 = vadd.f32 0.0, %v1088
      %v1090 = vpop.f32.mrb[0].mxu0
      %1091 = vmatprep.mubr.f32.mxu0 0.0
      %1092 = vmatmul.mubr.f32.gmra.mrb[0].mxu0 %v566
      %v1093 = vpop.f32.mrb[0].mxu0
      %v1094 = vadd.f32 0.0, %v1093
      %v1095 = vpop.f32.mrb[0].mxu0
      %1096 = vmatprep.mubr.f32.mxu0 0.0
      %1097 = vmatmul.mubr.f32.gmra.mrb[0].mxu0 %v569
      %v1098 = vpop.f32.mrb[0].mxu0
      %v1099 = vadd.f32 0.0, %v1098
      %v1100 = vpop.f32.mrb[0].mxu0
      %1101 = vmatprep.mubr.f32.mxu0 0.0
      %1102 = vmatmul.mubr.f32.gmra.mrb[0].mxu0 %v572
      %v1103 = vpop.f32.mrb[0].mxu0
      %v1104 = vadd.f32 0.0, %v1103
      %v1105 = vpop.f32.mrb[0].mxu0
      %1106 = vmatprep.mubr.f32.mxu0 0.0
      %1107 = vmatmul.mubr.f32.gmra.mrb[0].mxu0 %v575
      %v1108 = vpop.f32.mrb[0].mxu0
      %v1109 = vadd.f32 0.0, %v1108
      %v1110 = vpop.f32.mrb[0].mxu0
      %1111 = vmatprep.mubr.f32.mxu0 0.0
      %1112 = vmatmul.mubr.f32.gmra.mrb[0].mxu0 %v578
      %v1113 = vpop.f32.mrb[0].mxu0
      %v1114 = vadd.f32 0.0, %v1113
      %v1115 = vpop.f32.mrb[0].mxu0
      %1116 = vmatprep.mubr.f32.mxu0 0.0
      %1117 = vmatmul.mubr.f32.gmra.mrb[0].mxu0 %v581
      %v1118 = vpop.f32.mrb[0].mxu0
      %v1119 = vadd.f32 0.0, %v1118
      %v1120 = vpop.f32.mrb[0].mxu0
      %1121 = vmatprep.mubr.f32.mxu0 0.0
      %1122 = vmatmul.mubr.f32.gmra.mrb[0].mxu0 %v584
      %v1123 = vpop.f32.mrb[0].mxu0
      %v1124 = vadd.f32 0.0, %v1123
      %v1125 = vpop.f32.mrb[0].mxu0
      %1126 = vmatprep.mubr.f32.mxu0 0.0
      %1127 = vmatmul.mubr.f32.gmra.mrb[0].mxu0 %v587
      %v1128 = vpop.f32.mrb[0].mxu0
      %v1129 = vadd.f32 0.0, %v1128
      %v1130 = vpop.f32.mrb[0].mxu0
      %1131 = vmatprep.mubr.f32.mxu0 0.0
      %1132 = vmatmul.mubr.f32.gmra.mrb[0].mxu0 %v590
      %v1133 = vpop.f32.mrb[0].mxu0
      %v1134 = vadd.f32 0.0, %v1133
      %v1135 = vpop.f32.mrb[0].mxu0
      %1136 = vmatprep.mubr.f32.mxu0 0.0
      %1137 = vmatmul.mubr.f32.gmra.mrb[0].mxu0 %v593
      %v1138 = vpop.f32.mrb[0].mxu0
      %v1139 = vadd.f32 0.0, %v1138
      %v1140 = vpop.f32.mrb[0].mxu0
      %1141 = vmatprep.mubr.f32.mxu0 0.0
      %1142 = vmatmul.mubr.f32.gmra.mrb[0].mxu0 %v596
      %v1143 = vpop.f32.mrb[0].mxu0
      %v1144 = vadd.f32 0.0, %v1143
      %v1145 = vpop.f32.mrb[0].mxu0
      %1146 = vmatprep.mubr.f32.mxu0 0.0
      %1147 = vmatmul.mubr.f32.gmra.mrb[0].mxu0 %v599
      %v1148 = vpop.f32.mrb[0].mxu0
      %v1149 = vadd.f32 0.0, %v1148
      %v1150 = vpop.f32.mrb[0].mxu0
      %1151 = vmatprep.mubr.f32.mxu0 0.0
      %1152 = vmatmul.mubr.f32.gmra.mrb[0].mxu0 %v602
      %v1153 = vpop.f32.mrb[0].mxu0
      %v1154 = vadd.f32 0.0, %v1153
      %v1155 = vpop.f32.mrb[0].mxu0
      %1156 = vmatprep.mubr.f32.mxu0 0.0
      %1157 = vmatmul.mubr.f32.gmra.mrb[0].mxu0 %v605
      %v1158 = vpop.f32.mrb[0].mxu0
      %v1159 = vadd.f32 0.0, %v1158
      %v1160 = vpop.f32.mrb[0].mxu0
      %1161 = vmatprep.mubr.f32.mxu0 0.0
      %1162 = vmatmul.mubr.f32.gmra.mrb[0].mxu0 %v608
      %v1163 = vpop.f32.mrb[0].mxu0
      %v1164 = vadd.f32 0.0, %v1163
      %v1165 = vpop.f32.mrb[0].mxu0
      %1166 = vmatprep.mubr.f32.mxu0 0.0
      %1167 = vmatmul.mubr.f32.gmra.mrb[0].mxu0 %v611
      %v1168 = vpop.f32.mrb[0].mxu0
      %v1169 = vadd.f32 0.0, %v1168
      %v1170 = vpop.f32.mrb[0].mxu0
      %1171 = vmatprep.mubr.f32.mxu0 0.0
      %1172 = vmatmul.mubr.f32.gmra.mrb[0].mxu0 %v614
      %v1173 = vpop.f32.mrb[0].mxu0
      %v1174 = vadd.f32 0.0, %v1173
      %v1175 = vpop.f32.mrb[0].mxu0
      %1176 = vmatprep.mubr.f32.mxu0 0.0
      %1177 = vmatmul.mubr.f32.gmra.mrb[0].mxu0 %v617
      %v1178 = vpop.f32.mrb[0].mxu0
      %v1179 = vadd.f32 0.0, %v1178
      %v1180 = vpop.f32.mrb[0].mxu0
      %1181 = vmatprep.mubr.f32.mxu0 0.0
      %1182 = vmatmul.mubr.f32.gmra.mrb[0].mxu0 %v620
      %v1183 = vpop.f32.mrb[0].mxu0
      %v1184 = vadd.f32 0.0, %v1183
      %v1185 = vpop.f32.mrb[0].mxu0
      %1186 = vmatprep.mubr.f32.mxu0 0.0
      %1187 = vmatmul.mubr.f32.gmra.mrb[0].mxu0 %v623
      %v1188 = vpop.f32.mrb[0].mxu0
      %v1189 = vadd.f32 0.0, %v1188
      %v1190 = vpop.f32.mrb[0].mxu0
      %1191 = vmatprep.mubr.f32.mxu0 0.0
      %1192 = vmatmul.mubr.f32.gmra.mrb[0].mxu0 %v626
      %v1193 = vpop.f32.mrb[0].mxu0
      %v1194 = vadd.f32 0.0, %v1193
      %v1195 = vpop.f32.mrb[0].mxu0
      %1196 = vmatprep.mubr.f32.mxu0 0.0
      %1197 = vmatmul.mubr.f32.gmra.mrb[0].mxu0 %v629
      %v1198 = vpop.f32.mrb[0].mxu0
      %v1199 = vadd.f32 0.0, %v1198
      %v1200 = vpop.f32.mrb[0].mxu0
      %1201 = vmatprep.mubr.f32.mxu0 0.0
      %1202 = vmatmul.mubr.f32.gmra.mrb[0].mxu0 %v632
      %v1203 = vpop.f32.mrb[0].mxu0
      %v1204 = vadd.f32 0.0, %v1203
      %v1205 = vpop.f32.mrb[0].mxu0
      %1206 = vmatprep.mubr.f32.mxu0 0.0
      %1207 = vmatmul.mubr.f32.gmra.mrb[0].mxu0 %v635
      %v1208 = vpop.f32.mrb[0].mxu0
      %v1209 = vadd.f32 0.0, %v1208
      %v1210 = vpop.f32.mrb[0].mxu0
      %1211 = vmatprep.mubr.f32.mxu0 0.0
      %1212 = vmatmul.mubr.f32.gmra.mrb[0].mxu0 %v638
      %v1213 = vpop.f32.mrb[0].mxu0
      %v1214 = vadd.f32 0.0, %v1213
      %v1215 = vpop.f32.mrb[0].mxu0
      %1216 = vmatprep.mubr.f32.mxu0 0.0
      %1217 = vmatmul.mubr.f32.gmra.mrb[0].mxu0 %v641
      %v1218 = vpop.f32.mrb[0].mxu0
      %v1219 = vadd.f32 0.0, %v1218
      %v1220 = vpop.f32.mrb[0].mxu0
      %1221 = vmatprep.mubr.f32.mxu0 0.0
      %1222 = vmatmul.mubr.f32.gmra.mrb[0].mxu0 %v644
      %v1223 = vpop.f32.mrb[0].mxu0
      %v1224 = vadd.f32 0.0, %v1223
      %v1225 = vpop.f32.mrb[0].mxu0
      %1226 = vmatprep.mubr.f32.mxu0 0.0
      %1227 = vmatmul.mubr.f32.gmra.mrb[0].mxu0 %v647
      %v1228 = vpop.f32.mrb[0].mxu0
      %v1229 = vadd.f32 0.0, %v1228
      %v1230 = vpop.f32.mrb[0].mxu0
      %1231 = vmatprep.mubr.f32.mxu0 0.0
      %1232 = vmatmul.mubr.f32.gmra.mrb[0].mxu0 %v650
      %v1233 = vpop.f32.mrb[0].mxu0
      %v1234 = vadd.f32 0.0, %v1233
      %v1235 = vpop.f32.mrb[0].mxu0
      %1236 = vmatprep.mubr.f32.mxu0 0.0
      %1237 = vmatmul.mubr.f32.gmra.mrb[0].mxu0 %v653
      %v1238 = vpop.f32.mrb[0].mxu0
      %v1239 = vadd.f32 0.0, %v1238
      %v1240 = vpop.f32.mrb[0].mxu0
      %1241 = vmatprep.mubr.f32.mxu0 0.0
      %1242 = vmatmul.mubr.f32.gmra.mrb[0].mxu0 %v656
      %v1243 = vpop.f32.mrb[0].mxu0
      %v1244 = vadd.f32 0.0, %v1243
      %v1245 = vpop.f32.mrb[0].mxu0
      %1246 = vmatprep.mubr.f32.mxu0 0.0
      %1247 = vmatmul.mubr.f32.gmra.mrb[0].mxu0 %v659
      %v1248 = vpop.f32.mrb[0].mxu0
      %v1249 = vadd.f32 0.0, %v1248
      %v1250 = vpop.f32.mrb[0].mxu0
      %1251 = vmatprep.mubr.f32.mxu0 0.0
      %1252 = vmatmul.mubr.f32.gmra.mrb[0].mxu0 %v662
      %v1253 = vpop.f32.mrb[0].mxu0
      %v1254 = vadd.f32 0.0, %v1253
      %v1255 = vpop.f32.mrb[0].mxu0
      %1256 = vmatprep.mubr.f32.mxu0 0.0
      %1257 = vmatmul.mubr.f32.gmra.mrb[0].mxu0 %v665
      %v1258 = vpop.f32.mrb[0].mxu0
      %v1259 = vadd.f32 0.0, %v1258
      %v1260 = vpop.f32.mrb[0].mxu0
      %1261 = vmatprep.mubr.f32.mxu0 0.0
      %1262 = vmatmul.mubr.f32.gmra.mrb[0].mxu0 %v668
      %v1263 = vpop.f32.mrb[0].mxu0
      %v1264 = vadd.f32 0.0, %v1263
      %v1265 = vpop.f32.mrb[0].mxu0
      %1266 = vmatprep.mubr.f32.mxu0 0.0
      %1267 = vmatmul.mubr.f32.gmra.mrb[0].mxu0 %v671
      %v1268 = vpop.f32.mrb[0].mxu0
      %v1269 = vadd.f32 0.0, %v1268
      %v1270 = vpop.f32.mrb[0].mxu0
      %1271 = vmatprep.mubr.f32.mxu0 0.0
      %1272 = vmatmul.mubr.f32.gmra.mrb[0].mxu0 %v674
      %v1273 = vpop.f32.mrb[0].mxu0
      %v1274 = vadd.f32 0.0, %v1273
      %v1275 = vpop.f32.mrb[0].mxu0
      %1276 = vmatprep.mubr.f32.mxu0 0.0
      %1277 = vmatmul.mubr.f32.gmra.mrb[0].mxu0 %v677
      %v1278 = vpop.f32.mrb[0].mxu0
      %v1279 = vadd.f32 0.0, %v1278
      %v1280 = vpop.f32.mrb[0].mxu0
      %1281 = vmatprep.mubr.f32.mxu0 0.0
      %1282 = vmatmul.mubr.f32.gmra.mrb[0].mxu0 %v680
      %v1283 = vpop.f32.mrb[0].mxu0
      %v1284 = vadd.f32 0.0, %v1283
      %v1285 = vpop.f32.mrb[0].mxu0
      %1286 = vmatprep.mubr.f32.mxu0 0.0
      %1287 = vmatmul.mubr.f32.gmra.mrb[0].mxu0 %v683
      %v1288 = vpop.f32.mrb[0].mxu0
      %v1289 = vadd.f32 0.0, %v1288
      %v1290 = vpop.f32.mrb[0].mxu0
      %1291 = vmatprep.mubr.f32.mxu0 0.0
      %1292 = vmatmul.mubr.f32.gmra.mrb[0].mxu0 %v686
      %v1293 = vpop.f32.mrb[0].mxu0
      %v1294 = vadd.f32 0.0, %v1293
      %v1295 = vpop.f32.mrb[0].mxu0
      %1296 = vmatprep.mubr.f32.mxu0 0.0
      %1297 = vmatmul.mubr.f32.gmra.mrb[0].mxu0 %v689
      %v1298 = vpop.f32.mrb[0].mxu0
      %v1299 = vadd.f32 0.0, %v1298
      %v1300 = vpop.f32.mrb[0].mxu0
      %1301 = vmatprep.mubr.f32.mxu0 0.0
      %1302 = vmatmul.mubr.f32.gmra.mrb[0].mxu0 %v692
      %v1303 = vpop.f32.mrb[0].mxu0
      %v1304 = vadd.f32 0.0, %v1303
      %v1305 = vpop.f32.mrb[0].mxu0
      %1306 = vmatprep.mubr.f32.mxu0 0.0
      %1307 = vmatmul.mubr.f32.gmra.mrb[0].mxu0 %v695
      %v1308 = vpop.f32.mrb[0].mxu0
      %v1309 = vadd.f32 0.0, %v1308
      %v1310 = vpop.f32.mrb[0].mxu0
      %1311 = vmatprep.mubr.f32.mxu0 0.0
      %1312 = vmatmul.mubr.f32.gmra.mrb[0].mxu0 %v698
      %v1313 = vpop.f32.mrb[0].mxu0
      %v1314 = vadd.f32 0.0, %v1313
      %v1315 = vpop.f32.mrb[0].mxu0
      %1316 = vmatprep.mubr.f32.mxu0 0.0
      %1317 = vmatmul.mubr.f32.gmra.mrb[0].mxu0 %v701
      %v1318 = vpop.f32.mrb[0].mxu0
      %v1319 = vadd.f32 0.0, %v1318
      %v1320 = vpop.f32.mrb[0].mxu0
      %1321 = vmatprep.mubr.f32.mxu0 0.0
      %1322 = vmatmul.mubr.f32.gmra.mrb[0].mxu0 %v704
      %v1323 = vpop.f32.mrb[0].mxu0
      %v1324 = vadd.f32 0.0, %v1323
      %v1325 = vpop.f32.mrb[0].mxu0
      %1326 = vmatprep.mubr.f32.mxu0 0.0
      %1327 = vmatmul.mubr.f32.gmra.mrb[0].mxu0 %v707
      %v1328 = vpop.f32.mrb[0].mxu0
      %v1329 = vadd.f32 0.0, %v1328
      %v1330 = vpop.f32.mrb[0].mxu0
      %1331 = vmatprep.mubr.f32.mxu0 0.0
      %1332 = vmatmul.mubr.f32.gmra.mrb[0].mxu0 %v710
      %v1333 = vpop.f32.mrb[0].mxu0
      %v1334 = vadd.f32 0.0, %v1333
      %v1335 = vpop.f32.mrb[0].mxu0
      %1336 = vmatprep.mubr.f32.mxu0 0.0
      %1337 = vmatmul.mubr.f32.gmra.mrb[0].mxu0 %v713
      %v1338 = vpop.f32.mrb[0].mxu0
      %v1339 = vadd.f32 0.0, %v1338
      %v1340 = vpop.f32.mrb[0].mxu0
      %1341 = vmatprep.mubr.f32.mxu0 0.0
      %1342 = vmatmul.mubr.f32.gmra.mrb[0].mxu0 %v716
      %v1343 = vpop.f32.mrb[0].mxu0
      %v1344 = vadd.f32 0.0, %v1343
      %v1345 = vpop.f32.mrb[0].mxu0
      %1346 = vmatprep.mubr.f32.mxu0 0.0
      %1347 = vmatmul.mubr.f32.gmra.mrb[0].mxu0 %v719
      %v1348 = vpop.f32.mrb[0].mxu0
      %v1349 = vadd.f32 0.0, %v1348
      %v1350 = vpop.f32.mrb[0].mxu0
      %1351 = vmatprep.mubr.f32.mxu0 0.0
      %1352 = vmatmul.mubr.f32.gmra.mrb[0].mxu0 %v722
      %v1353 = vpop.f32.mrb[0].mxu0
      %v1354 = vadd.f32 0.0, %v1353
      %v1355 = vpop.f32.mrb[0].mxu0
      %1356 = vmatprep.mubr.f32.mxu0 0.0
      %1357 = vmatmul.mubr.f32.gmra.mrb[0].mxu0 %v725
      %v1358 = vpop.f32.mrb[0].mxu0
      %v1359 = vadd.f32 0.0, %v1358
      %v1360 = vpop.f32.mrb[0].mxu0
      %1361 = vmatprep.mubr.f32.mxu0 0.0
      %1362 = vmatmul.mubr.f32.gmra.mrb[0].mxu0 %v728
      %v1363 = vpop.f32.mrb[0].mxu0
      %v1364 = vadd.f32 0.0, %v1363
      %v1365 = vpop.f32.mrb[0].mxu0
      %1366 = vmatprep.mubr.f32.mxu0 0.0
      %1367 = vmatmul.mubr.f32.gmra.mrb[0].mxu0 %v731
      %v1368 = vpop.f32.mrb[0].mxu0
      %v1369 = vadd.f32 0.0, %v1368
      %v1370 = vpop.f32.mrb[0].mxu0
      %1371 = vmatprep.mubr.f32.mxu0 0.0
      %1372 = vmatmul.mubr.f32.gmra.mrb[0].mxu0 %v734
      %v1373 = vpop.f32.mrb[0].mxu0
      %v1374 = vadd.f32 0.0, %v1373
      %v1375 = vpop.f32.mrb[0].mxu0
      %1376 = vmatprep.mubr.f32.mxu0 0.0
      %1377 = vmatmul.mubr.f32.gmra.mrb[0].mxu0 %v737
      %v1378 = vpop.f32.mrb[0].mxu0
      %v1379 = vadd.f32 0.0, %v1378
      %v1380 = vpop.f32.mrb[0].mxu0
      %1381 = vmatprep.mubr.f32.mxu0 0.0
      %1382 = vmatmul.mubr.f32.gmra.mrb[0].mxu0 %v740
      %v1383 = vpop.f32.mrb[0].mxu0
      %v1384 = vadd.f32 0.0, %v1383
      %v1385 = vpop.f32.mrb[0].mxu0
      %1386 = vmatprep.mubr.f32.mxu0 0.0
      %1387 = vmatmul.mubr.f32.gmra.mrb[0].mxu0 %v743
      %v1388 = vpop.f32.mrb[0].mxu0
      %v1389 = vadd.f32 0.0, %v1388
      %v1390 = vpop.f32.mrb[0].mxu0
      %1391 = vmatprep.mubr.f32.mxu0 0.0
      %1392 = vmatmul.mubr.f32.gmra.mrb[0].mxu0 %v746
      %v1393 = vpop.f32.mrb[0].mxu0
      %v1394 = vadd.f32 0.0, %v1393
      %v1395 = vpop.f32.mrb[0].mxu0
      %1396 = vmatprep.mubr.f32.mxu0 0.0
      %1397 = vmatmul.mubr.f32.gmra.mrb[0].mxu0 %v749
      %v1398 = vpop.f32.mrb[0].mxu0
      %v1399 = vadd.f32 0.0, %v1398
      %v1400 = vpop.f32.mrb[0].mxu0
      %1401 = vmatprep.mubr.f32.mxu0 0.0
      %1402 = vmatmul.mubr.f32.gmra.mrb[0].mxu0 %v752
      %v1403 = vpop.f32.mrb[0].mxu0
      %v1404 = vadd.f32 0.0, %v1403
      %v1405 = vpop.f32.mrb[0].mxu0
      %1406 = vmatprep.mubr.f32.mxu0 0.0
      %1407 = vmatmul.mubr.f32.gmra.mrb[0].mxu0 %v755
      %v1408 = vpop.f32.mrb[0].mxu0
      %v1409 = vadd.f32 0.0, %v1408
      %v1410 = vpop.f32.mrb[0].mxu0
      %1411 = vmatprep.mubr.f32.mxu0 0.0
      %1412 = vmatmul.mubr.f32.gmra.mrb[0].mxu0 %v758
      %v1413 = vpop.f32.mrb[0].mxu0
      %v1414 = vadd.f32 0.0, %v1413
      %v1415 = vpop.f32.mrb[0].mxu0
      %1416 = vmatprep.mubr.f32.mxu0 0.0
      %1417 = vmatmul.mubr.f32.gmra.mrb[0].mxu0 %v761
      %v1418 = vpop.f32.mrb[0].mxu0
      %v1419 = vadd.f32 0.0, %v1418
      %v1420 = vpop.f32.mrb[0].mxu0
      %1421 = vmatprep.mubr.f32.mxu0 0.0
      %1422 = vmatmul.mubr.f32.gmra.mrb[0].mxu0 %v764
      %v1423 = vpop.f32.mrb[0].mxu0
      %v1424 = vadd.f32 0.0, %v1423
      %v1425 = vpop.f32.mrb[0].mxu0
      %1426 = vmatprep.mubr.f32.mxu0 0.0
      %1427 = vmatmul.mubr.f32.gmra.mrb[0].mxu0 %v767
      %v1428 = vpop.f32.mrb[0].mxu0
      %v1429 = vadd.f32 0.0, %v1428
      %v1430 = vpop.f32.mrb[0].mxu0
      %1431 = vmatprep.mubr.f32.mxu0 0.0
      %1432 = vmatmul.mubr.f32.gmra.mrb[0].mxu0 %v770
      %v1433 = vpop.f32.mrb[0].mxu0
      %v1434 = vadd.f32 0.0, %v1433
      %v1435 = vpop.f32.mrb[0].mxu0
      %1436 = vmatprep.mubr.f32.mxu0 0.0
      %1437 = vmatmul.mubr.f32.gmra.mrb[0].mxu0 %v773
      %v1438 = vpop.f32.mrb[0].mxu0
      %v1439 = vadd.f32 0.0, %v1438
      %v1440 = vpop.f32.mrb[0].mxu0
      %1441 = vmatprep.mubr.f32.mxu0 0.0
      %1442 = vmatmul.mubr.f32.gmra.mrb[0].mxu0 %v776
      %v1443 = vpop.f32.mrb[0].mxu0
      %v1444 = vadd.f32 0.0, %v1443
      %v1445 = vpop.f32.mrb[0].mxu0
      %1446 = vmatprep.mubr.f32.mxu0 0.0
      %1447 = vmatmul.mubr.f32.gmra.mrb[0].mxu0 %v779
      %v1448 = vpop.f32.mrb[0].mxu0
      %v1449 = vadd.f32 0.0, %v1448
      %v1450 = vpop.f32.mrb[0].mxu0
      %1451 = vmatprep.mubr.f32.mxu0 0.0
      %1452 = vmatmul.mubr.f32.gmra.mrb[0].mxu0 %v782
      %v1453 = vpop.f32.mrb[0].mxu0
      %v1454 = vadd.f32 0.0, %v1453
      %v1455 = vpop.f32.mrb[0].mxu0
      %1456 = vmatprep.mubr.f32.mxu0 0.0
      %1457 = vmatmul.mubr.f32.gmra.mrb[0].mxu0 %v785
      %v1458 = vpop.f32.mrb[0].mxu0
      %v1459 = vadd.f32 0.0, %v1458
      %v1460 = vpop.f32.mrb[0].mxu0
      %1461 = vmatprep.mubr.f32.mxu0 0.0
      %1462 = vmatmul.mubr.f32.gmra.mrb[0].mxu0 %v788
      %v1463 = vpop.f32.mrb[0].mxu0
      %v1464 = vadd.f32 0.0, %v1463
      %v1465 = vpop.f32.mrb[0].mxu0
      %1466 = vmatprep.mubr.f32.mxu0 0.0
      %1467 = vmatmul.mubr.f32.gmra.mrb[0].mxu0 %v791
      %v1468 = vpop.f32.mrb[0].mxu0
      %v1469 = vadd.f32 0.0, %v1468
      %v1470 = vpop.f32.mrb[0].mxu0
      %1471 = vmatprep.mubr.f32.mxu0 0.0
      %1472 = vmatmul.mubr.f32.gmra.mrb[0].mxu0 %v794
      %v1473 = vpop.f32.mrb[0].mxu0
      %v1474 = vadd.f32 0.0, %v1473
      %v1475 = vpop.f32.mrb[0].mxu0
      %1476 = vmatprep.mubr.f32.mxu0 0.0
      %1477 = vmatmul.mubr.f32.gmra.mrb[0].mxu0 %v797
      %v1478 = vpop.f32.mrb[0].mxu0
      %v1479 = vadd.f32 0.0, %v1478
      %v1480 = vpop.f32.mrb[0].mxu0
      %1481 = vmatprep.mubr.f32.mxu0 0.0
      %1482 = vmatmul.mubr.f32.gmra.mrb[0].mxu0 %v800
      %v1483 = vpop.f32.mrb[0].mxu0
      %v1484 = vadd.f32 0.0, %v1483
      %v1485 = vpop.f32.mrb[0].mxu0
      %1486 = vmatprep.mubr.f32.mxu0 0.0
      %1487 = vmatmul.mubr.f32.gmra.mrb[0].mxu0 %v803
      %v1488 = vpop.f32.mrb[0].mxu0
      %v1489 = vadd.f32 0.0, %v1488
      %v1490 = vpop.f32.mrb[0].mxu0
      %1491 = vmatprep.mubr.f32.mxu0 0.0
      %1492 = vmatmul.mubr.f32.gmra.mrb[0].mxu0 %v806
      %v1493 = vpop.f32.mrb[0].mxu0
      %v1494 = vadd.f32 0.0, %v1493
      %v1495 = vpop.f32.mrb[0].mxu0
      %1496 = vmatprep.mubr.f32.mxu0 0.0
      %1497 = vmatmul.mubr.f32.gmra.mrb[0].mxu0 %v809
      %v1498 = vpop.f32.mrb[0].mxu0
      %v1499 = vadd.f32 0.0, %v1498
      %v1500 = vpop.f32.mrb[0].mxu0
      %1501 = vmatprep.mubr.f32.mxu0 0.0
      %1502 = vmatmul.mubr.f32.gmra.mrb[0].mxu0 %v812
      %v1503 = vpop.f32.mrb[0].mxu0
      %v1504 = vadd.f32 0.0, %v1503
      %v1505 = vpop.f32.mrb[0].mxu0
      %1506 = vmatprep.mubr.f32.mxu0 0.0
      %1507 = vmatmul.mubr.f32.gmra.mrb[0].mxu0 %v815
      %v1508 = vpop.f32.mrb[0].mxu0
      %v1509 = vadd.f32 0.0, %v1508
      %v1510 = vpop.f32.mrb[0].mxu0
      %1511 = vmatprep.mubr.f32.mxu0 0.0
      %1512 = vmatmul.mubr.f32.gmra.mrb[0].mxu0 %v818
      %v1513 = vpop.f32.mrb[0].mxu0
      %v1514 = vadd.f32 0.0, %v1513
      %v1515 = vpop.f32.mrb[0].mxu0
      %1516 = vmatprep.mubr.f32.mxu0 0.0
      %1517 = vmatmul.mubr.f32.gmra.mrb[0].mxu0 %v821
      %v1518 = vpop.f32.mrb[0].mxu0
      %v1519 = vadd.f32 0.0, %v1518
      %v1520 = vpop.f32.mrb[0].mxu0
      %1521 = vmatprep.mubr.f32.mxu0 0.0
      %1522 = vmatmul.mubr.f32.gmra.mrb[0].mxu0 %v824
      %v1523 = vpop.f32.mrb[0].mxu0
      %v1524 = vadd.f32 0.0, %v1523
      %v1525 = vpop.f32.mrb[0].mxu0
      %1526 = vmatprep.mubr.f32.mxu0 0.0
      %1527 = vmatmul.mubr.f32.gmra.mrb[0].mxu0 %v827
      %v1528 = vpop.f32.mrb[0].mxu0
      %v1529 = vadd.f32 0.0, %v1528
      %v1530 = vpop.f32.mrb[0].mxu0
      %1531 = vmatprep.mubr.f32.mxu0 0.0
      %1532 = vmatmul.mubr.f32.gmra.mrb[0].mxu0 %v830
      %v1533 = vpop.f32.mrb[0].mxu0
      %v1534 = vadd.f32 0.0, %v1533
      %v1535 = vpop.f32.mrb[0].mxu0
      %1536 = vmatprep.mubr.f32.mxu0 0.0
      %1537 = vmatmul.mubr.f32.gmra.mrb[0].mxu0 %v833
      %v1538 = vpop.f32.mrb[0].mxu0
      %v1539 = vadd.f32 0.0, %v1538
      %v1540 = vpop.f32.mrb[0].mxu0
      %1541 = vmatprep.mubr.f32.mxu0 0.0
      %1542 = vmatmul.mubr.f32.gmra.mrb[0].mxu0 %v836
      %v1543 = vpop.f32.mrb[0].mxu0
      %v1544 = vadd.f32 0.0, %v1543
      %v1545 = vpop.f32.mrb[0].mxu0
      %1546 = vdwg.mxu0
      %v1548 = vsel %vm453, %v194, 0
      %v1551 = vsel %vm453, %v195, 0
      %v1554 = vsel %vm453, %v196, 0
      %v1557 = vsel %vm453, %v197, 0
      %v1560 = vsel %vm453, %v198, 0
      %v1563 = vsel %vm453, %v199, 0
      %v1566 = vsel %vm453, %v200, 0
      %v1569 = vsel %vm453, %v201, 0
      %v1572 = vsel %vm453, %v202, 0
      %v1575 = vsel %vm453, %v203, 0
      %v1578 = vsel %vm453, %v204, 0
      %v1581 = vsel %vm453, %v205, 0
      %v1584 = vsel %vm453, %v206, 0
      %v1587 = vsel %vm453, %v207, 0
      %v1590 = vsel %vm453, %v208, 0
      %v1593 = vsel %vm453, %v209, 0
      %v1596 = vsel %vm453, %v210, 0
      %v1599 = vsel %vm453, %v211, 0
      %v1602 = vsel %vm453, %v212, 0
      %v1605 = vsel %vm453, %v213, 0
      %v1608 = vsel %vm453, %v214, 0
      %v1611 = vsel %vm453, %v215, 0
      %v1614 = vsel %vm453, %v216, 0
      %v1617 = vsel %vm453, %v217, 0
      %v1620 = vsel %vm453, %v218, 0
      %v1623 = vsel %vm453, %v219, 0
      %v1626 = vsel %vm453, %v220, 0
      %v1629 = vsel %vm453, %v221, 0
      %v1632 = vsel %vm453, %v222, 0
      %v1635 = vsel %vm453, %v223, 0
      %v1638 = vsel %vm453, %v224, 0
      %v1641 = vsel %vm453, %v225, 0
      %v1644 = vsel %vm453, %v226, 0
      %v1647 = vsel %vm453, %v227, 0
      %v1650 = vsel %vm453, %v228, 0
      %v1653 = vsel %vm453, %v229, 0
      %v1656 = vsel %vm453, %v230, 0
      %v1659 = vsel %vm453, %v231, 0
      %v1662 = vsel %vm453, %v232, 0
      %v1665 = vsel %vm453, %v233, 0
      %v1668 = vsel %vm453, %v234, 0
      %v1671 = vsel %vm453, %v235, 0
      %v1674 = vsel %vm453, %v236, 0
      %v1677 = vsel %vm453, %v237, 0
      %v1680 = vsel %vm453, %v238, 0
      %v1683 = vsel %vm453, %v239, 0
      %v1686 = vsel %vm453, %v240, 0
      %v1689 = vsel %vm453, %v241, 0
      %v1692 = vsel %vm453, %v242, 0
      %v1695 = vsel %vm453, %v243, 0
      %v1698 = vsel %vm453, %v244, 0
      %v1701 = vsel %vm453, %v245, 0
      %v1704 = vsel %vm453, %v246, 0
      %v1707 = vsel %vm453, %v247, 0
      %v1710 = vsel %vm453, %v248, 0
      %v1713 = vsel %vm453, %v249, 0
      %v1716 = vsel %vm453, %v250, 0
      %v1719 = vsel %vm453, %v251, 0
      %v1722 = vsel %vm453, %v252, 0
      %v1725 = vsel %vm453, %v253, 0
      %v1728 = vsel %vm453, %v254, 0
      %v1731 = vsel %vm453, %v255, 0
      %v1734 = vsel %vm453, %v256, 0
      %v1737 = vsel %vm453, %v257, 0
      %v1740 = vsel %vm453, %v258, 0
      %v1743 = vsel %vm453, %v259, 0
      %v1746 = vsel %vm453, %v260, 0
      %v1749 = vsel %vm453, %v261, 0
      %v1752 = vsel %vm453, %v262, 0
      %v1755 = vsel %vm453, %v263, 0
      %v1758 = vsel %vm453, %v264, 0
      %v1761 = vsel %vm453, %v265, 0
      %v1764 = vsel %vm453, %v266, 0
      %v1767 = vsel %vm453, %v267, 0
      %v1770 = vsel %vm453, %v268, 0
      %v1773 = vsel %vm453, %v269, 0
      %v1776 = vsel %vm453, %v270, 0
      %v1779 = vsel %vm453, %v271, 0
      %v1782 = vsel %vm453, %v272, 0
      %v1785 = vsel %vm453, %v273, 0
      %v1788 = vsel %vm453, %v274, 0
      %v1791 = vsel %vm453, %v275, 0
      %v1794 = vsel %vm453, %v276, 0
      %v1797 = vsel %vm453, %v277, 0
      %v1800 = vsel %vm453, %v278, 0
      %v1803 = vsel %vm453, %v279, 0
      %v1806 = vsel %vm453, %v280, 0
      %v1809 = vsel %vm453, %v281, 0
      %v1812 = vsel %vm453, %v282, 0
      %v1815 = vsel %vm453, %v283, 0
      %v1818 = vsel %vm453, %v284, 0
      %v1821 = vsel %vm453, %v285, 0
      %v1824 = vsel %vm453, %v286, 0
      %v1827 = vsel %vm453, %v287, 0
      %v1830 = vsel %vm453, %v288, 0
      %v1833 = vsel %vm453, %v289, 0
      %v1836 = vsel %vm453, %v290, 0
      %v1839 = vsel %vm453, %v291, 0
      %v1842 = vsel %vm453, %v292, 0
      %v1845 = vsel %vm453, %v293, 0
      %v1848 = vsel %vm453, %v294, 0
      %v1851 = vsel %vm453, %v295, 0
      %v1854 = vsel %vm453, %v296, 0
      %v1857 = vsel %vm453, %v297, 0
      %v1860 = vsel %vm453, %v298, 0
      %v1863 = vsel %vm453, %v299, 0
      %v1866 = vsel %vm453, %v300, 0
      %v1869 = vsel %vm453, %v301, 0
      %v1872 = vsel %vm453, %v302, 0
      %v1875 = vsel %vm453, %v303, 0
      %v1878 = vsel %vm453, %v304, 0
      %v1881 = vsel %vm453, %v305, 0
      %v1884 = vsel %vm453, %v306, 0
      %v1887 = vsel %vm453, %v307, 0
      %v1890 = vsel %vm453, %v308, 0
      %v1893 = vsel %vm453, %v309, 0
      %v1896 = vsel %vm453, %v310, 0
      %v1899 = vsel %vm453, %v311, 0
      %v1902 = vsel %vm453, %v312, 0
      %v1905 = vsel %vm453, %v313, 0
      %v1908 = vsel %vm453, %v314, 0
      %v1911 = vsel %vm453, %v315, 0
      %v1914 = vsel %vm453, %v316, 0
      %v1917 = vsel %vm453, %v317, 0
      %v1920 = vsel %vm453, %v318, 0
      %v1923 = vsel %vm453, %v319, 0
      %v1926 = vsel %vm453, %v320, 0
      %v1929 = vsel %vm453, %v321, 0
      %v1932 = vsel %vm838, %v322, 0
      %1934 = vmatprep.subr.mxu0 0.0
      %1935 = vmatpush1.msra.mxu0 %v1932
      %1936 = vmatprep.subr.mxu0 0.0
      %1937 = vmatpush1.msra.mxu0 0.0
      %1938 = vmatprep.subr.mxu0 0.0
      %1939 = vmatpush1.msra.mxu0 0.0
      %1940 = vmatprep.subr.mxu0 0.0
      %1941 = vmatpush1.msra.mxu0 0.0
      %1942 = vmatprep.subr.mxu0 0.0
      %1943 = vmatpush1.msra.mxu0 0.0
      %1944 = vmatprep.subr.mxu0 0.0
      %1945 = vmatpush1.msra.mxu0 0.0
      %1946 = vmatprep.subr.mxu0 0.0
      %1947 = vmatpush1.msra.mxu0 0.0
      %1948 = vmatprep.subr.mxu0 0.0
      %1949 = vmatpush1.msra.mxu0 0.0
      %1950 = vmatprep.subr.mxu0 0.0
      %1951 = vmatpush1.msra.mxu0 0.0
      %1952 = vmatprep.subr.mxu0 0.0
      %1953 = vmatpush1.msra.mxu0 0.0
      %1954 = vmatprep.subr.mxu0 0.0
      %1955 = vmatpush1.msra.mxu0 0.0
      %1956 = vmatprep.subr.mxu0 0.0
      %1957 = vmatpush1.msra.mxu0 0.0
      %1958 = vmatprep.subr.mxu0 0.0
      %1959 = vmatpush1.msra.mxu0 0.0
      %1960 = vmatprep.subr.mxu0 0.0
      %1961 = vmatpush1.msra.mxu0 0.0
      %1962 = vmatprep.subr.mxu0 0.0
      %1963 = vmatpush1.msra.mxu0 0.0
      %1964 = vmatprep.subr.mxu0 0.0
      %1965 = vmatpush1.msra.mxu0 0.0
      %1966 = vmatprep.subr.mxu0 0.0
      %1967 = vmatpush1.msra.mxu0 0.0
      %1968 = vmatprep.subr.mxu0 0.0
      %1969 = vmatpush1.msra.mxu0 0.0
      %1970 = vmatprep.subr.mxu0 0.0
      %1971 = vmatpush1.msra.mxu0 0.0
      %1972 = vmatprep.subr.mxu0 0.0
      %1973 = vmatpush1.msra.mxu0 0.0
      %1974 = vmatprep.subr.mxu0 0.0
      %1975 = vmatpush1.msra.mxu0 0.0
      %1976 = vmatprep.subr.mxu0 0.0
      %1977 = vmatpush1.msra.mxu0 0.0
      %1978 = vmatprep.subr.mxu0 0.0
      %1979 = vmatpush1.msra.mxu0 0.0
      %1980 = vmatprep.subr.mxu0 0.0
      %1981 = vmatpush1.msra.mxu0 0.0
      %1982 = vmatprep.subr.mxu0 0.0
      %1983 = vmatpush1.msra.mxu0 0.0
      %1984 = vmatprep.subr.mxu0 0.0
      %1985 = vmatpush1.msra.mxu0 0.0
      %1986 = vmatprep.subr.mxu0 0.0
      %1987 = vmatpush1.msra.mxu0 0.0
      %1988 = vmatprep.subr.mxu0 0.0
      %1989 = vmatpush1.msra.mxu0 0.0
      %1990 = vmatprep.subr.mxu0 0.0
      %1991 = vmatpush1.msra.mxu0 0.0
      %1992 = vmatprep.subr.mxu0 0.0
      %1993 = vmatpush1.msra.mxu0 0.0
      %1994 = vmatprep.subr.mxu0 0.0
      %1995 = vmatpush1.msra.mxu0 0.0
      %1996 = vmatprep.subr.mxu0 0.0
      %1997 = vmatpush1.msra.mxu0 0.0
      %1998 = vmatprep.mubr.f32.mxu0 0.0
      %1999 = vmatmul.mubr.f32.gmra.mrb[0].mxu0 %v1548
      %v2000 = vpop.f32.mrb[0].mxu0
      %v2001 = vadd.f32 %v909, %v2000
      %v2002 = vpop.f32.mrb[0].mxu0
      %2003 = vmatprep.mubr.f32.mxu0 0.0
      %2004 = vmatmul.mubr.f32.gmra.mrb[0].mxu0 %v1551
      %v2005 = vpop.f32.mrb[0].mxu0
      %v2006 = vadd.f32 %v914, %v2005
      %v2007 = vpop.f32.mrb[0].mxu0
      %2008 = vmatprep.mubr.f32.mxu0 0.0
      %2009 = vmatmul.mubr.f32.gmra.mrb[0].mxu0 %v1554
      %v2010 = vpop.f32.mrb[0].mxu0
      %v2011 = vadd.f32 %v919, %v2010
      %v2012 = vpop.f32.mrb[0].mxu0
      %2013 = vmatprep.mubr.f32.mxu0 0.0
      %2014 = vmatmul.mubr.f32.gmra.mrb[0].mxu0 %v1557
      %v2015 = vpop.f32.mrb[0].mxu0
      %v2016 = vadd.f32 %v924, %v2015
      %v2017 = vpop.f32.mrb[0].mxu0
      %2018 = vmatprep.mubr.f32.mxu0 0.0
      %2019 = vmatmul.mubr.f32.gmra.mrb[0].mxu0 %v1560
      %v2020 = vpop.f32.mrb[0].mxu0
      %v2021 = vadd.f32 %v929, %v2020
      %v2022 = vpop.f32.mrb[0].mxu0
      %2023 = vmatprep.mubr.f32.mxu0 0.0
      %2024 = vmatmul.mubr.f32.gmra.mrb[0].mxu0 %v1563
      %v2025 = vpop.f32.mrb[0].mxu0
      %v2026 = vadd.f32 %v934, %v2025
      %v2027 = vpop.f32.mrb[0].mxu0
      %2028 = vmatprep.mubr.f32.mxu0 0.0
      %2029 = vmatmul.mubr.f32.gmra.mrb[0].mxu0 %v1566
      %v2030 = vpop.f32.mrb[0].mxu0
      %v2031 = vadd.f32 %v939, %v2030
      %v2032 = vpop.f32.mrb[0].mxu0
      %2033 = vmatprep.mubr.f32.mxu0 0.0
      %2034 = vmatmul.mubr.f32.gmra.mrb[0].mxu0 %v1569
      %v2035 = vpop.f32.mrb[0].mxu0
      %v2036 = vadd.f32 %v944, %v2035
      %v2037 = vpop.f32.mrb[0].mxu0
      %2038 = vmatprep.mubr.f32.mxu0 0.0
      %2039 = vmatmul.mubr.f32.gmra.mrb[0].mxu0 %v1572
      %v2040 = vpop.f32.mrb[0].mxu0
      %v2041 = vadd.f32 %v949, %v2040
      %v2042 = vpop.f32.mrb[0].mxu0
      %2043 = vmatprep.mubr.f32.mxu0 0.0
      %2044 = vmatmul.mubr.f32.gmra.mrb[0].mxu0 %v1575
      %v2045 = vpop.f32.mrb[0].mxu0
      %v2046 = vadd.f32 %v954, %v2045
      %v2047 = vpop.f32.mrb[0].mxu0
      %2048 = vmatprep.mubr.f32.mxu0 0.0
      %2049 = vmatmul.mubr.f32.gmra.mrb[0].mxu0 %v1578
      %v2050 = vpop.f32.mrb[0].mxu0
      %v2051 = vadd.f32 %v959, %v2050
      %v2052 = vpop.f32.mrb[0].mxu0
      %2053 = vmatprep.mubr.f32.mxu0 0.0
      %2054 = vmatmul.mubr.f32.gmra.mrb[0].mxu0 %v1581
      %v2055 = vpop.f32.mrb[0].mxu0
      %v2056 = vadd.f32 %v964, %v2055
      %v2057 = vpop.f32.mrb[0].mxu0
      %2058 = vmatprep.mubr.f32.mxu0 0.0
      %2059 = vmatmul.mubr.f32.gmra.mrb[0].mxu0 %v1584
      %v2060 = vpop.f32.mrb[0].mxu0
      %v2061 = vadd.f32 %v969, %v2060
      %v2062 = vpop.f32.mrb[0].mxu0
      %2063 = vmatprep.mubr.f32.mxu0 0.0
      %2064 = vmatmul.mubr.f32.gmra.mrb[0].mxu0 %v1587
      %v2065 = vpop.f32.mrb[0].mxu0
      %v2066 = vadd.f32 %v974, %v2065
      %v2067 = vpop.f32.mrb[0].mxu0
      %2068 = vmatprep.mubr.f32.mxu0 0.0
      %2069 = vmatmul.mubr.f32.gmra.mrb[0].mxu0 %v1590
      %v2070 = vpop.f32.mrb[0].mxu0
      %v2071 = vadd.f32 %v979, %v2070
      %v2072 = vpop.f32.mrb[0].mxu0
      %2073 = vmatprep.mubr.f32.mxu0 0.0
      %2074 = vmatmul.mubr.f32.gmra.mrb[0].mxu0 %v1593
      %v2075 = vpop.f32.mrb[0].mxu0
      %v2076 = vadd.f32 %v984, %v2075
      %v2077 = vpop.f32.mrb[0].mxu0
      %2078 = vmatprep.mubr.f32.mxu0 0.0
      %2079 = vmatmul.mubr.f32.gmra.mrb[0].mxu0 %v1596
      %v2080 = vpop.f32.mrb[0].mxu0
      %v2081 = vadd.f32 %v989, %v2080
      %v2082 = vpop.f32.mrb[0].mxu0
      %2083 = vmatprep.mubr.f32.mxu0 0.0
      %2084 = vmatmul.mubr.f32.gmra.mrb[0].mxu0 %v1599
      %v2085 = vpop.f32.mrb[0].mxu0
      %v2086 = vadd.f32 %v994, %v2085
      %v2087 = vpop.f32.mrb[0].mxu0
      %2088 = vmatprep.mubr.f32.mxu0 0.0
      %2089 = vmatmul.mubr.f32.gmra.mrb[0].mxu0 %v1602
      %v2090 = vpop.f32.mrb[0].mxu0
      %v2091 = vadd.f32 %v999, %v2090
      %v2092 = vpop.f32.mrb[0].mxu0
      %2093 = vmatprep.mubr.f32.mxu0 0.0
      %2094 = vmatmul.mubr.f32.gmra.mrb[0].mxu0 %v1605
      %v2095 = vpop.f32.mrb[0].mxu0
      %v2096 = vadd.f32 %v1004, %v2095
      %v2097 = vpop.f32.mrb[0].mxu0
      %2098 = vmatprep.mubr.f32.mxu0 0.0
      %2099 = vmatmul.mubr.f32.gmra.mrb[0].mxu0 %v1608
      %v2100 = vpop.f32.mrb[0].mxu0
      %v2101 = vadd.f32 %v1009, %v2100
      %v2102 = vpop.f32.mrb[0].mxu0
      %2103 = vmatprep.mubr.f32.mxu0 0.0
      %2104 = vmatmul.mubr.f32.gmra.mrb[0].mxu0 %v1611
      %v2105 = vpop.f32.mrb[0].mxu0
      %v2106 = vadd.f32 %v1014, %v2105
      %v2107 = vpop.f32.mrb[0].mxu0
      %2108 = vmatprep.mubr.f32.mxu0 0.0
      %2109 = vmatmul.mubr.f32.gmra.mrb[0].mxu0 %v1614
      %v2110 = vpop.f32.mrb[0].mxu0
      %v2111 = vadd.f32 %v1019, %v2110
      %v2112 = vpop.f32.mrb[0].mxu0
      %2113 = vmatprep.mubr.f32.mxu0 0.0
      %2114 = vmatmul.mubr.f32.gmra.mrb[0].mxu0 %v1617
      %v2115 = vpop.f32.mrb[0].mxu0
      %v2116 = vadd.f32 %v1024, %v2115
      %v2117 = vpop.f32.mrb[0].mxu0
      %2118 = vmatprep.mubr.f32.mxu0 0.0
      %2119 = vmatmul.mubr.f32.gmra.mrb[0].mxu0 %v1620
      %v2120 = vpop.f32.mrb[0].mxu0
      %v2121 = vadd.f32 %v1029, %v2120
      %v2122 = vpop.f32.mrb[0].mxu0
      %2123 = vmatprep.mubr.f32.mxu0 0.0
      %2124 = vmatmul.mubr.f32.gmra.mrb[0].mxu0 %v1623
      %v2125 = vpop.f32.mrb[0].mxu0
      %v2126 = vadd.f32 %v1034, %v2125
      %v2127 = vpop.f32.mrb[0].mxu0
      %2128 = vmatprep.mubr.f32.mxu0 0.0
      %2129 = vmatmul.mubr.f32.gmra.mrb[0].mxu0 %v1626
      %v2130 = vpop.f32.mrb[0].mxu0
      %v2131 = vadd.f32 %v1039, %v2130
      %v2132 = vpop.f32.mrb[0].mxu0
      %2133 = vmatprep.mubr.f32.mxu0 0.0
      %2134 = vmatmul.mubr.f32.gmra.mrb[0].mxu0 %v1629
      %v2135 = vpop.f32.mrb[0].mxu0
      %v2136 = vadd.f32 %v1044, %v2135
      %v2137 = vpop.f32.mrb[0].mxu0
      %2138 = vmatprep.mubr.f32.mxu0 0.0
      %2139 = vmatmul.mubr.f32.gmra.mrb[0].mxu0 %v1632
      %v2140 = vpop.f32.mrb[0].mxu0
      %v2141 = vadd.f32 %v1049, %v2140
      %v2142 = vpop.f32.mrb[0].mxu0
      %2143 = vmatprep.mubr.f32.mxu0 0.0
      %2144 = vmatmul.mubr.f32.gmra.mrb[0].mxu0 %v1635
      %v2145 = vpop.f32.mrb[0].mxu0
      %v2146 = vadd.f32 %v1054, %v2145
      %v2147 = vpop.f32.mrb[0].mxu0
      %2148 = vmatprep.mubr.f32.mxu0 0.0
      %2149 = vmatmul.mubr.f32.gmra.mrb[0].mxu0 %v1638
      %v2150 = vpop.f32.mrb[0].mxu0
      %v2151 = vadd.f32 %v1059, %v2150
      %v2152 = vpop.f32.mrb[0].mxu0
      %2153 = vmatprep.mubr.f32.mxu0 0.0
      %2154 = vmatmul.mubr.f32.gmra.mrb[0].mxu0 %v1641
      %v2155 = vpop.f32.mrb[0].mxu0
      %v2156 = vadd.f32 %v1064, %v2155
      %v2157 = vpop.f32.mrb[0].mxu0
      %2158 = vmatprep.mubr.f32.mxu0 0.0
      %2159 = vmatmul.mubr.f32.gmra.mrb[0].mxu0 %v1644
      %v2160 = vpop.f32.mrb[0].mxu0
      %v2161 = vadd.f32 %v1069, %v2160
      %v2162 = vpop.f32.mrb[0].mxu0
      %2163 = vmatprep.mubr.f32.mxu0 0.0
      %2164 = vmatmul.mubr.f32.gmra.mrb[0].mxu0 %v1647
      %v2165 = vpop.f32.mrb[0].mxu0
      %v2166 = vadd.f32 %v1074, %v2165
      %v2167 = vpop.f32.mrb[0].mxu0
      %2168 = vmatprep.mubr.f32.mxu0 0.0
      %2169 = vmatmul.mubr.f32.gmra.mrb[0].mxu0 %v1650
      %v2170 = vpop.f32.mrb[0].mxu0
      %v2171 = vadd.f32 %v1079, %v2170
      %v2172 = vpop.f32.mrb[0].mxu0
      %2173 = vmatprep.mubr.f32.mxu0 0.0
      %2174 = vmatmul.mubr.f32.gmra.mrb[0].mxu0 %v1653
      %v2175 = vpop.f32.mrb[0].mxu0
      %v2176 = vadd.f32 %v1084, %v2175
      %v2177 = vpop.f32.mrb[0].mxu0
      %2178 = vmatprep.mubr.f32.mxu0 0.0
      %2179 = vmatmul.mubr.f32.gmra.mrb[0].mxu0 %v1656
      %v2180 = vpop.f32.mrb[0].mxu0
      %v2181 = vadd.f32 %v1089, %v2180
      %v2182 = vpop.f32.mrb[0].mxu0
      %2183 = vmatprep.mubr.f32.mxu0 0.0
      %2184 = vmatmul.mubr.f32.gmra.mrb[0].mxu0 %v1659
      %v2185 = vpop.f32.mrb[0].mxu0
      %v2186 = vadd.f32 %v1094, %v2185
      %v2187 = vpop.f32.mrb[0].mxu0
      %2188 = vmatprep.mubr.f32.mxu0 0.0
      %2189 = vmatmul.mubr.f32.gmra.mrb[0].mxu0 %v1662
      %v2190 = vpop.f32.mrb[0].mxu0
      %v2191 = vadd.f32 %v1099, %v2190
      %v2192 = vpop.f32.mrb[0].mxu0
      %2193 = vmatprep.mubr.f32.mxu0 0.0
      %2194 = vmatmul.mubr.f32.gmra.mrb[0].mxu0 %v1665
      %v2195 = vpop.f32.mrb[0].mxu0
      %v2196 = vadd.f32 %v1104, %v2195
      %v2197 = vpop.f32.mrb[0].mxu0
      %2198 = vmatprep.mubr.f32.mxu0 0.0
      %2199 = vmatmul.mubr.f32.gmra.mrb[0].mxu0 %v1668
      %v2200 = vpop.f32.mrb[0].mxu0
      %v2201 = vadd.f32 %v1109, %v2200
      %v2202 = vpop.f32.mrb[0].mxu0
      %2203 = vmatprep.mubr.f32.mxu0 0.0
      %2204 = vmatmul.mubr.f32.gmra.mrb[0].mxu0 %v1671
      %v2205 = vpop.f32.mrb[0].mxu0
      %v2206 = vadd.f32 %v1114, %v2205
      %v2207 = vpop.f32.mrb[0].mxu0
      %2208 = vmatprep.mubr.f32.mxu0 0.0
      %2209 = vmatmul.mubr.f32.gmra.mrb[0].mxu0 %v1674
      %v2210 = vpop.f32.mrb[0].mxu0
      %v2211 = vadd.f32 %v1119, %v2210
      %v2212 = vpop.f32.mrb[0].mxu0
      %2213 = vmatprep.mubr.f32.mxu0 0.0
      %2214 = vmatmul.mubr.f32.gmra.mrb[0].mxu0 %v1677
      %v2215 = vpop.f32.mrb[0].mxu0
      %v2216 = vadd.f32 %v1124, %v2215
      %v2217 = vpop.f32.mrb[0].mxu0
      %2218 = vmatprep.mubr.f32.mxu0 0.0
      %2219 = vmatmul.mubr.f32.gmra.mrb[0].mxu0 %v1680
      %v2220 = vpop.f32.mrb[0].mxu0
      %v2221 = vadd.f32 %v1129, %v2220
      %v2222 = vpop.f32.mrb[0].mxu0
      %2223 = vmatprep.mubr.f32.mxu0 0.0
      %2224 = vmatmul.mubr.f32.gmra.mrb[0].mxu0 %v1683
      %v2225 = vpop.f32.mrb[0].mxu0
      %v2226 = vadd.f32 %v1134, %v2225
      %v2227 = vpop.f32.mrb[0].mxu0
      %2228 = vmatprep.mubr.f32.mxu0 0.0
      %2229 = vmatmul.mubr.f32.gmra.mrb[0].mxu0 %v1686
      %v2230 = vpop.f32.mrb[0].mxu0
      %v2231 = vadd.f32 %v1139, %v2230
      %v2232 = vpop.f32.mrb[0].mxu0
      %2233 = vmatprep.mubr.f32.mxu0 0.0
      %2234 = vmatmul.mubr.f32.gmra.mrb[0].mxu0 %v1689
      %v2235 = vpop.f32.mrb[0].mxu0
      %v2236 = vadd.f32 %v1144, %v2235
      %v2237 = vpop.f32.mrb[0].mxu0
      %2238 = vmatprep.mubr.f32.mxu0 0.0
      %2239 = vmatmul.mubr.f32.gmra.mrb[0].mxu0 %v1692
      %v2240 = vpop.f32.mrb[0].mxu0
      %v2241 = vadd.f32 %v1149, %v2240
      %v2242 = vpop.f32.mrb[0].mxu0
      %2243 = vmatprep.mubr.f32.mxu0 0.0
      %2244 = vmatmul.mubr.f32.gmra.mrb[0].mxu0 %v1695
      %v2245 = vpop.f32.mrb[0].mxu0
      %v2246 = vadd.f32 %v1154, %v2245
      %v2247 = vpop.f32.mrb[0].mxu0
      %2248 = vmatprep.mubr.f32.mxu0 0.0
      %2249 = vmatmul.mubr.f32.gmra.mrb[0].mxu0 %v1698
      %v2250 = vpop.f32.mrb[0].mxu0
      %v2251 = vadd.f32 %v1159, %v2250
      %v2252 = vpop.f32.mrb[0].mxu0
      %2253 = vmatprep.mubr.f32.mxu0 0.0
      %2254 = vmatmul.mubr.f32.gmra.mrb[0].mxu0 %v1701
      %v2255 = vpop.f32.mrb[0].mxu0
      %v2256 = vadd.f32 %v1164, %v2255
      %v2257 = vpop.f32.mrb[0].mxu0
      %2258 = vmatprep.mubr.f32.mxu0 0.0
      %2259 = vmatmul.mubr.f32.gmra.mrb[0].mxu0 %v1704
      %v2260 = vpop.f32.mrb[0].mxu0
      %v2261 = vadd.f32 %v1169, %v2260
      %v2262 = vpop.f32.mrb[0].mxu0
      %2263 = vmatprep.mubr.f32.mxu0 0.0
      %2264 = vmatmul.mubr.f32.gmra.mrb[0].mxu0 %v1707
      %v2265 = vpop.f32.mrb[0].mxu0
      %v2266 = vadd.f32 %v1174, %v2265
      %v2267 = vpop.f32.mrb[0].mxu0
      %2268 = vmatprep.mubr.f32.mxu0 0.0
      %2269 = vmatmul.mubr.f32.gmra.mrb[0].mxu0 %v1710
      %v2270 = vpop.f32.mrb[0].mxu0
      %v2271 = vadd.f32 %v1179, %v2270
      %v2272 = vpop.f32.mrb[0].mxu0
      %2273 = vmatprep.mubr.f32.mxu0 0.0
      %2274 = vmatmul.mubr.f32.gmra.mrb[0].mxu0 %v1713
      %v2275 = vpop.f32.mrb[0].mxu0
      %v2276 = vadd.f32 %v1184, %v2275
      %v2277 = vpop.f32.mrb[0].mxu0
      %2278 = vmatprep.mubr.f32.mxu0 0.0
      %2279 = vmatmul.mubr.f32.gmra.mrb[0].mxu0 %v1716
      %v2280 = vpop.f32.mrb[0].mxu0
      %v2281 = vadd.f32 %v1189, %v2280
      %v2282 = vpop.f32.mrb[0].mxu0
      %2283 = vmatprep.mubr.f32.mxu0 0.0
      %2284 = vmatmul.mubr.f32.gmra.mrb[0].mxu0 %v1719
      %v2285 = vpop.f32.mrb[0].mxu0
      %v2286 = vadd.f32 %v1194, %v2285
      %v2287 = vpop.f32.mrb[0].mxu0
      %2288 = vmatprep.mubr.f32.mxu0 0.0
      %2289 = vmatmul.mubr.f32.gmra.mrb[0].mxu0 %v1722
      %v2290 = vpop.f32.mrb[0].mxu0
      %v2291 = vadd.f32 %v1199, %v2290
      %v2292 = vpop.f32.mrb[0].mxu0
      %2293 = vmatprep.mubr.f32.mxu0 0.0
      %2294 = vmatmul.mubr.f32.gmra.mrb[0].mxu0 %v1725
      %v2295 = vpop.f32.mrb[0].mxu0
      %v2296 = vadd.f32 %v1204, %v2295
      %v2297 = vpop.f32.mrb[0].mxu0
      %2298 = vmatprep.mubr.f32.mxu0 0.0
      %2299 = vmatmul.mubr.f32.gmra.mrb[0].mxu0 %v1728
      %v2300 = vpop.f32.mrb[0].mxu0
      %v2301 = vadd.f32 %v1209, %v2300
      %v2302 = vpop.f32.mrb[0].mxu0
      %2303 = vmatprep.mubr.f32.mxu0 0.0
      %2304 = vmatmul.mubr.f32.gmra.mrb[0].mxu0 %v1731
      %v2305 = vpop.f32.mrb[0].mxu0
      %v2306 = vadd.f32 %v1214, %v2305
      %v2307 = vpop.f32.mrb[0].mxu0
      %2308 = vmatprep.mubr.f32.mxu0 0.0
      %2309 = vmatmul.mubr.f32.gmra.mrb[0].mxu0 %v1734
      %v2310 = vpop.f32.mrb[0].mxu0
      %v2311 = vadd.f32 %v1219, %v2310
      %v2312 = vpop.f32.mrb[0].mxu0
      %2313 = vmatprep.mubr.f32.mxu0 0.0
      %2314 = vmatmul.mubr.f32.gmra.mrb[0].mxu0 %v1737
      %v2315 = vpop.f32.mrb[0].mxu0
      %v2316 = vadd.f32 %v1224, %v2315
      %v2317 = vpop.f32.mrb[0].mxu0
      %2318 = vmatprep.mubr.f32.mxu0 0.0
      %2319 = vmatmul.mubr.f32.gmra.mrb[0].mxu0 %v1740
      %v2320 = vpop.f32.mrb[0].mxu0
      %v2321 = vadd.f32 %v1229, %v2320
      %v2322 = vpop.f32.mrb[0].mxu0
      %2323 = vmatprep.mubr.f32.mxu0 0.0
      %2324 = vmatmul.mubr.f32.gmra.mrb[0].mxu0 %v1743
      %v2325 = vpop.f32.mrb[0].mxu0
      %v2326 = vadd.f32 %v1234, %v2325
      %v2327 = vpop.f32.mrb[0].mxu0
      %2328 = vmatprep.mubr.f32.mxu0 0.0
      %2329 = vmatmul.mubr.f32.gmra.mrb[0].mxu0 %v1746
      %v2330 = vpop.f32.mrb[0].mxu0
      %v2331 = vadd.f32 %v1239, %v2330
      %v2332 = vpop.f32.mrb[0].mxu0
      %2333 = vmatprep.mubr.f32.mxu0 0.0
      %2334 = vmatmul.mubr.f32.gmra.mrb[0].mxu0 %v1749
      %v2335 = vpop.f32.mrb[0].mxu0
      %v2336 = vadd.f32 %v1244, %v2335
      %v2337 = vpop.f32.mrb[0].mxu0
      %2338 = vmatprep.mubr.f32.mxu0 0.0
      %2339 = vmatmul.mubr.f32.gmra.mrb[0].mxu0 %v1752
      %v2340 = vpop.f32.mrb[0].mxu0
      %v2341 = vadd.f32 %v1249, %v2340
      %v2342 = vpop.f32.mrb[0].mxu0
      %2343 = vmatprep.mubr.f32.mxu0 0.0
      %2344 = vmatmul.mubr.f32.gmra.mrb[0].mxu0 %v1755
      %v2345 = vpop.f32.mrb[0].mxu0
      %v2346 = vadd.f32 %v1254, %v2345
      %v2347 = vpop.f32.mrb[0].mxu0
      %2348 = vmatprep.mubr.f32.mxu0 0.0
      %2349 = vmatmul.mubr.f32.gmra.mrb[0].mxu0 %v1758
      %v2350 = vpop.f32.mrb[0].mxu0
      %v2351 = vadd.f32 %v1259, %v2350
      %v2352 = vpop.f32.mrb[0].mxu0
      %2353 = vmatprep.mubr.f32.mxu0 0.0
      %2354 = vmatmul.mubr.f32.gmra.mrb[0].mxu0 %v1761
      %v2355 = vpop.f32.mrb[0].mxu0
      %v2356 = vadd.f32 %v1264, %v2355
      %v2357 = vpop.f32.mrb[0].mxu0
      %2358 = vmatprep.mubr.f32.mxu0 0.0
      %2359 = vmatmul.mubr.f32.gmra.mrb[0].mxu0 %v1764
      %v2360 = vpop.f32.mrb[0].mxu0
      %v2361 = vadd.f32 %v1269, %v2360
      %v2362 = vpop.f32.mrb[0].mxu0
      %2363 = vmatprep.mubr.f32.mxu0 0.0
      %2364 = vmatmul.mubr.f32.gmra.mrb[0].mxu0 %v1767
      %v2365 = vpop.f32.mrb[0].mxu0
      %v2366 = vadd.f32 %v1274, %v2365
      %v2367 = vpop.f32.mrb[0].mxu0
      %2368 = vmatprep.mubr.f32.mxu0 0.0
      %2369 = vmatmul.mubr.f32.gmra.mrb[0].mxu0 %v1770
      %v2370 = vpop.f32.mrb[0].mxu0
      %v2371 = vadd.f32 %v1279, %v2370
      %v2372 = vpop.f32.mrb[0].mxu0
      %2373 = vmatprep.mubr.f32.mxu0 0.0
      %2374 = vmatmul.mubr.f32.gmra.mrb[0].mxu0 %v1773
      %v2375 = vpop.f32.mrb[0].mxu0
      %v2376 = vadd.f32 %v1284, %v2375
      %v2377 = vpop.f32.mrb[0].mxu0
      %2378 = vmatprep.mubr.f32.mxu0 0.0
      %2379 = vmatmul.mubr.f32.gmra.mrb[0].mxu0 %v1776
      %v2380 = vpop.f32.mrb[0].mxu0
      %v2381 = vadd.f32 %v1289, %v2380
      %v2382 = vpop.f32.mrb[0].mxu0
      %2383 = vmatprep.mubr.f32.mxu0 0.0
      %2384 = vmatmul.mubr.f32.gmra.mrb[0].mxu0 %v1779
      %v2385 = vpop.f32.mrb[0].mxu0
      %v2386 = vadd.f32 %v1294, %v2385
      %v2387 = vpop.f32.mrb[0].mxu0
      %2388 = vmatprep.mubr.f32.mxu0 0.0
      %2389 = vmatmul.mubr.f32.gmra.mrb[0].mxu0 %v1782
      %v2390 = vpop.f32.mrb[0].mxu0
      %v2391 = vadd.f32 %v1299, %v2390
      %v2392 = vpop.f32.mrb[0].mxu0
      %2393 = vmatprep.mubr.f32.mxu0 0.0
      %2394 = vmatmul.mubr.f32.gmra.mrb[0].mxu0 %v1785
      %v2395 = vpop.f32.mrb[0].mxu0
      %v2396 = vadd.f32 %v1304, %v2395
      %v2397 = vpop.f32.mrb[0].mxu0
      %2398 = vmatprep.mubr.f32.mxu0 0.0
      %2399 = vmatmul.mubr.f32.gmra.mrb[0].mxu0 %v1788
      %v2400 = vpop.f32.mrb[0].mxu0
      %v2401 = vadd.f32 %v1309, %v2400
      %v2402 = vpop.f32.mrb[0].mxu0
      %2403 = vmatprep.mubr.f32.mxu0 0.0
      %2404 = vmatmul.mubr.f32.gmra.mrb[0].mxu0 %v1791
      %v2405 = vpop.f32.mrb[0].mxu0
      %v2406 = vadd.f32 %v1314, %v2405
      %v2407 = vpop.f32.mrb[0].mxu0
      %2408 = vmatprep.mubr.f32.mxu0 0.0
      %2409 = vmatmul.mubr.f32.gmra.mrb[0].mxu0 %v1794
      %v2410 = vpop.f32.mrb[0].mxu0
      %v2411 = vadd.f32 %v1319, %v2410
      %v2412 = vpop.f32.mrb[0].mxu0
      %2413 = vmatprep.mubr.f32.mxu0 0.0
      %2414 = vmatmul.mubr.f32.gmra.mrb[0].mxu0 %v1797
      %v2415 = vpop.f32.mrb[0].mxu0
      %v2416 = vadd.f32 %v1324, %v2415
      %v2417 = vpop.f32.mrb[0].mxu0
      %2418 = vmatprep.mubr.f32.mxu0 0.0
      %2419 = vmatmul.mubr.f32.gmra.mrb[0].mxu0 %v1800
      %v2420 = vpop.f32.mrb[0].mxu0
      %v2421 = vadd.f32 %v1329, %v2420
      %v2422 = vpop.f32.mrb[0].mxu0
      %2423 = vmatprep.mubr.f32.mxu0 0.0
      %2424 = vmatmul.mubr.f32.gmra.mrb[0].mxu0 %v1803
      %v2425 = vpop.f32.mrb[0].mxu0
      %v2426 = vadd.f32 %v1334, %v2425
      %v2427 = vpop.f32.mrb[0].mxu0
      %2428 = vmatprep.mubr.f32.mxu0 0.0
      %2429 = vmatmul.mubr.f32.gmra.mrb[0].mxu0 %v1806
      %v2430 = vpop.f32.mrb[0].mxu0
      %v2431 = vadd.f32 %v1339, %v2430
      %v2432 = vpop.f32.mrb[0].mxu0
      %2433 = vmatprep.mubr.f32.mxu0 0.0
      %2434 = vmatmul.mubr.f32.gmra.mrb[0].mxu0 %v1809
      %v2435 = vpop.f32.mrb[0].mxu0
      %v2436 = vadd.f32 %v1344, %v2435
      %v2437 = vpop.f32.mrb[0].mxu0
      %2438 = vmatprep.mubr.f32.mxu0 0.0
      %2439 = vmatmul.mubr.f32.gmra.mrb[0].mxu0 %v1812
      %v2440 = vpop.f32.mrb[0].mxu0
      %v2441 = vadd.f32 %v1349, %v2440
      %v2442 = vpop.f32.mrb[0].mxu0
      %2443 = vmatprep.mubr.f32.mxu0 0.0
      %2444 = vmatmul.mubr.f32.gmra.mrb[0].mxu0 %v1815
      %v2445 = vpop.f32.mrb[0].mxu0
      %v2446 = vadd.f32 %v1354, %v2445
      %v2447 = vpop.f32.mrb[0].mxu0
      %2448 = vmatprep.mubr.f32.mxu0 0.0
      %2449 = vmatmul.mubr.f32.gmra.mrb[0].mxu0 %v1818
      %v2450 = vpop.f32.mrb[0].mxu0
      %v2451 = vadd.f32 %v1359, %v2450
      %v2452 = vpop.f32.mrb[0].mxu0
      %2453 = vmatprep.mubr.f32.mxu0 0.0
      %2454 = vmatmul.mubr.f32.gmra.mrb[0].mxu0 %v1821
      %v2455 = vpop.f32.mrb[0].mxu0
      %v2456 = vadd.f32 %v1364, %v2455
      %v2457 = vpop.f32.mrb[0].mxu0
      %2458 = vmatprep.mubr.f32.mxu0 0.0
      %2459 = vmatmul.mubr.f32.gmra.mrb[0].mxu0 %v1824
      %v2460 = vpop.f32.mrb[0].mxu0
      %v2461 = vadd.f32 %v1369, %v2460
      %v2462 = vpop.f32.mrb[0].mxu0
      %2463 = vmatprep.mubr.f32.mxu0 0.0
      %2464 = vmatmul.mubr.f32.gmra.mrb[0].mxu0 %v1827
      %v2465 = vpop.f32.mrb[0].mxu0
      %v2466 = vadd.f32 %v1374, %v2465
      %v2467 = vpop.f32.mrb[0].mxu0
      %2468 = vmatprep.mubr.f32.mxu0 0.0
      %2469 = vmatmul.mubr.f32.gmra.mrb[0].mxu0 %v1830
      %v2470 = vpop.f32.mrb[0].mxu0
      %v2471 = vadd.f32 %v1379, %v2470
      %v2472 = vpop.f32.mrb[0].mxu0
      %2473 = vmatprep.mubr.f32.mxu0 0.0
      %2474 = vmatmul.mubr.f32.gmra.mrb[0].mxu0 %v1833
      %v2475 = vpop.f32.mrb[0].mxu0
      %v2476 = vadd.f32 %v1384, %v2475
      %v2477 = vpop.f32.mrb[0].mxu0
      %2478 = vmatprep.mubr.f32.mxu0 0.0
      %2479 = vmatmul.mubr.f32.gmra.mrb[0].mxu0 %v1836
      %v2480 = vpop.f32.mrb[0].mxu0
      %v2481 = vadd.f32 %v1389, %v2480
      %v2482 = vpop.f32.mrb[0].mxu0
      %2483 = vmatprep.mubr.f32.mxu0 0.0
      %2484 = vmatmul.mubr.f32.gmra.mrb[0].mxu0 %v1839
      %v2485 = vpop.f32.mrb[0].mxu0
      %v2486 = vadd.f32 %v1394, %v2485
      %v2487 = vpop.f32.mrb[0].mxu0
      %2488 = vmatprep.mubr.f32.mxu0 0.0
      %2489 = vmatmul.mubr.f32.gmra.mrb[0].mxu0 %v1842
      %v2490 = vpop.f32.mrb[0].mxu0
      %v2491 = vadd.f32 %v1399, %v2490
      %v2492 = vpop.f32.mrb[0].mxu0
      %2493 = vmatprep.mubr.f32.mxu0 0.0
      %2494 = vmatmul.mubr.f32.gmra.mrb[0].mxu0 %v1845
      %v2495 = vpop.f32.mrb[0].mxu0
      %v2496 = vadd.f32 %v1404, %v2495
      %v2497 = vpop.f32.mrb[0].mxu0
      %2498 = vmatprep.mubr.f32.mxu0 0.0
      %2499 = vmatmul.mubr.f32.gmra.mrb[0].mxu0 %v1848
      %v2500 = vpop.f32.mrb[0].mxu0
      %v2501 = vadd.f32 %v1409, %v2500
      %v2502 = vpop.f32.mrb[0].mxu0
      %2503 = vmatprep.mubr.f32.mxu0 0.0
      %2504 = vmatmul.mubr.f32.gmra.mrb[0].mxu0 %v1851
      %v2505 = vpop.f32.mrb[0].mxu0
      %v2506 = vadd.f32 %v1414, %v2505
      %v2507 = vpop.f32.mrb[0].mxu0
      %2508 = vmatprep.mubr.f32.mxu0 0.0
      %2509 = vmatmul.mubr.f32.gmra.mrb[0].mxu0 %v1854
      %v2510 = vpop.f32.mrb[0].mxu0
      %v2511 = vadd.f32 %v1419, %v2510
      %v2512 = vpop.f32.mrb[0].mxu0
      %2513 = vmatprep.mubr.f32.mxu0 0.0
      %2514 = vmatmul.mubr.f32.gmra.mrb[0].mxu0 %v1857
      %v2515 = vpop.f32.mrb[0].mxu0
      %v2516 = vadd.f32 %v1424, %v2515
      %v2517 = vpop.f32.mrb[0].mxu0
      %2518 = vmatprep.mubr.f32.mxu0 0.0
      %2519 = vmatmul.mubr.f32.gmra.mrb[0].mxu0 %v1860
      %v2520 = vpop.f32.mrb[0].mxu0
      %v2521 = vadd.f32 %v1429, %v2520
      %v2522 = vpop.f32.mrb[0].mxu0
      %2523 = vmatprep.mubr.f32.mxu0 0.0
      %2524 = vmatmul.mubr.f32.gmra.mrb[0].mxu0 %v1863
      %v2525 = vpop.f32.mrb[0].mxu0
      %v2526 = vadd.f32 %v1434, %v2525
      %v2527 = vpop.f32.mrb[0].mxu0
      %2528 = vmatprep.mubr.f32.mxu0 0.0
      %2529 = vmatmul.mubr.f32.gmra.mrb[0].mxu0 %v1866
      %v2530 = vpop.f32.mrb[0].mxu0
      %v2531 = vadd.f32 %v1439, %v2530
      %v2532 = vpop.f32.mrb[0].mxu0
      %2533 = vmatprep.mubr.f32.mxu0 0.0
      %2534 = vmatmul.mubr.f32.gmra.mrb[0].mxu0 %v1869
      %v2535 = vpop.f32.mrb[0].mxu0
      %v2536 = vadd.f32 %v1444, %v2535
      %v2537 = vpop.f32.mrb[0].mxu0
      %2538 = vmatprep.mubr.f32.mxu0 0.0
      %2539 = vmatmul.mubr.f32.gmra.mrb[0].mxu0 %v1872
      %v2540 = vpop.f32.mrb[0].mxu0
      %v2541 = vadd.f32 %v1449, %v2540
      %v2542 = vpop.f32.mrb[0].mxu0
      %2543 = vmatprep.mubr.f32.mxu0 0.0
      %2544 = vmatmul.mubr.f32.gmra.mrb[0].mxu0 %v1875
      %v2545 = vpop.f32.mrb[0].mxu0
      %v2546 = vadd.f32 %v1454, %v2545
      %v2547 = vpop.f32.mrb[0].mxu0
      %2548 = vmatprep.mubr.f32.mxu0 0.0
      %2549 = vmatmul.mubr.f32.gmra.mrb[0].mxu0 %v1878
      %v2550 = vpop.f32.mrb[0].mxu0
      %v2551 = vadd.f32 %v1459, %v2550
      %v2552 = vpop.f32.mrb[0].mxu0
      %2553 = vmatprep.mubr.f32.mxu0 0.0
      %2554 = vmatmul.mubr.f32.gmra.mrb[0].mxu0 %v1881
      %v2555 = vpop.f32.mrb[0].mxu0
      %v2556 = vadd.f32 %v1464, %v2555
      %v2557 = vpop.f32.mrb[0].mxu0
      %2558 = vmatprep.mubr.f32.mxu0 0.0
      %2559 = vmatmul.mubr.f32.gmra.mrb[0].mxu0 %v1884
      %v2560 = vpop.f32.mrb[0].mxu0
      %v2561 = vadd.f32 %v1469, %v2560
      %v2562 = vpop.f32.mrb[0].mxu0
      %2563 = vmatprep.mubr.f32.mxu0 0.0
      %2564 = vmatmul.mubr.f32.gmra.mrb[0].mxu0 %v1887
      %v2565 = vpop.f32.mrb[0].mxu0
      %v2566 = vadd.f32 %v1474, %v2565
      %v2567 = vpop.f32.mrb[0].mxu0
      %2568 = vmatprep.mubr.f32.mxu0 0.0
      %2569 = vmatmul.mubr.f32.gmra.mrb[0].mxu0 %v1890
      %v2570 = vpop.f32.mrb[0].mxu0
      %v2571 = vadd.f32 %v1479, %v2570
      %v2572 = vpop.f32.mrb[0].mxu0
      %2573 = vmatprep.mubr.f32.mxu0 0.0
      %2574 = vmatmul.mubr.f32.gmra.mrb[0].mxu0 %v1893
      %v2575 = vpop.f32.mrb[0].mxu0
      %v2576 = vadd.f32 %v1484, %v2575
      %v2577 = vpop.f32.mrb[0].mxu0
      %2578 = vmatprep.mubr.f32.mxu0 0.0
      %2579 = vmatmul.mubr.f32.gmra.mrb[0].mxu0 %v1896
      %v2580 = vpop.f32.mrb[0].mxu0
      %v2581 = vadd.f32 %v1489, %v2580
      %v2582 = vpop.f32.mrb[0].mxu0
      %2583 = vmatprep.mubr.f32.mxu0 0.0
      %2584 = vmatmul.mubr.f32.gmra.mrb[0].mxu0 %v1899
      %v2585 = vpop.f32.mrb[0].mxu0
      %v2586 = vadd.f32 %v1494, %v2585
      %v2587 = vpop.f32.mrb[0].mxu0
      %2588 = vmatprep.mubr.f32.mxu0 0.0
      %2589 = vmatmul.mubr.f32.gmra.mrb[0].mxu0 %v1902
      %v2590 = vpop.f32.mrb[0].mxu0
      %v2591 = vadd.f32 %v1499, %v2590
      %v2592 = vpop.f32.mrb[0].mxu0
      %2593 = vmatprep.mubr.f32.mxu0 0.0
      %2594 = vmatmul.mubr.f32.gmra.mrb[0].mxu0 %v1905
      %v2595 = vpop.f32.mrb[0].mxu0
      %v2596 = vadd.f32 %v1504, %v2595
      %v2597 = vpop.f32.mrb[0].mxu0
      %2598 = vmatprep.mubr.f32.mxu0 0.0
      %2599 = vmatmul.mubr.f32.gmra.mrb[0].mxu0 %v1908
      %v2600 = vpop.f32.mrb[0].mxu0
      %v2601 = vadd.f32 %v1509, %v2600
      %v2602 = vpop.f32.mrb[0].mxu0
      %2603 = vmatprep.mubr.f32.mxu0 0.0
      %2604 = vmatmul.mubr.f32.gmra.mrb[0].mxu0 %v1911
      %v2605 = vpop.f32.mrb[0].mxu0
      %v2606 = vadd.f32 %v1514, %v2605
      %v2607 = vpop.f32.mrb[0].mxu0
      %2608 = vmatprep.mubr.f32.mxu0 0.0
      %2609 = vmatmul.mubr.f32.gmra.mrb[0].mxu0 %v1914
      %v2610 = vpop.f32.mrb[0].mxu0
      %v2611 = vadd.f32 %v1519, %v2610
      %v2612 = vpop.f32.mrb[0].mxu0
      %2613 = vmatprep.mubr.f32.mxu0 0.0
      %2614 = vmatmul.mubr.f32.gmra.mrb[0].mxu0 %v1917
      %v2615 = vpop.f32.mrb[0].mxu0
      %v2616 = vadd.f32 %v1524, %v2615
      %v2617 = vpop.f32.mrb[0].mxu0
      %2618 = vmatprep.mubr.f32.mxu0 0.0
      %2619 = vmatmul.mubr.f32.gmra.mrb[0].mxu0 %v1920
      %v2620 = vpop.f32.mrb[0].mxu0
      %v2621 = vadd.f32 %v1529, %v2620
      %v2622 = vpop.f32.mrb[0].mxu0
      %2623 = vmatprep.mubr.f32.mxu0 0.0
      %2624 = vmatmul.mubr.f32.gmra.mrb[0].mxu0 %v1923
      %v2625 = vpop.f32.mrb[0].mxu0
      %v2626 = vadd.f32 %v1534, %v2625
      %v2627 = vpop.f32.mrb[0].mxu0
      %2628 = vmatprep.mubr.f32.mxu0 0.0
      %2629 = vmatmul.mubr.f32.gmra.mrb[0].mxu0 %v1926
      %v2630 = vpop.f32.mrb[0].mxu0
      %v2631 = vadd.f32 %v1539, %v2630
      %v2632 = vpop.f32.mrb[0].mxu0
      %2633 = vmatprep.mubr.f32.mxu0 0.0
      %2634 = vmatmul.mubr.f32.gmra.mrb[0].mxu0 %v1929
      %v2635 = vpop.f32.mrb[0].mxu0
      %v2636 = vadd.f32 %v1544, %v2635
      %v2637 = vpop.f32.mrb[0].mxu0
      %2638 = vdwg.mxu0
      %v2639 = vld [vmem:[%s183 + $0x2] sm:$0xff]
      %v2640 = vld [vmem:[%s183 + $0xa] sm:$0xff]
      %v2641 = vld [vmem:[%s183 + $0x12] sm:$0xff]
      %v2642 = vld [vmem:[%s183 + $0x1a] sm:$0xff]
      %v2643 = vld [vmem:[%s183 + $0x22] sm:$0xff]
      %v2644 = vld [vmem:[%s183 + $0x2a] sm:$0xff]
      %v2645 = vld [vmem:[%s183 + $0x32] sm:$0xff]
      %v2646 = vld [vmem:[%s183 + $0x3a] sm:$0xff]
      %v2647 = vld [vmem:[%s183 + $0x42] sm:$0xff]
      %v2648 = vld [vmem:[%s183 + $0x4a] sm:$0xff]
      %v2649 = vld [vmem:[%s183 + $0x52] sm:$0xff]
      %v2650 = vld [vmem:[%s183 + $0x5a] sm:$0xff]
      %v2651 = vld [vmem:[%s183 + $0x62] sm:$0xff]
      %v2652 = vld [vmem:[%s183 + $0x6a] sm:$0xff]
      %v2653 = vld [vmem:[%s183 + $0x72] sm:$0xff]
      %v2654 = vld [vmem:[%s183 + $0x7a] sm:$0xff]
      %v2655 = vld [vmem:[%s183 + $0x82] sm:$0xff]
      %v2656 = vld [vmem:[%s183 + $0x8a] sm:$0xff]
      %v2657 = vld [vmem:[%s183 + $0x92] sm:$0xff]
      %v2658 = vld [vmem:[%s183 + $0x9a] sm:$0xff]
      %v2659 = vld [vmem:[%s183 + $0xa2] sm:$0xff]
      %v2660 = vld [vmem:[%s183 + $0xaa] sm:$0xff]
      %v2661 = vld [vmem:[%s183 + $0xb2] sm:$0xff]
      %v2662 = vld [vmem:[%s183 + $0xba] sm:$0xff]
      %v2663 = vld [vmem:[%s183 + $0xc2] sm:$0xff]
      %v2664 = vld [vmem:[%s183 + $0xca] sm:$0xff]
      %v2665 = vld [vmem:[%s183 + $0xd2] sm:$0xff]
      %v2666 = vld [vmem:[%s183 + $0xda] sm:$0xff]
      %v2667 = vld [vmem:[%s183 + $0xe2] sm:$0xff]
      %v2668 = vld [vmem:[%s183 + $0xea] sm:$0xff]
      %v2669 = vld [vmem:[%s183 + $0xf2] sm:$0xff]
      %v2670 = vld [vmem:[%s183 + $0xfa] sm:$0xff]
      %v2671 = vld [vmem:[%s183 + $0x102] sm:$0xff]
      %v2672 = vld [vmem:[%s183 + $0x10a] sm:$0xff]
      %v2673 = vld [vmem:[%s183 + $0x112] sm:$0xff]
      %v2674 = vld [vmem:[%s183 + $0x11a] sm:$0xff]
      %v2675 = vld [vmem:[%s183 + $0x122] sm:$0xff]
      %v2676 = vld [vmem:[%s183 + $0x12a] sm:$0xff]
      %v2677 = vld [vmem:[%s183 + $0x132] sm:$0xff]
      %v2678 = vld [vmem:[%s183 + $0x13a] sm:$0xff]
      %v2679 = vld [vmem:[%s183 + $0x142] sm:$0xff]
      %v2680 = vld [vmem:[%s183 + $0x14a] sm:$0xff]
      %v2681 = vld [vmem:[%s183 + $0x152] sm:$0xff]
      %v2682 = vld [vmem:[%s183 + $0x15a] sm:$0xff]
      %v2683 = vld [vmem:[%s183 + $0x162] sm:$0xff]
      %v2684 = vld [vmem:[%s183 + $0x16a] sm:$0xff]
      %v2685 = vld [vmem:[%s183 + $0x172] sm:$0xff]
      %v2686 = vld [vmem:[%s183 + $0x17a] sm:$0xff]
      %v2687 = vld [vmem:[%s183 + $0x182] sm:$0xff]
      %v2688 = vld [vmem:[%s183 + $0x18a] sm:$0xff]
      %v2689 = vld [vmem:[%s183 + $0x192] sm:$0xff]
      %v2690 = vld [vmem:[%s183 + $0x19a] sm:$0xff]
      %v2691 = vld [vmem:[%s183 + $0x1a2] sm:$0xff]
      %v2692 = vld [vmem:[%s183 + $0x1aa] sm:$0xff]
      %v2693 = vld [vmem:[%s183 + $0x1b2] sm:$0xff]
      %v2694 = vld [vmem:[%s183 + $0x1ba] sm:$0xff]
      %v2695 = vld [vmem:[%s183 + $0x1c2] sm:$0xff]
      %v2696 = vld [vmem:[%s183 + $0x1ca] sm:$0xff]
      %v2697 = vld [vmem:[%s183 + $0x1d2] sm:$0xff]
      %v2698 = vld [vmem:[%s183 + $0x1da] sm:$0xff]
      %v2699 = vld [vmem:[%s183 + $0x1e2] sm:$0xff]
      %v2700 = vld [vmem:[%s183 + $0x1ea] sm:$0xff]
      %v2701 = vld [vmem:[%s183 + $0x1f2] sm:$0xff]
      %v2702 = vld [vmem:[%s183 + $0x1fa] sm:$0xff]
      %v2703 = vld [vmem:[%s183 + $0x202] sm:$0xff]
      %v2704 = vld [vmem:[%s183 + $0x20a] sm:$0xff]
      %v2705 = vld [vmem:[%s183 + $0x212] sm:$0xff]
      %v2706 = vld [vmem:[%s183 + $0x21a] sm:$0xff]
      %v2707 = vld [vmem:[%s183 + $0x222] sm:$0xff]
      %v2708 = vld [vmem:[%s183 + $0x22a] sm:$0xff]
      %v2709 = vld [vmem:[%s183 + $0x232] sm:$0xff]
      %v2710 = vld [vmem:[%s183 + $0x23a] sm:$0xff]
      %v2711 = vld [vmem:[%s183 + $0x242] sm:$0xff]
      %v2712 = vld [vmem:[%s183 + $0x24a] sm:$0xff]
      %v2713 = vld [vmem:[%s183 + $0x252] sm:$0xff]
      %v2714 = vld [vmem:[%s183 + $0x25a] sm:$0xff]
      %v2715 = vld [vmem:[%s183 + $0x262] sm:$0xff]
      %v2716 = vld [vmem:[%s183 + $0x26a] sm:$0xff]
      %v2717 = vld [vmem:[%s183 + $0x272] sm:$0xff]
      %v2718 = vld [vmem:[%s183 + $0x27a] sm:$0xff]
      %v2719 = vld [vmem:[%s183 + $0x282] sm:$0xff]
      %v2720 = vld [vmem:[%s183 + $0x28a] sm:$0xff]
      %v2721 = vld [vmem:[%s183 + $0x292] sm:$0xff]
      %v2722 = vld [vmem:[%s183 + $0x29a] sm:$0xff]
      %v2723 = vld [vmem:[%s183 + $0x2a2] sm:$0xff]
      %v2724 = vld [vmem:[%s183 + $0x2aa] sm:$0xff]
      %v2725 = vld [vmem:[%s183 + $0x2b2] sm:$0xff]
      %v2726 = vld [vmem:[%s183 + $0x2ba] sm:$0xff]
      %v2727 = vld [vmem:[%s183 + $0x2c2] sm:$0xff]
      %v2728 = vld [vmem:[%s183 + $0x2ca] sm:$0xff]
      %v2729 = vld [vmem:[%s183 + $0x2d2] sm:$0xff]
      %v2730 = vld [vmem:[%s183 + $0x2da] sm:$0xff]
      %v2731 = vld [vmem:[%s183 + $0x2e2] sm:$0xff]
      %v2732 = vld [vmem:[%s183 + $0x2ea] sm:$0xff]
      %v2733 = vld [vmem:[%s183 + $0x2f2] sm:$0xff]
      %v2734 = vld [vmem:[%s183 + $0x2fa] sm:$0xff]
      %v2735 = vld [vmem:[%s183 + $0x302] sm:$0xff]
      %v2736 = vld [vmem:[%s183 + $0x30a] sm:$0xff]
      %v2737 = vld [vmem:[%s183 + $0x312] sm:$0xff]
      %v2738 = vld [vmem:[%s183 + $0x31a] sm:$0xff]
      %v2739 = vld [vmem:[%s183 + $0x322] sm:$0xff]
      %v2740 = vld [vmem:[%s183 + $0x32a] sm:$0xff]
      %v2741 = vld [vmem:[%s183 + $0x332] sm:$0xff]
      %v2742 = vld [vmem:[%s183 + $0x33a] sm:$0xff]
      %v2743 = vld [vmem:[%s183 + $0x342] sm:$0xff]
      %v2744 = vld [vmem:[%s183 + $0x34a] sm:$0xff]
      %v2745 = vld [vmem:[%s183 + $0x352] sm:$0xff]
      %v2746 = vld [vmem:[%s183 + $0x35a] sm:$0xff]
      %v2747 = vld [vmem:[%s183 + $0x362] sm:$0xff]
      %v2748 = vld [vmem:[%s183 + $0x36a] sm:$0xff]
      %v2749 = vld [vmem:[%s183 + $0x372] sm:$0xff]
      %v2750 = vld [vmem:[%s183 + $0x37a] sm:$0xff]
      %v2751 = vld [vmem:[%s183 + $0x382] sm:$0xff]
      %v2752 = vld [vmem:[%s183 + $0x38a] sm:$0xff]
      %v2753 = vld [vmem:[%s183 + $0x392] sm:$0xff]
      %v2754 = vld [vmem:[%s183 + $0x39a] sm:$0xff]
      %v2755 = vld [vmem:[%s183 + $0x3a2] sm:$0xff]
      %v2756 = vld [vmem:[%s183 + $0x3aa] sm:$0xff]
      %v2757 = vld [vmem:[%s183 + $0x3b2] sm:$0xff]
      %v2758 = vld [vmem:[%s183 + $0x3ba] sm:$0xff]
      %v2759 = vld [vmem:[%s183 + $0x3c2] sm:$0xff]
      %v2760 = vld [vmem:[%s183 + $0x3ca] sm:$0xff]
      %v2761 = vld [vmem:[%s183 + $0x3d2] sm:$0xff]
      %v2762 = vld [vmem:[%s183 + $0x3da] sm:$0xff]
      %v2763 = vld [vmem:[%s183 + $0x3e2] sm:$0xff]
      %v2764 = vld [vmem:[%s183 + $0x3ea] sm:$0xff]
      %v2765 = vld [vmem:[%s183 + $0x3f2] sm:$0xff]
      %v2766 = vld [vmem:[%s183 + $0x3fa] sm:$0xff]
      %s2767 = scalar_lea.vmem %s1, 16
      %v2768 = vld [vmem:[%s2767] sm:$0x3f]
      %v2770 = vsel %vm453, %v2639, 0
      %v2773 = vsel %vm453, %v2640, 0
      %v2776 = vsel %vm453, %v2641, 0
      %v2779 = vsel %vm453, %v2642, 0
      %v2782 = vsel %vm453, %v2643, 0
      %v2785 = vsel %vm453, %v2644, 0
      %v2788 = vsel %vm453, %v2645, 0
      %v2791 = vsel %vm453, %v2646, 0
      %v2794 = vsel %vm453, %v2647, 0
      %v2797 = vsel %vm453, %v2648, 0
      %v2800 = vsel %vm453, %v2649, 0
      %v2803 = vsel %vm453, %v2650, 0
      %v2806 = vsel %vm453, %v2651, 0
      %v2809 = vsel %vm453, %v2652, 0
      %v2812 = vsel %vm453, %v2653, 0
      %v2815 = vsel %vm453, %v2654, 0
      %v2818 = vsel %vm453, %v2655, 0
      %v2821 = vsel %vm453, %v2656, 0
      %v2824 = vsel %vm453, %v2657, 0
      %v2827 = vsel %vm453, %v2658, 0
      %v2830 = vsel %vm453, %v2659, 0
      %v2833 = vsel %vm453, %v2660, 0
      %v2836 = vsel %vm453, %v2661, 0
      %v2839 = vsel %vm453, %v2662, 0
      %v2842 = vsel %vm453, %v2663, 0
      %v2845 = vsel %vm453, %v2664, 0
      %v2848 = vsel %vm453, %v2665, 0
      %v2851 = vsel %vm453, %v2666, 0
      %v2854 = vsel %vm453, %v2667, 0
      %v2857 = vsel %vm453, %v2668, 0
      %v2860 = vsel %vm453, %v2669, 0
      %v2863 = vsel %vm453, %v2670, 0
      %v2866 = vsel %vm453, %v2671, 0
      %v2869 = vsel %vm453, %v2672, 0
      %v2872 = vsel %vm453, %v2673, 0
      %v2875 = vsel %vm453, %v2674, 0
      %v2878 = vsel %vm453, %v2675, 0
      %v2881 = vsel %vm453, %v2676, 0
      %v2884 = vsel %vm453, %v2677, 0
      %v2887 = vsel %vm453, %v2678, 0
      %v2890 = vsel %vm453, %v2679, 0
      %v2893 = vsel %vm453, %v2680, 0
      %v2896 = vsel %vm453, %v2681, 0
      %v2899 = vsel %vm453, %v2682, 0
      %v2902 = vsel %vm453, %v2683, 0
      %v2905 = vsel %vm453, %v2684, 0
      %v2908 = vsel %vm453, %v2685, 0
      %v2911 = vsel %vm453, %v2686, 0
      %v2914 = vsel %vm453, %v2687, 0
      %v2917 = vsel %vm453, %v2688, 0
      %v2920 = vsel %vm453, %v2689, 0
      %v2923 = vsel %vm453, %v2690, 0
      %v2926 = vsel %vm453, %v2691, 0
      %v2929 = vsel %vm453, %v2692, 0
      %v2932 = vsel %vm453, %v2693, 0
      %v2935 = vsel %vm453, %v2694, 0
      %v2938 = vsel %vm453, %v2695, 0
      %v2941 = vsel %vm453, %v2696, 0
      %v2944 = vsel %vm453, %v2697, 0
      %v2947 = vsel %vm453, %v2698, 0
      %v2950 = vsel %vm453, %v2699, 0
      %v2953 = vsel %vm453, %v2700, 0
      %v2956 = vsel %vm453, %v2701, 0
      %v2959 = vsel %vm453, %v2702, 0
      %v2962 = vsel %vm453, %v2703, 0
      %v2965 = vsel %vm453, %v2704, 0
      %v2968 = vsel %vm453, %v2705, 0
      %v2971 = vsel %vm453, %v2706, 0
      %v2974 = vsel %vm453, %v2707, 0
      %v2977 = vsel %vm453, %v2708, 0
      %v2980 = vsel %vm453, %v2709, 0
      %v2983 = vsel %vm453, %v2710, 0
      %v2986 = vsel %vm453, %v2711, 0
      %v2989 = vsel %vm453, %v2712, 0
      %v2992 = vsel %vm453, %v2713, 0
      %v2995 = vsel %vm453, %v2714, 0
      %v2998 = vsel %vm453, %v2715, 0
      %v3001 = vsel %vm453, %v2716, 0
      %v3004 = vsel %vm453, %v2717, 0
      %v3007 = vsel %vm453, %v2718, 0
      %v3010 = vsel %vm453, %v2719, 0
      %v3013 = vsel %vm453, %v2720, 0
      %v3016 = vsel %vm453, %v2721, 0
      %v3019 = vsel %vm453, %v2722, 0
      %v3022 = vsel %vm453, %v2723, 0
      %v3025 = vsel %vm453, %v2724, 0
      %v3028 = vsel %vm453, %v2725, 0
      %v3031 = vsel %vm453, %v2726, 0
      %v3034 = vsel %vm453, %v2727, 0
      %v3037 = vsel %vm453, %v2728, 0
      %v3040 = vsel %vm453, %v2729, 0
      %v3043 = vsel %vm453, %v2730, 0
      %v3046 = vsel %vm453, %v2731, 0
      %v3049 = vsel %vm453, %v2732, 0
      %v3052 = vsel %vm453, %v2733, 0
      %v3055 = vsel %vm453, %v2734, 0
      %v3058 = vsel %vm453, %v2735, 0
      %v3061 = vsel %vm453, %v2736, 0
      %v3064 = vsel %vm453, %v2737, 0
      %v3067 = vsel %vm453, %v2738, 0
      %v3070 = vsel %vm453, %v2739, 0
      %v3073 = vsel %vm453, %v2740, 0
      %v3076 = vsel %vm453, %v2741, 0
      %v3079 = vsel %vm453, %v2742, 0
      %v3082 = vsel %vm453, %v2743, 0
      %v3085 = vsel %vm453, %v2744, 0
      %v3088 = vsel %vm453, %v2745, 0
      %v3091 = vsel %vm453, %v2746, 0
      %v3094 = vsel %vm453, %v2747, 0
      %v3097 = vsel %vm453, %v2748, 0
      %v3100 = vsel %vm453, %v2749, 0
      %v3103 = vsel %vm453, %v2750, 0
      %v3106 = vsel %vm453, %v2751, 0
      %v3109 = vsel %vm453, %v2752, 0
      %v3112 = vsel %vm453, %v2753, 0
      %v3115 = vsel %vm453, %v2754, 0
      %v3118 = vsel %vm453, %v2755, 0
      %v3121 = vsel %vm453, %v2756, 0
      %v3124 = vsel %vm453, %v2757, 0
      %v3127 = vsel %vm453, %v2758, 0
      %v3130 = vsel %vm453, %v2759, 0
      %v3133 = vsel %vm453, %v2760, 0
      %v3136 = vsel %vm453, %v2761, 0
      %v3139 = vsel %vm453, %v2762, 0
      %v3142 = vsel %vm453, %v2763, 0
      %v3145 = vsel %vm453, %v2764, 0
      %v3148 = vsel %vm453, %v2765, 0
      %v3151 = vsel %vm453, %v2766, 0
      %v3154 = vsel %vm838, %v2768, 0
      %3156 = vmatprep.subr.mxu0 0.0
      %3157 = vmatpush1.msra.mxu0 %v3154
      %3158 = vmatprep.subr.mxu0 0.0
      %3159 = vmatpush1.msra.mxu0 0.0
      %3160 = vmatprep.subr.mxu0 0.0
      %3161 = vmatpush1.msra.mxu0 0.0
      %3162 = vmatprep.subr.mxu0 0.0
      %3163 = vmatpush1.msra.mxu0 0.0
      %3164 = vmatprep.subr.mxu0 0.0
      %3165 = vmatpush1.msra.mxu0 0.0
      %3166 = vmatprep.subr.mxu0 0.0
      %3167 = vmatpush1.msra.mxu0 0.0
      %3168 = vmatprep.subr.mxu0 0.0
      %3169 = vmatpush1.msra.mxu0 0.0
      %3170 = vmatprep.subr.mxu0 0.0
      %3171 = vmatpush1.msra.mxu0 0.0
      %3172 = vmatprep.subr.mxu0 0.0
      %3173 = vmatpush1.msra.mxu0 0.0
      %3174 = vmatprep.subr.mxu0 0.0
      %3175 = vmatpush1.msra.mxu0 0.0
      %3176 = vmatprep.subr.mxu0 0.0
      %3177 = vmatpush1.msra.mxu0 0.0
      %3178 = vmatprep.subr.mxu0 0.0
      %3179 = vmatpush1.msra.mxu0 0.0
      %3180 = vmatprep.subr.mxu0 0.0
      %3181 = vmatpush1.msra.mxu0 0.0
      %3182 = vmatprep.subr.mxu0 0.0
      %3183 = vmatpush1.msra.mxu0 0.0
      %3184 = vmatprep.subr.mxu0 0.0
      %3185 = vmatpush1.msra.mxu0 0.0
      %3186 = vmatprep.subr.mxu0 0.0
      %3187 = vmatpush1.msra.mxu0 0.0
      %3188 = vmatprep.subr.mxu0 0.0
      %3189 = vmatpush1.msra.mxu0 0.0
      %3190 = vmatprep.subr.mxu0 0.0
      %3191 = vmatpush1.msra.mxu0 0.0
      %3192 = vmatprep.subr.mxu0 0.0
      %3193 = vmatpush1.msra.mxu0 0.0
      %3194 = vmatprep.subr.mxu0 0.0
      %3195 = vmatpush1.msra.mxu0 0.0
      %3196 = vmatprep.subr.mxu0 0.0
      %3197 = vmatpush1.msra.mxu0 0.0
      %3198 = vmatprep.subr.mxu0 0.0
      %3199 = vmatpush1.msra.mxu0 0.0
      %3200 = vmatprep.subr.mxu0 0.0
      %3201 = vmatpush1.msra.mxu0 0.0
      %3202 = vmatprep.subr.mxu0 0.0
      %3203 = vmatpush1.msra.mxu0 0.0
      %3204 = vmatprep.subr.mxu0 0.0
      %3205 = vmatpush1.msra.mxu0 0.0
      %3206 = vmatprep.subr.mxu0 0.0
      %3207 = vmatpush1.msra.mxu0 0.0
      %3208 = vmatprep.subr.mxu0 0.0
      %3209 = vmatpush1.msra.mxu0 0.0
      %3210 = vmatprep.subr.mxu0 0.0
      %3211 = vmatpush1.msra.mxu0 0.0
      %3212 = vmatprep.subr.mxu0 0.0
      %3213 = vmatpush1.msra.mxu0 0.0
      %3214 = vmatprep.subr.mxu0 0.0
      %3215 = vmatpush1.msra.mxu0 0.0
      %3216 = vmatprep.subr.mxu0 0.0
      %3217 = vmatpush1.msra.mxu0 0.0
      %3218 = vmatprep.subr.mxu0 0.0
      %3219 = vmatpush1.msra.mxu0 0.0
      %3220 = vmatprep.mubr.f32.mxu0 0.0
      %3221 = vmatmul.mubr.f32.gmra.mrb[0].mxu0 %v2770
      %v3222 = vpop.f32.mrb[0].mxu0
      %v3223 = vadd.f32 0.0, %v3222
      %v3224 = vpop.f32.mrb[0].mxu0
      %3225 = vmatprep.mubr.f32.mxu0 0.0
      %3226 = vmatmul.mubr.f32.gmra.mrb[0].mxu0 %v2773
      %v3227 = vpop.f32.mrb[0].mxu0
      %v3228 = vadd.f32 0.0, %v3227
      %v3229 = vpop.f32.mrb[0].mxu0
      %3230 = vmatprep.mubr.f32.mxu0 0.0
      %3231 = vmatmul.mubr.f32.gmra.mrb[0].mxu0 %v2776
      %v3232 = vpop.f32.mrb[0].mxu0
      %v3233 = vadd.f32 0.0, %v3232
      %v3234 = vpop.f32.mrb[0].mxu0
      %3235 = vmatprep.mubr.f32.mxu0 0.0
      %3236 = vmatmul.mubr.f32.gmra.mrb[0].mxu0 %v2779
      %v3237 = vpop.f32.mrb[0].mxu0
      %v3238 = vadd.f32 0.0, %v3237
      %v3239 = vpop.f32.mrb[0].mxu0
      %3240 = vmatprep.mubr.f32.mxu0 0.0
      %3241 = vmatmul.mubr.f32.gmra.mrb[0].mxu0 %v2782
      %v3242 = vpop.f32.mrb[0].mxu0
      %v3243 = vadd.f32 0.0, %v3242
      %v3244 = vpop.f32.mrb[0].mxu0
      %3245 = vmatprep.mubr.f32.mxu0 0.0
      %3246 = vmatmul.mubr.f32.gmra.mrb[0].mxu0 %v2785
      %v3247 = vpop.f32.mrb[0].mxu0
      %v3248 = vadd.f32 0.0, %v3247
      %v3249 = vpop.f32.mrb[0].mxu0
      %3250 = vmatprep.mubr.f32.mxu0 0.0
      %3251 = vmatmul.mubr.f32.gmra.mrb[0].mxu0 %v2788
      %v3252 = vpop.f32.mrb[0].mxu0
      %v3253 = vadd.f32 0.0, %v3252
      %v3254 = vpop.f32.mrb[0].mxu0
      %3255 = vmatprep.mubr.f32.mxu0 0.0
      %3256 = vmatmul.mubr.f32.gmra.mrb[0].mxu0 %v2791
      %v3257 = vpop.f32.mrb[0].mxu0
      %v3258 = vadd.f32 0.0, %v3257
      %v3259 = vpop.f32.mrb[0].mxu0
      %3260 = vmatprep.mubr.f32.mxu0 0.0
      %3261 = vmatmul.mubr.f32.gmra.mrb[0].mxu0 %v2794
      %v3262 = vpop.f32.mrb[0].mxu0
      %v3263 = vadd.f32 0.0, %v3262
      %v3264 = vpop.f32.mrb[0].mxu0
      %3265 = vmatprep.mubr.f32.mxu0 0.0
      %3266 = vmatmul.mubr.f32.gmra.mrb[0].mxu0 %v2797
      %v3267 = vpop.f32.mrb[0].mxu0
      %v3268 = vadd.f32 0.0, %v3267
      %v3269 = vpop.f32.mrb[0].mxu0
      %3270 = vmatprep.mubr.f32.mxu0 0.0
      %3271 = vmatmul.mubr.f32.gmra.mrb[0].mxu0 %v2800
      %v3272 = vpop.f32.mrb[0].mxu0
      %v3273 = vadd.f32 0.0, %v3272
      %v3274 = vpop.f32.mrb[0].mxu0
      %3275 = vmatprep.mubr.f32.mxu0 0.0
      %3276 = vmatmul.mubr.f32.gmra.mrb[0].mxu0 %v2803
      %v3277 = vpop.f32.mrb[0].mxu0
      %v3278 = vadd.f32 0.0, %v3277
      %v3279 = vpop.f32.mrb[0].mxu0
      %3280 = vmatprep.mubr.f32.mxu0 0.0
      %3281 = vmatmul.mubr.f32.gmra.mrb[0].mxu0 %v2806
      %v3282 = vpop.f32.mrb[0].mxu0
      %v3283 = vadd.f32 0.0, %v3282
      %v3284 = vpop.f32.mrb[0].mxu0
      %3285 = vmatprep.mubr.f32.mxu0 0.0
      %3286 = vmatmul.mubr.f32.gmra.mrb[0].mxu0 %v2809
      %v3287 = vpop.f32.mrb[0].mxu0
      %v3288 = vadd.f32 0.0, %v3287
      %v3289 = vpop.f32.mrb[0].mxu0
      %3290 = vmatprep.mubr.f32.mxu0 0.0
      %3291 = vmatmul.mubr.f32.gmra.mrb[0].mxu0 %v2812
      %v3292 = vpop.f32.mrb[0].mxu0
      %v3293 = vadd.f32 0.0, %v3292
      %v3294 = vpop.f32.mrb[0].mxu0
      %3295 = vmatprep.mubr.f32.mxu0 0.0
      %3296 = vmatmul.mubr.f32.gmra.mrb[0].mxu0 %v2815
      %v3297 = vpop.f32.mrb[0].mxu0
      %v3298 = vadd.f32 0.0, %v3297
      %v3299 = vpop.f32.mrb[0].mxu0
      %3300 = vmatprep.mubr.f32.mxu0 0.0
      %3301 = vmatmul.mubr.f32.gmra.mrb[0].mxu0 %v2818
      %v3302 = vpop.f32.mrb[0].mxu0
      %v3303 = vadd.f32 0.0, %v3302
      %v3304 = vpop.f32.mrb[0].mxu0
      %3305 = vmatprep.mubr.f32.mxu0 0.0
      %3306 = vmatmul.mubr.f32.gmra.mrb[0].mxu0 %v2821
      %v3307 = vpop.f32.mrb[0].mxu0
      %v3308 = vadd.f32 0.0, %v3307
      %v3309 = vpop.f32.mrb[0].mxu0
      %3310 = vmatprep.mubr.f32.mxu0 0.0
      %3311 = vmatmul.mubr.f32.gmra.mrb[0].mxu0 %v2824
      %v3312 = vpop.f32.mrb[0].mxu0
      %v3313 = vadd.f32 0.0, %v3312
      %v3314 = vpop.f32.mrb[0].mxu0
      %3315 = vmatprep.mubr.f32.mxu0 0.0
      %3316 = vmatmul.mubr.f32.gmra.mrb[0].mxu0 %v2827
      %v3317 = vpop.f32.mrb[0].mxu0
      %v3318 = vadd.f32 0.0, %v3317
      %v3319 = vpop.f32.mrb[0].mxu0
      %3320 = vmatprep.mubr.f32.mxu0 0.0
      %3321 = vmatmul.mubr.f32.gmra.mrb[0].mxu0 %v2830
      %v3322 = vpop.f32.mrb[0].mxu0
      %v3323 = vadd.f32 0.0, %v3322
      %v3324 = vpop.f32.mrb[0].mxu0
      %3325 = vmatprep.mubr.f32.mxu0 0.0
      %3326 = vmatmul.mubr.f32.gmra.mrb[0].mxu0 %v2833
      %v3327 = vpop.f32.mrb[0].mxu0
      %v3328 = vadd.f32 0.0, %v3327
      %v3329 = vpop.f32.mrb[0].mxu0
      %3330 = vmatprep.mubr.f32.mxu0 0.0
      %3331 = vmatmul.mubr.f32.gmra.mrb[0].mxu0 %v2836
      %v3332 = vpop.f32.mrb[0].mxu0
      %v3333 = vadd.f32 0.0, %v3332
      %v3334 = vpop.f32.mrb[0].mxu0
      %3335 = vmatprep.mubr.f32.mxu0 0.0
      %3336 = vmatmul.mubr.f32.gmra.mrb[0].mxu0 %v2839
      %v3337 = vpop.f32.mrb[0].mxu0
      %v3338 = vadd.f32 0.0, %v3337
      %v3339 = vpop.f32.mrb[0].mxu0
      %3340 = vmatprep.mubr.f32.mxu0 0.0
      %3341 = vmatmul.mubr.f32.gmra.mrb[0].mxu0 %v2842
      %v3342 = vpop.f32.mrb[0].mxu0
      %v3343 = vadd.f32 0.0, %v3342
      %v3344 = vpop.f32.mrb[0].mxu0
      %3345 = vmatprep.mubr.f32.mxu0 0.0
      %3346 = vmatmul.mubr.f32.gmra.mrb[0].mxu0 %v2845
      %v3347 = vpop.f32.mrb[0].mxu0
      %v3348 = vadd.f32 0.0, %v3347
      %v3349 = vpop.f32.mrb[0].mxu0
      %3350 = vmatprep.mubr.f32.mxu0 0.0
      %3351 = vmatmul.mubr.f32.gmra.mrb[0].mxu0 %v2848
      %v3352 = vpop.f32.mrb[0].mxu0
      %v3353 = vadd.f32 0.0, %v3352
      %v3354 = vpop.f32.mrb[0].mxu0
      %3355 = vmatprep.mubr.f32.mxu0 0.0
      %3356 = vmatmul.mubr.f32.gmra.mrb[0].mxu0 %v2851
      %v3357 = vpop.f32.mrb[0].mxu0
      %v3358 = vadd.f32 0.0, %v3357
      %v3359 = vpop.f32.mrb[0].mxu0
      %3360 = vmatprep.mubr.f32.mxu0 0.0
      %3361 = vmatmul.mubr.f32.gmra.mrb[0].mxu0 %v2854
      %v3362 = vpop.f32.mrb[0].mxu0
      %v3363 = vadd.f32 0.0, %v3362
      %v3364 = vpop.f32.mrb[0].mxu0
      %3365 = vmatprep.mubr.f32.mxu0 0.0
      %3366 = vmatmul.mubr.f32.gmra.mrb[0].mxu0 %v2857
      %v3367 = vpop.f32.mrb[0].mxu0
      %v3368 = vadd.f32 0.0, %v3367
      %v3369 = vpop.f32.mrb[0].mxu0
      %3370 = vmatprep.mubr.f32.mxu0 0.0
      %3371 = vmatmul.mubr.f32.gmra.mrb[0].mxu0 %v2860
      %v3372 = vpop.f32.mrb[0].mxu0
      %v3373 = vadd.f32 0.0, %v3372
      %v3374 = vpop.f32.mrb[0].mxu0
      %3375 = vmatprep.mubr.f32.mxu0 0.0
      %3376 = vmatmul.mubr.f32.gmra.mrb[0].mxu0 %v2863
      %v3377 = vpop.f32.mrb[0].mxu0
      %v3378 = vadd.f32 0.0, %v3377
      %v3379 = vpop.f32.mrb[0].mxu0
      %3380 = vmatprep.mubr.f32.mxu0 0.0
      %3381 = vmatmul.mubr.f32.gmra.mrb[0].mxu0 %v2866
      %v3382 = vpop.f32.mrb[0].mxu0
      %v3383 = vadd.f32 0.0, %v3382
      %v3384 = vpop.f32.mrb[0].mxu0
      %3385 = vmatprep.mubr.f32.mxu0 0.0
      %3386 = vmatmul.mubr.f32.gmra.mrb[0].mxu0 %v2869
      %v3387 = vpop.f32.mrb[0].mxu0
      %v3388 = vadd.f32 0.0, %v3387
      %v3389 = vpop.f32.mrb[0].mxu0
      %3390 = vmatprep.mubr.f32.mxu0 0.0
      %3391 = vmatmul.mubr.f32.gmra.mrb[0].mxu0 %v2872
      %v3392 = vpop.f32.mrb[0].mxu0
      %v3393 = vadd.f32 0.0, %v3392
      %v3394 = vpop.f32.mrb[0].mxu0
      %3395 = vmatprep.mubr.f32.mxu0 0.0
      %3396 = vmatmul.mubr.f32.gmra.mrb[0].mxu0 %v2875
      %v3397 = vpop.f32.mrb[0].mxu0
      %v3398 = vadd.f32 0.0, %v3397
      %v3399 = vpop.f32.mrb[0].mxu0
      %3400 = vmatprep.mubr.f32.mxu0 0.0
      %3401 = vmatmul.mubr.f32.gmra.mrb[0].mxu0 %v2878
      %v3402 = vpop.f32.mrb[0].mxu0
      %v3403 = vadd.f32 0.0, %v3402
      %v3404 = vpop.f32.mrb[0].mxu0
      %3405 = vmatprep.mubr.f32.mxu0 0.0
      %3406 = vmatmul.mubr.f32.gmra.mrb[0].mxu0 %v2881
      %v3407 = vpop.f32.mrb[0].mxu0
      %v3408 = vadd.f32 0.0, %v3407
      %v3409 = vpop.f32.mrb[0].mxu0
      %3410 = vmatprep.mubr.f32.mxu0 0.0
      %3411 = vmatmul.mubr.f32.gmra.mrb[0].mxu0 %v2884
      %v3412 = vpop.f32.mrb[0].mxu0
      %v3413 = vadd.f32 0.0, %v3412
      %v3414 = vpop.f32.mrb[0].mxu0
      %3415 = vmatprep.mubr.f32.mxu0 0.0
      %3416 = vmatmul.mubr.f32.gmra.mrb[0].mxu0 %v2887
      %v3417 = vpop.f32.mrb[0].mxu0
      %v3418 = vadd.f32 0.0, %v3417
      %v3419 = vpop.f32.mrb[0].mxu0
      %3420 = vmatprep.mubr.f32.mxu0 0.0
      %3421 = vmatmul.mubr.f32.gmra.mrb[0].mxu0 %v2890
      %v3422 = vpop.f32.mrb[0].mxu0
      %v3423 = vadd.f32 0.0, %v3422
      %v3424 = vpop.f32.mrb[0].mxu0
      %3425 = vmatprep.mubr.f32.mxu0 0.0
      %3426 = vmatmul.mubr.f32.gmra.mrb[0].mxu0 %v2893
      %v3427 = vpop.f32.mrb[0].mxu0
      %v3428 = vadd.f32 0.0, %v3427
      %v3429 = vpop.f32.mrb[0].mxu0
      %3430 = vmatprep.mubr.f32.mxu0 0.0
      %3431 = vmatmul.mubr.f32.gmra.mrb[0].mxu0 %v2896
      %v3432 = vpop.f32.mrb[0].mxu0
      %v3433 = vadd.f32 0.0, %v3432
      %v3434 = vpop.f32.mrb[0].mxu0
      %3435 = vmatprep.mubr.f32.mxu0 0.0
      %3436 = vmatmul.mubr.f32.gmra.mrb[0].mxu0 %v2899
      %v3437 = vpop.f32.mrb[0].mxu0
      %v3438 = vadd.f32 0.0, %v3437
      %v3439 = vpop.f32.mrb[0].mxu0
      %3440 = vmatprep.mubr.f32.mxu0 0.0
      %3441 = vmatmul.mubr.f32.gmra.mrb[0].mxu0 %v2902
      %v3442 = vpop.f32.mrb[0].mxu0
      %v3443 = vadd.f32 0.0, %v3442
      %v3444 = vpop.f32.mrb[0].mxu0
      %3445 = vmatprep.mubr.f32.mxu0 0.0
      %3446 = vmatmul.mubr.f32.gmra.mrb[0].mxu0 %v2905
      %v3447 = vpop.f32.mrb[0].mxu0
      %v3448 = vadd.f32 0.0, %v3447
      %v3449 = vpop.f32.mrb[0].mxu0
      %3450 = vmatprep.mubr.f32.mxu0 0.0
      %3451 = vmatmul.mubr.f32.gmra.mrb[0].mxu0 %v2908
      %v3452 = vpop.f32.mrb[0].mxu0
      %v3453 = vadd.f32 0.0, %v3452
      %v3454 = vpop.f32.mrb[0].mxu0
      %3455 = vmatprep.mubr.f32.mxu0 0.0
      %3456 = vmatmul.mubr.f32.gmra.mrb[0].mxu0 %v2911
      %v3457 = vpop.f32.mrb[0].mxu0
      %v3458 = vadd.f32 0.0, %v3457
      %v3459 = vpop.f32.mrb[0].mxu0
      %3460 = vmatprep.mubr.f32.mxu0 0.0
      %3461 = vmatmul.mubr.f32.gmra.mrb[0].mxu0 %v2914
      %v3462 = vpop.f32.mrb[0].mxu0
      %v3463 = vadd.f32 0.0, %v3462
      %v3464 = vpop.f32.mrb[0].mxu0
      %3465 = vmatprep.mubr.f32.mxu0 0.0
      %3466 = vmatmul.mubr.f32.gmra.mrb[0].mxu0 %v2917
      %v3467 = vpop.f32.mrb[0].mxu0
      %v3468 = vadd.f32 0.0, %v3467
      %v3469 = vpop.f32.mrb[0].mxu0
      %3470 = vmatprep.mubr.f32.mxu0 0.0
      %3471 = vmatmul.mubr.f32.gmra.mrb[0].mxu0 %v2920
      %v3472 = vpop.f32.mrb[0].mxu0
      %v3473 = vadd.f32 0.0, %v3472
      %v3474 = vpop.f32.mrb[0].mxu0
      %3475 = vmatprep.mubr.f32.mxu0 0.0
      %3476 = vmatmul.mubr.f32.gmra.mrb[0].mxu0 %v2923
      %v3477 = vpop.f32.mrb[0].mxu0
      %v3478 = vadd.f32 0.0, %v3477
      %v3479 = vpop.f32.mrb[0].mxu0
      %3480 = vmatprep.mubr.f32.mxu0 0.0
      %3481 = vmatmul.mubr.f32.gmra.mrb[0].mxu0 %v2926
      %v3482 = vpop.f32.mrb[0].mxu0
      %v3483 = vadd.f32 0.0, %v3482
      %v3484 = vpop.f32.mrb[0].mxu0
      %3485 = vmatprep.mubr.f32.mxu0 0.0
      %3486 = vmatmul.mubr.f32.gmra.mrb[0].mxu0 %v2929
      %v3487 = vpop.f32.mrb[0].mxu0
      %v3488 = vadd.f32 0.0, %v3487
      %v3489 = vpop.f32.mrb[0].mxu0
      %3490 = vmatprep.mubr.f32.mxu0 0.0
      %3491 = vmatmul.mubr.f32.gmra.mrb[0].mxu0 %v2932
      %v3492 = vpop.f32.mrb[0].mxu0
      %v3493 = vadd.f32 0.0, %v3492
      %v3494 = vpop.f32.mrb[0].mxu0
      %3495 = vmatprep.mubr.f32.mxu0 0.0
      %3496 = vmatmul.mubr.f32.gmra.mrb[0].mxu0 %v2935
      %v3497 = vpop.f32.mrb[0].mxu0
      %v3498 = vadd.f32 0.0, %v3497
      %v3499 = vpop.f32.mrb[0].mxu0
      %3500 = vmatprep.mubr.f32.mxu0 0.0
      %3501 = vmatmul.mubr.f32.gmra.mrb[0].mxu0 %v2938
      %v3502 = vpop.f32.mrb[0].mxu0
      %v3503 = vadd.f32 0.0, %v3502
      %v3504 = vpop.f32.mrb[0].mxu0
      %3505 = vmatprep.mubr.f32.mxu0 0.0
      %3506 = vmatmul.mubr.f32.gmra.mrb[0].mxu0 %v2941
      %v3507 = vpop.f32.mrb[0].mxu0
      %v3508 = vadd.f32 0.0, %v3507
      %v3509 = vpop.f32.mrb[0].mxu0
      %3510 = vmatprep.mubr.f32.mxu0 0.0
      %3511 = vmatmul.mubr.f32.gmra.mrb[0].mxu0 %v2944
      %v3512 = vpop.f32.mrb[0].mxu0
      %v3513 = vadd.f32 0.0, %v3512
      %v3514 = vpop.f32.mrb[0].mxu0
      %3515 = vmatprep.mubr.f32.mxu0 0.0
      %3516 = vmatmul.mubr.f32.gmra.mrb[0].mxu0 %v2947
      %v3517 = vpop.f32.mrb[0].mxu0
      %v3518 = vadd.f32 0.0, %v3517
      %v3519 = vpop.f32.mrb[0].mxu0
      %3520 = vmatprep.mubr.f32.mxu0 0.0
      %3521 = vmatmul.mubr.f32.gmra.mrb[0].mxu0 %v2950
      %v3522 = vpop.f32.mrb[0].mxu0
      %v3523 = vadd.f32 0.0, %v3522
      %v3524 = vpop.f32.mrb[0].mxu0
      %3525 = vmatprep.mubr.f32.mxu0 0.0
      %3526 = vmatmul.mubr.f32.gmra.mrb[0].mxu0 %v2953
      %v3527 = vpop.f32.mrb[0].mxu0
      %v3528 = vadd.f32 0.0, %v3527
      %v3529 = vpop.f32.mrb[0].mxu0
      %3530 = vmatprep.mubr.f32.mxu0 0.0
      %3531 = vmatmul.mubr.f32.gmra.mrb[0].mxu0 %v2956
      %v3532 = vpop.f32.mrb[0].mxu0
      %v3533 = vadd.f32 0.0, %v3532
      %v3534 = vpop.f32.mrb[0].mxu0
      %3535 = vmatprep.mubr.f32.mxu0 0.0
      %3536 = vmatmul.mubr.f32.gmra.mrb[0].mxu0 %v2959
      %v3537 = vpop.f32.mrb[0].mxu0
      %v3538 = vadd.f32 0.0, %v3537
      %v3539 = vpop.f32.mrb[0].mxu0
      %3540 = vmatprep.mubr.f32.mxu0 0.0
      %3541 = vmatmul.mubr.f32.gmra.mrb[0].mxu0 %v2962
      %v3542 = vpop.f32.mrb[0].mxu0
      %v3543 = vadd.f32 0.0, %v3542
      %v3544 = vpop.f32.mrb[0].mxu0
      %3545 = vmatprep.mubr.f32.mxu0 0.0
      %3546 = vmatmul.mubr.f32.gmra.mrb[0].mxu0 %v2965
      %v3547 = vpop.f32.mrb[0].mxu0
      %v3548 = vadd.f32 0.0, %v3547
      %v3549 = vpop.f32.mrb[0].mxu0
      %3550 = vmatprep.mubr.f32.mxu0 0.0
      %3551 = vmatmul.mubr.f32.gmra.mrb[0].mxu0 %v2968
      %v3552 = vpop.f32.mrb[0].mxu0
      %v3553 = vadd.f32 0.0, %v3552
      %v3554 = vpop.f32.mrb[0].mxu0
      %3555 = vmatprep.mubr.f32.mxu0 0.0
      %3556 = vmatmul.mubr.f32.gmra.mrb[0].mxu0 %v2971
      %v3557 = vpop.f32.mrb[0].mxu0
      %v3558 = vadd.f32 0.0, %v3557
      %v3559 = vpop.f32.mrb[0].mxu0
      %3560 = vmatprep.mubr.f32.mxu0 0.0
      %3561 = vmatmul.mubr.f32.gmra.mrb[0].mxu0 %v2974
      %v3562 = vpop.f32.mrb[0].mxu0
      %v3563 = vadd.f32 0.0, %v3562
      %v3564 = vpop.f32.mrb[0].mxu0
      %3565 = vmatprep.mubr.f32.mxu0 0.0
      %3566 = vmatmul.mubr.f32.gmra.mrb[0].mxu0 %v2977
      %v3567 = vpop.f32.mrb[0].mxu0
      %v3568 = vadd.f32 0.0, %v3567
      %v3569 = vpop.f32.mrb[0].mxu0
      %3570 = vmatprep.mubr.f32.mxu0 0.0
      %3571 = vmatmul.mubr.f32.gmra.mrb[0].mxu0 %v2980
      %v3572 = vpop.f32.mrb[0].mxu0
      %v3573 = vadd.f32 0.0, %v3572
      %v3574 = vpop.f32.mrb[0].mxu0
      %3575 = vmatprep.mubr.f32.mxu0 0.0
      %3576 = vmatmul.mubr.f32.gmra.mrb[0].mxu0 %v2983
      %v3577 = vpop.f32.mrb[0].mxu0
      %v3578 = vadd.f32 0.0, %v3577
      %v3579 = vpop.f32.mrb[0].mxu0
      %3580 = vmatprep.mubr.f32.mxu0 0.0
      %3581 = vmatmul.mubr.f32.gmra.mrb[0].mxu0 %v2986
      %v3582 = vpop.f32.mrb[0].mxu0
      %v3583 = vadd.f32 0.0, %v3582
      %v3584 = vpop.f32.mrb[0].mxu0
      %3585 = vmatprep.mubr.f32.mxu0 0.0
      %3586 = vmatmul.mubr.f32.gmra.mrb[0].mxu0 %v2989
      %v3587 = vpop.f32.mrb[0].mxu0
      %v3588 = vadd.f32 0.0, %v3587
      %v3589 = vpop.f32.mrb[0].mxu0
      %3590 = vmatprep.mubr.f32.mxu0 0.0
      %3591 = vmatmul.mubr.f32.gmra.mrb[0].mxu0 %v2992
      %v3592 = vpop.f32.mrb[0].mxu0
      %v3593 = vadd.f32 0.0, %v3592
      %v3594 = vpop.f32.mrb[0].mxu0
      %3595 = vmatprep.mubr.f32.mxu0 0.0
      %3596 = vmatmul.mubr.f32.gmra.mrb[0].mxu0 %v2995
      %v3597 = vpop.f32.mrb[0].mxu0
      %v3598 = vadd.f32 0.0, %v3597
      %v3599 = vpop.f32.mrb[0].mxu0
      %3600 = vmatprep.mubr.f32.mxu0 0.0
      %3601 = vmatmul.mubr.f32.gmra.mrb[0].mxu0 %v2998
      %v3602 = vpop.f32.mrb[0].mxu0
      %v3603 = vadd.f32 0.0, %v3602
      %v3604 = vpop.f32.mrb[0].mxu0
      %3605 = vmatprep.mubr.f32.mxu0 0.0
      %3606 = vmatmul.mubr.f32.gmra.mrb[0].mxu0 %v3001
      %v3607 = vpop.f32.mrb[0].mxu0
      %v3608 = vadd.f32 0.0, %v3607
      %v3609 = vpop.f32.mrb[0].mxu0
      %3610 = vmatprep.mubr.f32.mxu0 0.0
      %3611 = vmatmul.mubr.f32.gmra.mrb[0].mxu0 %v3004
      %v3612 = vpop.f32.mrb[0].mxu0
      %v3613 = vadd.f32 0.0, %v3612
      %v3614 = vpop.f32.mrb[0].mxu0
      %3615 = vmatprep.mubr.f32.mxu0 0.0
      %3616 = vmatmul.mubr.f32.gmra.mrb[0].mxu0 %v3007
      %v3617 = vpop.f32.mrb[0].mxu0
      %v3618 = vadd.f32 0.0, %v3617
      %v3619 = vpop.f32.mrb[0].mxu0
      %3620 = vmatprep.mubr.f32.mxu0 0.0
      %3621 = vmatmul.mubr.f32.gmra.mrb[0].mxu0 %v3010
      %v3622 = vpop.f32.mrb[0].mxu0
      %v3623 = vadd.f32 0.0, %v3622
      %v3624 = vpop.f32.mrb[0].mxu0
      %3625 = vmatprep.mubr.f32.mxu0 0.0
      %3626 = vmatmul.mubr.f32.gmra.mrb[0].mxu0 %v3013
      %v3627 = vpop.f32.mrb[0].mxu0
      %v3628 = vadd.f32 0.0, %v3627
      %v3629 = vpop.f32.mrb[0].mxu0
      %3630 = vmatprep.mubr.f32.mxu0 0.0
      %3631 = vmatmul.mubr.f32.gmra.mrb[0].mxu0 %v3016
      %v3632 = vpop.f32.mrb[0].mxu0
      %v3633 = vadd.f32 0.0, %v3632
      %v3634 = vpop.f32.mrb[0].mxu0
      %3635 = vmatprep.mubr.f32.mxu0 0.0
      %3636 = vmatmul.mubr.f32.gmra.mrb[0].mxu0 %v3019
      %v3637 = vpop.f32.mrb[0].mxu0
      %v3638 = vadd.f32 0.0, %v3637
      %v3639 = vpop.f32.mrb[0].mxu0
      %3640 = vmatprep.mubr.f32.mxu0 0.0
      %3641 = vmatmul.mubr.f32.gmra.mrb[0].mxu0 %v3022
      %v3642 = vpop.f32.mrb[0].mxu0
      %v3643 = vadd.f32 0.0, %v3642
      %v3644 = vpop.f32.mrb[0].mxu0
      %3645 = vmatprep.mubr.f32.mxu0 0.0
      %3646 = vmatmul.mubr.f32.gmra.mrb[0].mxu0 %v3025
      %v3647 = vpop.f32.mrb[0].mxu0
      %v3648 = vadd.f32 0.0, %v3647
      %v3649 = vpop.f32.mrb[0].mxu0
      %3650 = vmatprep.mubr.f32.mxu0 0.0
      %3651 = vmatmul.mubr.f32.gmra.mrb[0].mxu0 %v3028
      %v3652 = vpop.f32.mrb[0].mxu0
      %v3653 = vadd.f32 0.0, %v3652
      %v3654 = vpop.f32.mrb[0].mxu0
      %3655 = vmatprep.mubr.f32.mxu0 0.0
      %3656 = vmatmul.mubr.f32.gmra.mrb[0].mxu0 %v3031
      %v3657 = vpop.f32.mrb[0].mxu0
      %v3658 = vadd.f32 0.0, %v3657
      %v3659 = vpop.f32.mrb[0].mxu0
      %3660 = vmatprep.mubr.f32.mxu0 0.0
      %3661 = vmatmul.mubr.f32.gmra.mrb[0].mxu0 %v3034
      %v3662 = vpop.f32.mrb[0].mxu0
      %v3663 = vadd.f32 0.0, %v3662
      %v3664 = vpop.f32.mrb[0].mxu0
      %3665 = vmatprep.mubr.f32.mxu0 0.0
      %3666 = vmatmul.mubr.f32.gmra.mrb[0].mxu0 %v3037
      %v3667 = vpop.f32.mrb[0].mxu0
      %v3668 = vadd.f32 0.0, %v3667
      %v3669 = vpop.f32.mrb[0].mxu0
      %3670 = vmatprep.mubr.f32.mxu0 0.0
      %3671 = vmatmul.mubr.f32.gmra.mrb[0].mxu0 %v3040
      %v3672 = vpop.f32.mrb[0].mxu0
      %v3673 = vadd.f32 0.0, %v3672
      %v3674 = vpop.f32.mrb[0].mxu0
      %3675 = vmatprep.mubr.f32.mxu0 0.0
      %3676 = vmatmul.mubr.f32.gmra.mrb[0].mxu0 %v3043
      %v3677 = vpop.f32.mrb[0].mxu0
      %v3678 = vadd.f32 0.0, %v3677
      %v3679 = vpop.f32.mrb[0].mxu0
      %3680 = vmatprep.mubr.f32.mxu0 0.0
      %3681 = vmatmul.mubr.f32.gmra.mrb[0].mxu0 %v3046
      %v3682 = vpop.f32.mrb[0].mxu0
      %v3683 = vadd.f32 0.0, %v3682
      %v3684 = vpop.f32.mrb[0].mxu0
      %3685 = vmatprep.mubr.f32.mxu0 0.0
      %3686 = vmatmul.mubr.f32.gmra.mrb[0].mxu0 %v3049
      %v3687 = vpop.f32.mrb[0].mxu0
      %v3688 = vadd.f32 0.0, %v3687
      %v3689 = vpop.f32.mrb[0].mxu0
      %3690 = vmatprep.mubr.f32.mxu0 0.0
      %3691 = vmatmul.mubr.f32.gmra.mrb[0].mxu0 %v3052
      %v3692 = vpop.f32.mrb[0].mxu0
      %v3693 = vadd.f32 0.0, %v3692
      %v3694 = vpop.f32.mrb[0].mxu0
      %3695 = vmatprep.mubr.f32.mxu0 0.0
      %3696 = vmatmul.mubr.f32.gmra.mrb[0].mxu0 %v3055
      %v3697 = vpop.f32.mrb[0].mxu0
      %v3698 = vadd.f32 0.0, %v3697
      %v3699 = vpop.f32.mrb[0].mxu0
      %3700 = vmatprep.mubr.f32.mxu0 0.0
      %3701 = vmatmul.mubr.f32.gmra.mrb[0].mxu0 %v3058
      %v3702 = vpop.f32.mrb[0].mxu0
      %v3703 = vadd.f32 0.0, %v3702
      %v3704 = vpop.f32.mrb[0].mxu0
      %3705 = vmatprep.mubr.f32.mxu0 0.0
      %3706 = vmatmul.mubr.f32.gmra.mrb[0].mxu0 %v3061
      %v3707 = vpop.f32.mrb[0].mxu0
      %v3708 = vadd.f32 0.0, %v3707
      %v3709 = vpop.f32.mrb[0].mxu0
      %3710 = vmatprep.mubr.f32.mxu0 0.0
      %3711 = vmatmul.mubr.f32.gmra.mrb[0].mxu0 %v3064
      %v3712 = vpop.f32.mrb[0].mxu0
      %v3713 = vadd.f32 0.0, %v3712
      %v3714 = vpop.f32.mrb[0].mxu0
      %3715 = vmatprep.mubr.f32.mxu0 0.0
      %3716 = vmatmul.mubr.f32.gmra.mrb[0].mxu0 %v3067
      %v3717 = vpop.f32.mrb[0].mxu0
      %v3718 = vadd.f32 0.0, %v3717
      %v3719 = vpop.f32.mrb[0].mxu0
      %3720 = vmatprep.mubr.f32.mxu0 0.0
      %3721 = vmatmul.mubr.f32.gmra.mrb[0].mxu0 %v3070
      %v3722 = vpop.f32.mrb[0].mxu0
      %v3723 = vadd.f32 0.0, %v3722
      %v3724 = vpop.f32.mrb[0].mxu0
      %3725 = vmatprep.mubr.f32.mxu0 0.0
      %3726 = vmatmul.mubr.f32.gmra.mrb[0].mxu0 %v3073
      %v3727 = vpop.f32.mrb[0].mxu0
      %v3728 = vadd.f32 0.0, %v3727
      %v3729 = vpop.f32.mrb[0].mxu0
      %3730 = vmatprep.mubr.f32.mxu0 0.0
      %3731 = vmatmul.mubr.f32.gmra.mrb[0].mxu0 %v3076
      %v3732 = vpop.f32.mrb[0].mxu0
      %v3733 = vadd.f32 0.0, %v3732
      %v3734 = vpop.f32.mrb[0].mxu0
      %3735 = vmatprep.mubr.f32.mxu0 0.0
      %3736 = vmatmul.mubr.f32.gmra.mrb[0].mxu0 %v3079
      %v3737 = vpop.f32.mrb[0].mxu0
      %v3738 = vadd.f32 0.0, %v3737
      %v3739 = vpop.f32.mrb[0].mxu0
      %3740 = vmatprep.mubr.f32.mxu0 0.0
      %3741 = vmatmul.mubr.f32.gmra.mrb[0].mxu0 %v3082
      %v3742 = vpop.f32.mrb[0].mxu0
      %v3743 = vadd.f32 0.0, %v3742
      %v3744 = vpop.f32.mrb[0].mxu0
      %3745 = vmatprep.mubr.f32.mxu0 0.0
      %3746 = vmatmul.mubr.f32.gmra.mrb[0].mxu0 %v3085
      %v3747 = vpop.f32.mrb[0].mxu0
      %v3748 = vadd.f32 0.0, %v3747
      %v3749 = vpop.f32.mrb[0].mxu0
      %3750 = vmatprep.mubr.f32.mxu0 0.0
      %3751 = vmatmul.mubr.f32.gmra.mrb[0].mxu0 %v3088
      %v3752 = vpop.f32.mrb[0].mxu0
      %v3753 = vadd.f32 0.0, %v3752
      %v3754 = vpop.f32.mrb[0].mxu0
      %3755 = vmatprep.mubr.f32.mxu0 0.0
      %3756 = vmatmul.mubr.f32.gmra.mrb[0].mxu0 %v3091
      %v3757 = vpop.f32.mrb[0].mxu0
      %v3758 = vadd.f32 0.0, %v3757
      %v3759 = vpop.f32.mrb[0].mxu0
      %3760 = vmatprep.mubr.f32.mxu0 0.0
      %3761 = vmatmul.mubr.f32.gmra.mrb[0].mxu0 %v3094
      %v3762 = vpop.f32.mrb[0].mxu0
      %v3763 = vadd.f32 0.0, %v3762
      %v3764 = vpop.f32.mrb[0].mxu0
      %3765 = vmatprep.mubr.f32.mxu0 0.0
      %3766 = vmatmul.mubr.f32.gmra.mrb[0].mxu0 %v3097
      %v3767 = vpop.f32.mrb[0].mxu0
      %v3768 = vadd.f32 0.0, %v3767
      %v3769 = vpop.f32.mrb[0].mxu0
      %3770 = vmatprep.mubr.f32.mxu0 0.0
      %3771 = vmatmul.mubr.f32.gmra.mrb[0].mxu0 %v3100
      %v3772 = vpop.f32.mrb[0].mxu0
      %v3773 = vadd.f32 0.0, %v3772
      %v3774 = vpop.f32.mrb[0].mxu0
      %3775 = vmatprep.mubr.f32.mxu0 0.0
      %3776 = vmatmul.mubr.f32.gmra.mrb[0].mxu0 %v3103
      %v3777 = vpop.f32.mrb[0].mxu0
      %v3778 = vadd.f32 0.0, %v3777
      %v3779 = vpop.f32.mrb[0].mxu0
      %3780 = vmatprep.mubr.f32.mxu0 0.0
      %3781 = vmatmul.mubr.f32.gmra.mrb[0].mxu0 %v3106
      %v3782 = vpop.f32.mrb[0].mxu0
      %v3783 = vadd.f32 0.0, %v3782
      %v3784 = vpop.f32.mrb[0].mxu0
      %3785 = vmatprep.mubr.f32.mxu0 0.0
      %3786 = vmatmul.mubr.f32.gmra.mrb[0].mxu0 %v3109
      %v3787 = vpop.f32.mrb[0].mxu0
      %v3788 = vadd.f32 0.0, %v3787
      %v3789 = vpop.f32.mrb[0].mxu0
      %3790 = vmatprep.mubr.f32.mxu0 0.0
      %3791 = vmatmul.mubr.f32.gmra.mrb[0].mxu0 %v3112
      %v3792 = vpop.f32.mrb[0].mxu0
      %v3793 = vadd.f32 0.0, %v3792
      %v3794 = vpop.f32.mrb[0].mxu0
      %3795 = vmatprep.mubr.f32.mxu0 0.0
      %3796 = vmatmul.mubr.f32.gmra.mrb[0].mxu0 %v3115
      %v3797 = vpop.f32.mrb[0].mxu0
      %v3798 = vadd.f32 0.0, %v3797
      %v3799 = vpop.f32.mrb[0].mxu0
      %3800 = vmatprep.mubr.f32.mxu0 0.0
      %3801 = vmatmul.mubr.f32.gmra.mrb[0].mxu0 %v3118
      %v3802 = vpop.f32.mrb[0].mxu0
      %v3803 = vadd.f32 0.0, %v3802
      %v3804 = vpop.f32.mrb[0].mxu0
      %3805 = vmatprep.mubr.f32.mxu0 0.0
      %3806 = vmatmul.mubr.f32.gmra.mrb[0].mxu0 %v3121
      %v3807 = vpop.f32.mrb[0].mxu0
      %v3808 = vadd.f32 0.0, %v3807
      %v3809 = vpop.f32.mrb[0].mxu0
      %3810 = vmatprep.mubr.f32.mxu0 0.0
      %3811 = vmatmul.mubr.f32.gmra.mrb[0].mxu0 %v3124
      %v3812 = vpop.f32.mrb[0].mxu0
      %v3813 = vadd.f32 0.0, %v3812
      %v3814 = vpop.f32.mrb[0].mxu0
      %3815 = vmatprep.mubr.f32.mxu0 0.0
      %3816 = vmatmul.mubr.f32.gmra.mrb[0].mxu0 %v3127
      %v3817 = vpop.f32.mrb[0].mxu0
      %v3818 = vadd.f32 0.0, %v3817
      %v3819 = vpop.f32.mrb[0].mxu0
      %3820 = vmatprep.mubr.f32.mxu0 0.0
      %3821 = vmatmul.mubr.f32.gmra.mrb[0].mxu0 %v3130
      %v3822 = vpop.f32.mrb[0].mxu0
      %v3823 = vadd.f32 0.0, %v3822
      %v3824 = vpop.f32.mrb[0].mxu0
      %3825 = vmatprep.mubr.f32.mxu0 0.0
      %3826 = vmatmul.mubr.f32.gmra.mrb[0].mxu0 %v3133
      %v3827 = vpop.f32.mrb[0].mxu0
      %v3828 = vadd.f32 0.0, %v3827
      %v3829 = vpop.f32.mrb[0].mxu0
      %3830 = vmatprep.mubr.f32.mxu0 0.0
      %3831 = vmatmul.mubr.f32.gmra.mrb[0].mxu0 %v3136
      %v3832 = vpop.f32.mrb[0].mxu0
      %v3833 = vadd.f32 0.0, %v3832
      %v3834 = vpop.f32.mrb[0].mxu0
      %3835 = vmatprep.mubr.f32.mxu0 0.0
      %3836 = vmatmul.mubr.f32.gmra.mrb[0].mxu0 %v3139
      %v3837 = vpop.f32.mrb[0].mxu0
      %v3838 = vadd.f32 0.0, %v3837
      %v3839 = vpop.f32.mrb[0].mxu0
      %3840 = vmatprep.mubr.f32.mxu0 0.0
      %3841 = vmatmul.mubr.f32.gmra.mrb[0].mxu0 %v3142
      %v3842 = vpop.f32.mrb[0].mxu0
      %v3843 = vadd.f32 0.0, %v3842
      %v3844 = vpop.f32.mrb[0].mxu0
      %3845 = vmatprep.mubr.f32.mxu0 0.0
      %3846 = vmatmul.mubr.f32.gmra.mrb[0].mxu0 %v3145
      %v3847 = vpop.f32.mrb[0].mxu0
      %v3848 = vadd.f32 0.0, %v3847
      %v3849 = vpop.f32.mrb[0].mxu0
      %3850 = vmatprep.mubr.f32.mxu0 0.0
      %3851 = vmatmul.mubr.f32.gmra.mrb[0].mxu0 %v3148
      %v3852 = vpop.f32.mrb[0].mxu0
      %v3853 = vadd.f32 0.0, %v3852
      %v3854 = vpop.f32.mrb[0].mxu0
      %3855 = vmatprep.mubr.f32.mxu0 0.0
      %3856 = vmatmul.mubr.f32.gmra.mrb[0].mxu0 %v3151
      %v3857 = vpop.f32.mrb[0].mxu0
      %v3858 = vadd.f32 0.0, %v3857
      %v3859 = vpop.f32.mrb[0].mxu0
      %3860 = vdwg.mxu0
      %v3861 = vadd.f32 %v2001, %v3223
      %v3862 = vadd.f32 %v2006, %v3228
      %v3863 = vadd.f32 %v2011, %v3233
      %v3864 = vadd.f32 %v2016, %v3238
      %v3865 = vadd.f32 %v2021, %v3243
      %v3866 = vadd.f32 %v2026, %v3248
      %v3867 = vadd.f32 %v2031, %v3253
      %v3868 = vadd.f32 %v2036, %v3258
      %v3869 = vadd.f32 %v2041, %v3263
      %v3870 = vadd.f32 %v2046, %v3268
      %v3871 = vadd.f32 %v2051, %v3273
      %v3872 = vadd.f32 %v2056, %v3278
      %v3873 = vadd.f32 %v2061, %v3283
      %v3874 = vadd.f32 %v2066, %v3288
      %v3875 = vadd.f32 %v2071, %v3293
      %v3876 = vadd.f32 %v2076, %v3298
      %v3877 = vadd.f32 %v2081, %v3303
      %v3878 = vadd.f32 %v2086, %v3308
      %v3879 = vadd.f32 %v2091, %v3313
      %v3880 = vadd.f32 %v2096, %v3318
      %v3881 = vadd.f32 %v2101, %v3323
      %v3882 = vadd.f32 %v2106, %v3328
      %v3883 = vadd.f32 %v2111, %v3333
      %v3884 = vadd.f32 %v2116, %v3338
      %v3885 = vadd.f32 %v2121, %v3343
      %v3886 = vadd.f32 %v2126, %v3348
      %v3887 = vadd.f32 %v2131, %v3353
      %v3888 = vadd.f32 %v2136, %v3358
      %v3889 = vadd.f32 %v2141, %v3363
      %v3890 = vadd.f32 %v2146, %v3368
      %v3891 = vadd.f32 %v2151, %v3373
      %v3892 = vadd.f32 %v2156, %v3378
      %v3893 = vadd.f32 %v2161, %v3383
      %v3894 = vadd.f32 %v2166, %v3388
      %v3895 = vadd.f32 %v2171, %v3393
      %v3896 = vadd.f32 %v2176, %v3398
      %v3897 = vadd.f32 %v2181, %v3403
      %v3898 = vadd.f32 %v2186, %v3408
      %v3899 = vadd.f32 %v2191, %v3413
      %v3900 = vadd.f32 %v2196, %v3418
      %v3901 = vadd.f32 %v2201, %v3423
      %v3902 = vadd.f32 %v2206, %v3428
      %v3903 = vadd.f32 %v2211, %v3433
      %v3904 = vadd.f32 %v2216, %v3438
      %v3905 = vadd.f32 %v2221, %v3443
      %v3906 = vadd.f32 %v2226, %v3448
      %v3907 = vadd.f32 %v2231, %v3453
      %v3908 = vadd.f32 %v2236, %v3458
      %v3909 = vadd.f32 %v2241, %v3463
      %v3910 = vadd.f32 %v2246, %v3468
      %v3911 = vadd.f32 %v2251, %v3473
      %v3912 = vadd.f32 %v2256, %v3478
      %v3913 = vadd.f32 %v2261, %v3483
      %v3914 = vadd.f32 %v2266, %v3488
      %v3915 = vadd.f32 %v2271, %v3493
      %v3916 = vadd.f32 %v2276, %v3498
      %v3917 = vadd.f32 %v2281, %v3503
      %v3918 = vadd.f32 %v2286, %v3508
      %v3919 = vadd.f32 %v2291, %v3513
      %v3920 = vadd.f32 %v2296, %v3518
      %v3921 = vadd.f32 %v2301, %v3523
      %v3922 = vadd.f32 %v2306, %v3528
      %v3923 = vadd.f32 %v2311, %v3533
      %v3924 = vadd.f32 %v2316, %v3538
      %v3925 = vadd.f32 %v2321, %v3543
      %v3926 = vadd.f32 %v2326, %v3548
      %v3927 = vadd.f32 %v2331, %v3553
      %v3928 = vadd.f32 %v2336, %v3558
      %v3929 = vadd.f32 %v2341, %v3563
      %v3930 = vadd.f32 %v2346, %v3568
      %v3931 = vadd.f32 %v2351, %v3573
      %v3932 = vadd.f32 %v2356, %v3578
      %v3933 = vadd.f32 %v2361, %v3583
      %v3934 = vadd.f32 %v2366, %v3588
      %v3935 = vadd.f32 %v2371, %v3593
      %v3936 = vadd.f32 %v2376, %v3598
      %v3937 = vadd.f32 %v2381, %v3603
      %v3938 = vadd.f32 %v2386, %v3608
      %v3939 = vadd.f32 %v2391, %v3613
      %v3940 = vadd.f32 %v2396, %v3618
      %v3941 = vadd.f32 %v2401, %v3623
      %v3942 = vadd.f32 %v2406, %v3628
      %v3943 = vadd.f32 %v2411, %v3633
      %v3944 = vadd.f32 %v2416, %v3638
      %v3945 = vadd.f32 %v2421, %v3643
      %v3946 = vadd.f32 %v2426, %v3648
      %v3947 = vadd.f32 %v2431, %v3653
      %v3948 = vadd.f32 %v2436, %v3658
      %v3949 = vadd.f32 %v2441, %v3663
      %v3950 = vadd.f32 %v2446, %v3668
      %v3951 = vadd.f32 %v2451, %v3673
      %v3952 = vadd.f32 %v2456, %v3678
      %v3953 = vadd.f32 %v2461, %v3683
      %v3954 = vadd.f32 %v2466, %v3688
      %v3955 = vadd.f32 %v2471, %v3693
      %v3956 = vadd.f32 %v2476, %v3698
      %v3957 = vadd.f32 %v2481, %v3703
      %v3958 = vadd.f32 %v2486, %v3708
      %v3959 = vadd.f32 %v2491, %v3713
      %v3960 = vadd.f32 %v2496, %v3718
      %v3961 = vadd.f32 %v2501, %v3723
      %v3962 = vadd.f32 %v2506, %v3728
      %v3963 = vadd.f32 %v2511, %v3733
      %v3964 = vadd.f32 %v2516, %v3738
      %v3965 = vadd.f32 %v2521, %v3743
      %v3966 = vadd.f32 %v2526, %v3748
      %v3967 = vadd.f32 %v2531, %v3753
      %v3968 = vadd.f32 %v2536, %v3758
      %v3969 = vadd.f32 %v2541, %v3763
      %v3970 = vadd.f32 %v2546, %v3768
      %v3971 = vadd.f32 %v2551, %v3773
      %v3972 = vadd.f32 %v2556, %v3778
      %v3973 = vadd.f32 %v2561, %v3783
      %v3974 = vadd.f32 %v2566, %v3788
      %v3975 = vadd.f32 %v2571, %v3793
      %v3976 = vadd.f32 %v2576, %v3798
      %v3977 = vadd.f32 %v2581, %v3803
      %v3978 = vadd.f32 %v2586, %v3808
      %v3979 = vadd.f32 %v2591, %v3813
      %v3980 = vadd.f32 %v2596, %v3818
      %v3981 = vadd.f32 %v2601, %v3823
      %v3982 = vadd.f32 %v2606, %v3828
      %v3983 = vadd.f32 %v2611, %v3833
      %v3984 = vadd.f32 %v2616, %v3838
      %v3985 = vadd.f32 %v2621, %v3843
      %v3986 = vadd.f32 %v2626, %v3848
      %v3987 = vadd.f32 %v2631, %v3853
      %v3988 = vadd.f32 %v2636, %v3858
      %v3989 = vld [vmem:[%s2] sm:$0x1]
      %v3991 = vlaneseq
      %v3992 = vshrl.u32 %v3991, 7
      %v3993 = vsub.s32 0, %v3992
      %v3994 = vrot.slane %v3989, %v3993
      %v3996 = vadd.f32 %v3861, %v3994
      %v3997 = vadd.f32 %v3862, %v3994
      %v3998 = vadd.f32 %v3863, %v3994
      %v3999 = vadd.f32 %v3864, %v3994
      %v4000 = vadd.f32 %v3865, %v3994
      %v4001 = vadd.f32 %v3866, %v3994
      %v4002 = vadd.f32 %v3867, %v3994
      %v4003 = vadd.f32 %v3868, %v3994
      %v4004 = vadd.f32 %v3869, %v3994
      %v4005 = vadd.f32 %v3870, %v3994
      %v4006 = vadd.f32 %v3871, %v3994
      %v4007 = vadd.f32 %v3872, %v3994
      %v4008 = vadd.f32 %v3873, %v3994
      %v4009 = vadd.f32 %v3874, %v3994
      %v4010 = vadd.f32 %v3875, %v3994
      %v4011 = vadd.f32 %v3876, %v3994
      %v4012 = vadd.f32 %v3877, %v3994
      %v4013 = vadd.f32 %v3878, %v3994
      %v4014 = vadd.f32 %v3879, %v3994
      %v4015 = vadd.f32 %v3880, %v3994
      %v4016 = vadd.f32 %v3881, %v3994
      %v4017 = vadd.f32 %v3882, %v3994
      %v4018 = vadd.f32 %v3883, %v3994
      %v4019 = vadd.f32 %v3884, %v3994
      %v4020 = vadd.f32 %v3885, %v3994
      %v4021 = vadd.f32 %v3886, %v3994
      %v4022 = vadd.f32 %v3887, %v3994
      %v4023 = vadd.f32 %v3888, %v3994
      %v4024 = vadd.f32 %v3889, %v3994
      %v4025 = vadd.f32 %v3890, %v3994
      %v4026 = vadd.f32 %v3891, %v3994
      %v4027 = vadd.f32 %v3892, %v3994
      %v4028 = vadd.f32 %v3893, %v3994
      %v4029 = vadd.f32 %v3894, %v3994
      %v4030 = vadd.f32 %v3895, %v3994
      %v4031 = vadd.f32 %v3896, %v3994
      %v4032 = vadd.f32 %v3897, %v3994
      %v4033 = vadd.f32 %v3898, %v3994
      %v4034 = vadd.f32 %v3899, %v3994
      %v4035 = vadd.f32 %v3900, %v3994
      %v4036 = vadd.f32 %v3901, %v3994
      %v4037 = vadd.f32 %v3902, %v3994
      %v4038 = vadd.f32 %v3903, %v3994
      %v4039 = vadd.f32 %v3904, %v3994
      %v4040 = vadd.f32 %v3905, %v3994
      %v4041 = vadd.f32 %v3906, %v3994
      %v4042 = vadd.f32 %v3907, %v3994
      %v4043 = vadd.f32 %v3908, %v3994
      %v4044 = vadd.f32 %v3909, %v3994
      %v4045 = vadd.f32 %v3910, %v3994
      %v4046 = vadd.f32 %v3911, %v3994
      %v4047 = vadd.f32 %v3912, %v3994
      %v4048 = vadd.f32 %v3913, %v3994
      %v4049 = vadd.f32 %v3914, %v3994
      %v4050 = vadd.f32 %v3915, %v3994
      %v4051 = vadd.f32 %v3916, %v3994
      %v4052 = vadd.f32 %v3917, %v3994
      %v4053 = vadd.f32 %v3918, %v3994
      %v4054 = vadd.f32 %v3919, %v3994
      %v4055 = vadd.f32 %v3920, %v3994
      %v4056 = vadd.f32 %v3921, %v3994
      %v4057 = vadd.f32 %v3922, %v3994
      %v4058 = vadd.f32 %v3923, %v3994
      %v4059 = vadd.f32 %v3924, %v3994
      %v4060 = vadd.f32 %v3925, %v3994
      %v4061 = vadd.f32 %v3926, %v3994
      %v4062 = vadd.f32 %v3927, %v3994
      %v4063 = vadd.f32 %v3928, %v3994
      %v4064 = vadd.f32 %v3929, %v3994
      %v4065 = vadd.f32 %v3930, %v3994
      %v4066 = vadd.f32 %v3931, %v3994
      %v4067 = vadd.f32 %v3932, %v3994
      %v4068 = vadd.f32 %v3933, %v3994
      %v4069 = vadd.f32 %v3934, %v3994
      %v4070 = vadd.f32 %v3935, %v3994
      %v4071 = vadd.f32 %v3936, %v3994
      %v4072 = vadd.f32 %v3937, %v3994
      %v4073 = vadd.f32 %v3938, %v3994
      %v4074 = vadd.f32 %v3939, %v3994
      %v4075 = vadd.f32 %v3940, %v3994
      %v4076 = vadd.f32 %v3941, %v3994
      %v4077 = vadd.f32 %v3942, %v3994
      %v4078 = vadd.f32 %v3943, %v3994
      %v4079 = vadd.f32 %v3944, %v3994
      %v4080 = vadd.f32 %v3945, %v3994
      %v4081 = vadd.f32 %v3946, %v3994
      %v4082 = vadd.f32 %v3947, %v3994
      %v4083 = vadd.f32 %v3948, %v3994
      %v4084 = vadd.f32 %v3949, %v3994
      %v4085 = vadd.f32 %v3950, %v3994
      %v4086 = vadd.f32 %v3951, %v3994
      %v4087 = vadd.f32 %v3952, %v3994
      %v4088 = vadd.f32 %v3953, %v3994
      %v4089 = vadd.f32 %v3954, %v3994
      %v4090 = vadd.f32 %v3955, %v3994
      %v4091 = vadd.f32 %v3956, %v3994
      %v4092 = vadd.f32 %v3957, %v3994
      %v4093 = vadd.f32 %v3958, %v3994
      %v4094 = vadd.f32 %v3959, %v3994
      %v4095 = vadd.f32 %v3960, %v3994
      %v4096 = vadd.f32 %v3961, %v3994
      %v4097 = vadd.f32 %v3962, %v3994
      %v4098 = vadd.f32 %v3963, %v3994
      %v4099 = vadd.f32 %v3964, %v3994
      %v4100 = vadd.f32 %v3965, %v3994
      %v4101 = vadd.f32 %v3966, %v3994
      %v4102 = vadd.f32 %v3967, %v3994
      %v4103 = vadd.f32 %v3968, %v3994
      %v4104 = vadd.f32 %v3969, %v3994
      %v4105 = vadd.f32 %v3970, %v3994
      %v4106 = vadd.f32 %v3971, %v3994
      %v4107 = vadd.f32 %v3972, %v3994
      %v4108 = vadd.f32 %v3973, %v3994
      %v4109 = vadd.f32 %v3974, %v3994
      %v4110 = vadd.f32 %v3975, %v3994
      %v4111 = vadd.f32 %v3976, %v3994
      %v4112 = vadd.f32 %v3977, %v3994
      %v4113 = vadd.f32 %v3978, %v3994
      %v4114 = vadd.f32 %v3979, %v3994
      %v4115 = vadd.f32 %v3980, %v3994
      %v4116 = vadd.f32 %v3981, %v3994
      %v4117 = vadd.f32 %v3982, %v3994
      %v4118 = vadd.f32 %v3983, %v3994
      %v4119 = vadd.f32 %v3984, %v3994
      %v4120 = vadd.f32 %v3985, %v3994
      %v4121 = vadd.f32 %v3986, %v3994
      %v4122 = vadd.f32 %v3987, %v3994
      %v4123 = vadd.f32 %v3988, %v3994
      %v4124 = vmax.f32 %v3996, 0.0
      %v4125 = vmax.f32 %v3997, 0.0
      %v4126 = vmax.f32 %v3998, 0.0
      %v4127 = vmax.f32 %v3999, 0.0
      %v4128 = vmax.f32 %v4000, 0.0
      %v4129 = vmax.f32 %v4001, 0.0
      %v4130 = vmax.f32 %v4002, 0.0
      %v4131 = vmax.f32 %v4003, 0.0
      %v4132 = vmax.f32 %v4004, 0.0
      %v4133 = vmax.f32 %v4005, 0.0
      %v4134 = vmax.f32 %v4006, 0.0
      %v4135 = vmax.f32 %v4007, 0.0
      %v4136 = vmax.f32 %v4008, 0.0
      %v4137 = vmax.f32 %v4009, 0.0
      %v4138 = vmax.f32 %v4010, 0.0
      %v4139 = vmax.f32 %v4011, 0.0
      %v4140 = vmax.f32 %v4012, 0.0
      %v4141 = vmax.f32 %v4013, 0.0
      %v4142 = vmax.f32 %v4014, 0.0
      %v4143 = vmax.f32 %v4015, 0.0
      %v4144 = vmax.f32 %v4016, 0.0
      %v4145 = vmax.f32 %v4017, 0.0
      %v4146 = vmax.f32 %v4018, 0.0
      %v4147 = vmax.f32 %v4019, 0.0
      %v4148 = vmax.f32 %v4020, 0.0
      %v4149 = vmax.f32 %v4021, 0.0
      %v4150 = vmax.f32 %v4022, 0.0
      %v4151 = vmax.f32 %v4023, 0.0
      %v4152 = vmax.f32 %v4024, 0.0
      %v4153 = vmax.f32 %v4025, 0.0
      %v4154 = vmax.f32 %v4026, 0.0
      %v4155 = vmax.f32 %v4027, 0.0
      %v4156 = vmax.f32 %v4028, 0.0
      %v4157 = vmax.f32 %v4029, 0.0
      %v4158 = vmax.f32 %v4030, 0.0
      %v4159 = vmax.f32 %v4031, 0.0
      %v4160 = vmax.f32 %v4032, 0.0
      %v4161 = vmax.f32 %v4033, 0.0
      %v4162 = vmax.f32 %v4034, 0.0
      %v4163 = vmax.f32 %v4035, 0.0
      %v4164 = vmax.f32 %v4036, 0.0
      %v4165 = vmax.f32 %v4037, 0.0
      %v4166 = vmax.f32 %v4038, 0.0
      %v4167 = vmax.f32 %v4039, 0.0
      %v4168 = vmax.f32 %v4040, 0.0
      %v4169 = vmax.f32 %v4041, 0.0
      %v4170 = vmax.f32 %v4042, 0.0
      %v4171 = vmax.f32 %v4043, 0.0
      %v4172 = vmax.f32 %v4044, 0.0
      %v4173 = vmax.f32 %v4045, 0.0
      %v4174 = vmax.f32 %v4046, 0.0
      %v4175 = vmax.f32 %v4047, 0.0
      %v4176 = vmax.f32 %v4048, 0.0
      %v4177 = vmax.f32 %v4049, 0.0
      %v4178 = vmax.f32 %v4050, 0.0
      %v4179 = vmax.f32 %v4051, 0.0
      %v4180 = vmax.f32 %v4052, 0.0
      %v4181 = vmax.f32 %v4053, 0.0
      %v4182 = vmax.f32 %v4054, 0.0
      %v4183 = vmax.f32 %v4055, 0.0
      %v4184 = vmax.f32 %v4056, 0.0
      %v4185 = vmax.f32 %v4057, 0.0
      %v4186 = vmax.f32 %v4058, 0.0
      %v4187 = vmax.f32 %v4059, 0.0
      %v4188 = vmax.f32 %v4060, 0.0
      %v4189 = vmax.f32 %v4061, 0.0
      %v4190 = vmax.f32 %v4062, 0.0
      %v4191 = vmax.f32 %v4063, 0.0
      %v4192 = vmax.f32 %v4064, 0.0
      %v4193 = vmax.f32 %v4065, 0.0
      %v4194 = vmax.f32 %v4066, 0.0
      %v4195 = vmax.f32 %v4067, 0.0
      %v4196 = vmax.f32 %v4068, 0.0
      %v4197 = vmax.f32 %v4069, 0.0
      %v4198 = vmax.f32 %v4070, 0.0
      %v4199 = vmax.f32 %v4071, 0.0
      %v4200 = vmax.f32 %v4072, 0.0
      %v4201 = vmax.f32 %v4073, 0.0
      %v4202 = vmax.f32 %v4074, 0.0
      %v4203 = vmax.f32 %v4075, 0.0
      %v4204 = vmax.f32 %v4076, 0.0
      %v4205 = vmax.f32 %v4077, 0.0
      %v4206 = vmax.f32 %v4078, 0.0
      %v4207 = vmax.f32 %v4079, 0.0
      %v4208 = vmax.f32 %v4080, 0.0
      %v4209 = vmax.f32 %v4081, 0.0
      %v4210 = vmax.f32 %v4082, 0.0
      %v4211 = vmax.f32 %v4083, 0.0
      %v4212 = vmax.f32 %v4084, 0.0
      %v4213 = vmax.f32 %v4085, 0.0
      %v4214 = vmax.f32 %v4086, 0.0
      %v4215 = vmax.f32 %v4087, 0.0
      %v4216 = vmax.f32 %v4088, 0.0
      %v4217 = vmax.f32 %v4089, 0.0
      %v4218 = vmax.f32 %v4090, 0.0
      %v4219 = vmax.f32 %v4091, 0.0
      %v4220 = vmax.f32 %v4092, 0.0
      %v4221 = vmax.f32 %v4093, 0.0
      %v4222 = vmax.f32 %v4094, 0.0
      %v4223 = vmax.f32 %v4095, 0.0
      %v4224 = vmax.f32 %v4096, 0.0
      %v4225 = vmax.f32 %v4097, 0.0
      %v4226 = vmax.f32 %v4098, 0.0
      %v4227 = vmax.f32 %v4099, 0.0
      %v4228 = vmax.f32 %v4100, 0.0
      %v4229 = vmax.f32 %v4101, 0.0
      %v4230 = vmax.f32 %v4102, 0.0
      %v4231 = vmax.f32 %v4103, 0.0
      %v4232 = vmax.f32 %v4104, 0.0
      %v4233 = vmax.f32 %v4105, 0.0
      %v4234 = vmax.f32 %v4106, 0.0
      %v4235 = vmax.f32 %v4107, 0.0
      %v4236 = vmax.f32 %v4108, 0.0
      %v4237 = vmax.f32 %v4109, 0.0
      %v4238 = vmax.f32 %v4110, 0.0
      %v4239 = vmax.f32 %v4111, 0.0
      %v4240 = vmax.f32 %v4112, 0.0
      %v4241 = vmax.f32 %v4113, 0.0
      %v4242 = vmax.f32 %v4114, 0.0
      %v4243 = vmax.f32 %v4115, 0.0
      %v4244 = vmax.f32 %v4116, 0.0
      %v4245 = vmax.f32 %v4117, 0.0
      %v4246 = vmax.f32 %v4118, 0.0
      %v4247 = vmax.f32 %v4119, 0.0
      %v4248 = vmax.f32 %v4120, 0.0
      %v4249 = vmax.f32 %v4121, 0.0
      %v4250 = vmax.f32 %v4122, 0.0
      %v4251 = vmax.f32 %v4123, 0.0
      %vm4252 = vcmask 261120
      %4253 = vst.msk [vmem:[%s192] sm:$0xff] %vm4252, %v4124
      %4254 = vst.msk [vmem:[%s192 + $0x8] sm:$0xff] %vm4252, %v4125
      %4255 = vst.msk [vmem:[%s192 + $0x10] sm:$0xff] %vm4252, %v4126
      %4256 = vst.msk [vmem:[%s192 + $0x18] sm:$0xff] %vm4252, %v4127
      %4257 = vst.msk [vmem:[%s192 + $0x20] sm:$0xff] %vm4252, %v4128
      %4258 = vst.msk [vmem:[%s192 + $0x28] sm:$0xff] %vm4252, %v4129
      %4259 = vst.msk [vmem:[%s192 + $0x30] sm:$0xff] %vm4252, %v4130
      %4260 = vst.msk [vmem:[%s192 + $0x38] sm:$0xff] %vm4252, %v4131
      %4261 = vst.msk [vmem:[%s192 + $0x40] sm:$0xff] %vm4252, %v4132
      %4262 = vst.msk [vmem:[%s192 + $0x48] sm:$0xff] %vm4252, %v4133
      %4263 = vst.msk [vmem:[%s192 + $0x50] sm:$0xff] %vm4252, %v4134
      %4264 = vst.msk [vmem:[%s192 + $0x58] sm:$0xff] %vm4252, %v4135
      %4265 = vst.msk [vmem:[%s192 + $0x60] sm:$0xff] %vm4252, %v4136
      %4266 = vst.msk [vmem:[%s192 + $0x68] sm:$0xff] %vm4252, %v4137
      %4267 = vst.msk [vmem:[%s192 + $0x70] sm:$0xff] %vm4252, %v4138
      %4268 = vst.msk [vmem:[%s192 + $0x78] sm:$0xff] %vm4252, %v4139
      %4269 = vst.msk [vmem:[%s192 + $0x80] sm:$0xff] %vm4252, %v4140
      %4270 = vst.msk [vmem:[%s192 + $0x88] sm:$0xff] %vm4252, %v4141
      %4271 = vst.msk [vmem:[%s192 + $0x90] sm:$0xff] %vm4252, %v4142
      %4272 = vst.msk [vmem:[%s192 + $0x98] sm:$0xff] %vm4252, %v4143
      %4273 = vst.msk [vmem:[%s192 + $0xa0] sm:$0xff] %vm4252, %v4144
      %4274 = vst.msk [vmem:[%s192 + $0xa8] sm:$0xff] %vm4252, %v4145
      %4275 = vst.msk [vmem:[%s192 + $0xb0] sm:$0xff] %vm4252, %v4146
      %4276 = vst.msk [vmem:[%s192 + $0xb8] sm:$0xff] %vm4252, %v4147
      %4277 = vst.msk [vmem:[%s192 + $0xc0] sm:$0xff] %vm4252, %v4148
      %4278 = vst.msk [vmem:[%s192 + $0xc8] sm:$0xff] %vm4252, %v4149
      %4279 = vst.msk [vmem:[%s192 + $0xd0] sm:$0xff] %vm4252, %v4150
      %4280 = vst.msk [vmem:[%s192 + $0xd8] sm:$0xff] %vm4252, %v4151
      %4281 = vst.msk [vmem:[%s192 + $0xe0] sm:$0xff] %vm4252, %v4152
      %4282 = vst.msk [vmem:[%s192 + $0xe8] sm:$0xff] %vm4252, %v4153
      %4283 = vst.msk [vmem:[%s192 + $0xf0] sm:$0xff] %vm4252, %v4154
      %4284 = vst.msk [vmem:[%s192 + $0xf8] sm:$0xff] %vm4252, %v4155
      %4285 = vst.msk [vmem:[%s192 + $0x100] sm:$0xff] %vm4252, %v4156
      %4286 = vst.msk [vmem:[%s192 + $0x108] sm:$0xff] %vm4252, %v4157
      %4287 = vst.msk [vmem:[%s192 + $0x110] sm:$0xff] %vm4252, %v4158
      %4288 = vst.msk [vmem:[%s192 + $0x118] sm:$0xff] %vm4252, %v4159
      %4289 = vst.msk [vmem:[%s192 + $0x120] sm:$0xff] %vm4252, %v4160
      %4290 = vst.msk [vmem:[%s192 + $0x128] sm:$0xff] %vm4252, %v4161
      %4291 = vst.msk [vmem:[%s192 + $0x130] sm:$0xff] %vm4252, %v4162
      %4292 = vst.msk [vmem:[%s192 + $0x138] sm:$0xff] %vm4252, %v4163
      %4293 = vst.msk [vmem:[%s192 + $0x140] sm:$0xff] %vm4252, %v4164
      %4294 = vst.msk [vmem:[%s192 + $0x148] sm:$0xff] %vm4252, %v4165
      %4295 = vst.msk [vmem:[%s192 + $0x150] sm:$0xff] %vm4252, %v4166
      %4296 = vst.msk [vmem:[%s192 + $0x158] sm:$0xff] %vm4252, %v4167
      %4297 = vst.msk [vmem:[%s192 + $0x160] sm:$0xff] %vm4252, %v4168
      %4298 = vst.msk [vmem:[%s192 + $0x168] sm:$0xff] %vm4252, %v4169
      %4299 = vst.msk [vmem:[%s192 + $0x170] sm:$0xff] %vm4252, %v4170
      %4300 = vst.msk [vmem:[%s192 + $0x178] sm:$0xff] %vm4252, %v4171
      %4301 = vst.msk [vmem:[%s192 + $0x180] sm:$0xff] %vm4252, %v4172
      %4302 = vst.msk [vmem:[%s192 + $0x188] sm:$0xff] %vm4252, %v4173
      %4303 = vst.msk [vmem:[%s192 + $0x190] sm:$0xff] %vm4252, %v4174
      %4304 = vst.msk [vmem:[%s192 + $0x198] sm:$0xff] %vm4252, %v4175
      %4305 = vst.msk [vmem:[%s192 + $0x1a0] sm:$0xff] %vm4252, %v4176
      %4306 = vst.msk [vmem:[%s192 + $0x1a8] sm:$0xff] %vm4252, %v4177
      %4307 = vst.msk [vmem:[%s192 + $0x1b0] sm:$0xff] %vm4252, %v4178
      %4308 = vst.msk [vmem:[%s192 + $0x1b8] sm:$0xff] %vm4252, %v4179
      %4309 = vst.msk [vmem:[%s192 + $0x1c0] sm:$0xff] %vm4252, %v4180
      %4310 = vst.msk [vmem:[%s192 + $0x1c8] sm:$0xff] %vm4252, %v4181
      %4311 = vst.msk [vmem:[%s192 + $0x1d0] sm:$0xff] %vm4252, %v4182
      %4312 = vst.msk [vmem:[%s192 + $0x1d8] sm:$0xff] %vm4252, %v4183
      %4313 = vst.msk [vmem:[%s192 + $0x1e0] sm:$0xff] %vm4252, %v4184
      %4314 = vst.msk [vmem:[%s192 + $0x1e8] sm:$0xff] %vm4252, %v4185
      %4315 = vst.msk [vmem:[%s192 + $0x1f0] sm:$0xff] %vm4252, %v4186
      %4316 = vst.msk [vmem:[%s192 + $0x1f8] sm:$0xff] %vm4252, %v4187
      %4317 = vst.msk [vmem:[%s192 + $0x200] sm:$0xff] %vm4252, %v4188
      %4318 = vst.msk [vmem:[%s192 + $0x208] sm:$0xff] %vm4252, %v4189
      %4319 = vst.msk [vmem:[%s192 + $0x210] sm:$0xff] %vm4252, %v4190
      %4320 = vst.msk [vmem:[%s192 + $0x218] sm:$0xff] %vm4252, %v4191
      %4321 = vst.msk [vmem:[%s192 + $0x220] sm:$0xff] %vm4252, %v4192
      %4322 = vst.msk [vmem:[%s192 + $0x228] sm:$0xff] %vm4252, %v4193
      %4323 = vst.msk [vmem:[%s192 + $0x230] sm:$0xff] %vm4252, %v4194
      %4324 = vst.msk [vmem:[%s192 + $0x238] sm:$0xff] %vm4252, %v4195
      %4325 = vst.msk [vmem:[%s192 + $0x240] sm:$0xff] %vm4252, %v4196
      %4326 = vst.msk [vmem:[%s192 + $0x248] sm:$0xff] %vm4252, %v4197
      %4327 = vst.msk [vmem:[%s192 + $0x250] sm:$0xff] %vm4252, %v4198
      %4328 = vst.msk [vmem:[%s192 + $0x258] sm:$0xff] %vm4252, %v4199
      %4329 = vst.msk [vmem:[%s192 + $0x260] sm:$0xff] %vm4252, %v4200
      %4330 = vst.msk [vmem:[%s192 + $0x268] sm:$0xff] %vm4252, %v4201
      %4331 = vst.msk [vmem:[%s192 + $0x270] sm:$0xff] %vm4252, %v4202
      %4332 = vst.msk [vmem:[%s192 + $0x278] sm:$0xff] %vm4252, %v4203
      %4333 = vst.msk [vmem:[%s192 + $0x280] sm:$0xff] %vm4252, %v4204
      %4334 = vst.msk [vmem:[%s192 + $0x288] sm:$0xff] %vm4252, %v4205
      %4335 = vst.msk [vmem:[%s192 + $0x290] sm:$0xff] %vm4252, %v4206
      %4336 = vst.msk [vmem:[%s192 + $0x298] sm:$0xff] %vm4252, %v4207
      %4337 = vst.msk [vmem:[%s192 + $0x2a0] sm:$0xff] %vm4252, %v4208
      %4338 = vst.msk [vmem:[%s192 + $0x2a8] sm:$0xff] %vm4252, %v4209
      %4339 = vst.msk [vmem:[%s192 + $0x2b0] sm:$0xff] %vm4252, %v4210
      %4340 = vst.msk [vmem:[%s192 + $0x2b8] sm:$0xff] %vm4252, %v4211
      %4341 = vst.msk [vmem:[%s192 + $0x2c0] sm:$0xff] %vm4252, %v4212
      %4342 = vst.msk [vmem:[%s192 + $0x2c8] sm:$0xff] %vm4252, %v4213
      %4343 = vst.msk [vmem:[%s192 + $0x2d0] sm:$0xff] %vm4252, %v4214
      %4344 = vst.msk [vmem:[%s192 + $0x2d8] sm:$0xff] %vm4252, %v4215
      %4345 = vst.msk [vmem:[%s192 + $0x2e0] sm:$0xff] %vm4252, %v4216
      %4346 = vst.msk [vmem:[%s192 + $0x2e8] sm:$0xff] %vm4252, %v4217
      %4347 = vst.msk [vmem:[%s192 + $0x2f0] sm:$0xff] %vm4252, %v4218
      %4348 = vst.msk [vmem:[%s192 + $0x2f8] sm:$0xff] %vm4252, %v4219
      %4349 = vst.msk [vmem:[%s192 + $0x300] sm:$0xff] %vm4252, %v4220
      %4350 = vst.msk [vmem:[%s192 + $0x308] sm:$0xff] %vm4252, %v4221
      %4351 = vst.msk [vmem:[%s192 + $0x310] sm:$0xff] %vm4252, %v4222
      %4352 = vst.msk [vmem:[%s192 + $0x318] sm:$0xff] %vm4252, %v4223
      %4353 = vst.msk [vmem:[%s192 + $0x320] sm:$0xff] %vm4252, %v4224
      %4354 = vst.msk [vmem:[%s192 + $0x328] sm:$0xff] %vm4252, %v4225
      %4355 = vst.msk [vmem:[%s192 + $0x330] sm:$0xff] %vm4252, %v4226
      %4356 = vst.msk [vmem:[%s192 + $0x338] sm:$0xff] %vm4252, %v4227
      %4357 = vst.msk [vmem:[%s192 + $0x340] sm:$0xff] %vm4252, %v4228
      %4358 = vst.msk [vmem:[%s192 + $0x348] sm:$0xff] %vm4252, %v4229
      %4359 = vst.msk [vmem:[%s192 + $0x350] sm:$0xff] %vm4252, %v4230
      %4360 = vst.msk [vmem:[%s192 + $0x358] sm:$0xff] %vm4252, %v4231
      %4361 = vst.msk [vmem:[%s192 + $0x360] sm:$0xff] %vm4252, %v4232
      %4362 = vst.msk [vmem:[%s192 + $0x368] sm:$0xff] %vm4252, %v4233
      %4363 = vst.msk [vmem:[%s192 + $0x370] sm:$0xff] %vm4252, %v4234
      %4364 = vst.msk [vmem:[%s192 + $0x378] sm:$0xff] %vm4252, %v4235
      %4365 = vst.msk [vmem:[%s192 + $0x380] sm:$0xff] %vm4252, %v4236
      %4366 = vst.msk [vmem:[%s192 + $0x388] sm:$0xff] %vm4252, %v4237
      %4367 = vst.msk [vmem:[%s192 + $0x390] sm:$0xff] %vm4252, %v4238
      %4368 = vst.msk [vmem:[%s192 + $0x398] sm:$0xff] %vm4252, %v4239
      %4369 = vst.msk [vmem:[%s192 + $0x3a0] sm:$0xff] %vm4252, %v4240
      %4370 = vst.msk [vmem:[%s192 + $0x3a8] sm:$0xff] %vm4252, %v4241
      %4371 = vst.msk [vmem:[%s192 + $0x3b0] sm:$0xff] %vm4252, %v4242
      %4372 = vst.msk [vmem:[%s192 + $0x3b8] sm:$0xff] %vm4252, %v4243
      %4373 = vst.msk [vmem:[%s192 + $0x3c0] sm:$0xff] %vm4252, %v4244
      %4374 = vst.msk [vmem:[%s192 + $0x3c8] sm:$0xff] %vm4252, %v4245
      %4375 = vst.msk [vmem:[%s192 + $0x3d0] sm:$0xff] %vm4252, %v4246
      %4376 = vst.msk [vmem:[%s192 + $0x3d8] sm:$0xff] %vm4252, %v4247
      %4377 = vst.msk [vmem:[%s192 + $0x3e0] sm:$0xff] %vm4252, %v4248
      %4378 = vst.msk [vmem:[%s192 + $0x3e8] sm:$0xff] %vm4252, %v4249
      %4379 = vst.msk [vmem:[%s192 + $0x3f0] sm:$0xff] %vm4252, %v4250
      %4380 = vst.msk [vmem:[%s192 + $0x3f8] sm:$0xff] %vm4252, %v4251
      %s4381 = smul.u32 128, %s19
      %p4382 = scmp.lt.s32.totalorder %s18, 1
      %s4383 = scalar_select %p4382, %s18, 1
      %p4384 = scmp.lt.s32.totalorder %s4381, 127
      %s4385 = scalar_select %p4384, %s4381, 127
      %s4386 = smul.addr %s4383, 128
      %s4387 = sadd.s32 %s4385, %s4386
      %s4388 = smul.addr %s4387, 8
      %s4389 = scalar_lea.vmem %s3, %s4388
      // Predicated region
      $region33: #{tpu_custom_call.1} parent=31 // pred_check
        %p4390 = pneg %p114
      $region34: #{tpu_custom_call.1} parent=31 // pred_check_branch
        %4392 = sbr.rel (%p4390) target = $region36
      $region35: #{tpu_custom_call.1} parent=31 // pred_region
        %s4393 = smul.u32 128, %s19
      $region36: #{tpu_custom_call.1} parent=31 // pred_fallthru
        _
    $region32: #{tpu_custom_call.1} parent=5 // pred_fallthru
      _
    %p4394 = scmp.le.s32.totalorder 2, %s9
    // Predicated region
    $region37: #{tpu_custom_call.1} parent=5 // pred_check
      %p4395 = pneg %p4394
    $region38: #{tpu_custom_call.1} parent=5 // pred_check_branch
      %4397 = sbr.rel (%p4395) target = $region40
    $region39: #{tpu_custom_call.1} parent=5 // pred_region
      %s4398 = ssub.s32 %s9, 2
      // Predicated region
      $region41: #{tpu_custom_call.1} parent=39 // pred_check
        %p4399 = pneg %p120
      $region42: #{tpu_custom_call.1} parent=39 // pred_check_branch
        %4401 = sbr.rel (%p4399) target = $region44
      $region43: #{tpu_custom_call.1} parent=39 // pred_region
        %s4402 = smul.u32 128, %s21
        %p4403 = scmp.lt.s32.totalorder %s20, 1
        %s4404 = scalar_select %p4403, %s20, 1
        %p4405 = scmp.lt.s32.totalorder %s4402, 127
        %s4406 = scalar_select %p4405, %s4402, 127
        %s4407 = smul.addr %s4404, 128
        %s4408 = sadd.s32 %s4406, %s4407
        %s4409 = smul.addr %s4408, 8
        %s4410 = scalar_lea.vmem %s3, %s4409
      $region44: #{tpu_custom_call.1} parent=39 // pred_fallthru
        _
    $region40: #{tpu_custom_call.1} parent=5 // pred_fallthru
      _
  $region6: #{tpu_custom_call.1} parent=0 // loop_footer
    %s13 = sadd.s32 1, %s9
  $region7: #{tpu_custom_call.1} parent=0 // loop_footer_branch
    %8 = sbr.rel target = $region3
  $region8: #{tpu_custom_call.1} parent=0 // loop_exit
    _

</llo_original>
